<compile_context>
chip_gen: v7x
topology: tpu7x:2x2x1
jax: 0.10.0
libtpu: 0.0.40
codegen_flags: <defaults>
</compile_context>

<pallas_src>
import functools

import jax
import jax.numpy as jnp
from jax.experimental import pallas as pl
from jax.experimental.pallas import tpu as pltpu

VGG_MEAN = (0.485, 0.456, 0.406)
VGG_STD = (0.229, 0.224, 0.225)

_K_FIRST = 32  # first-conv im2col contraction: 27 real taps zero-padded to 32


def _vmem_limit_bytes():
    """Generation-dependent scoped-VMEM budget (~5/8 of physical, capped)."""
    cap = None
    try:
        cap = getattr(pltpu.get_tpu_info(), "vmem_capacity_bytes", None)
    except Exception:
        cap = None
    if not cap or cap <= 0:
        cap = 64 * 1024 * 1024  # assume v7x physical (most conservative)
    return int(min(cap * 5 // 8, 96 * 1024 * 1024))


_VMEM_LIMIT = _vmem_limit_bytes()


def _cparams(dims):
    return pltpu.CompilerParams(dimension_semantics=dims,
                                vmem_limit_bytes=_VMEM_LIMIT)


# --------------------------------------------------------------------------
# wrapper-side glue (XLA): nearest resize, preprocessing affine, Cin=3 im2col
# --------------------------------------------------------------------------
def nearest_resize(x_nhwc, size):
    # TODO(synk): gather-based nearest resize has no clean Pallas tile pattern;
    # it stays as XLA glue (identity when input spatial == size).
    N, H, W, C = x_nhwc.shape
    if (H, W) == (size, size):
        return x_nhwc
    ih = (jnp.arange(size) * H) // size   # floor(i*H/size): torch mode='nearest'
    iw = (jnp.arange(size) * W) // size
    return x_nhwc[:, ih][:, :, iw]


def _first_conv_im2col(x_pre):
    """Zero-pad + 3x3 im2col of the (tiny, 3-channel) preprocessed image.

    Plain XLA wrapper glue (per perf review: the Cin=3 im2col is pure layout
    work that would waste the TPU vector units).  Output is lane-packed:
    (B, H*W, 32) bf16 with the 27 real taps in the leading lanes.
    """
    B, H, W, C = x_pre.shape
    xp = jnp.pad(x_pre, ((0, 0), (1, 1), (1, 1), (0, 0)))
    cols = [xp[:, dy:dy + H, dx:dx + W, :]
            for dy in range(3) for dx in range(3)]
    patch = jnp.concatenate(cols, axis=-1).reshape(B, H * W, 9 * C)
    patch = jnp.pad(patch, ((0, 0), (0, 0), (0, _K_FIRST - 9 * C)))
    return patch.astype(jnp.bfloat16)


# --------------------------------------------------------------------------
# first conv (Cin=3): single K=32 MXU dot on wrapper-built im2col patches
# (+ optional fused ReLU / 2x2 maxpool epilogue)
# --------------------------------------------------------------------------
def _conv_first_kernel(p_ref, w_ref, b_ref, o_ref, *, H, W, apply_relu,
                       fuse_pool):
    # p_ref: (1, H*W, 32) bf16   w_ref: (32, Cout) bf16   b_ref: (1, Cout) f32
    Cout = o_ref.shape[-1]
    acc = jnp.dot(p_ref[0], w_ref[...], preferred_element_type=jnp.float32)
    out = acc + b_ref[...]
    if apply_relu:
        out = jnp.maximum(out, 0.0)
    out = out.reshape(H, W, Cout)
    if fuse_pool:
        Ho, Wo = H // 2, W // 2
        out = out[:2 * Ho, :2 * Wo, :].reshape(Ho, 2, Wo, 2, Cout)
        out = jnp.max(out, axis=(1, 3))
    o_ref[0] = out.astype(o_ref.dtype)


def conv3x3_first(patch, w, b, hw, apply_relu, fuse_pool):
    B, HW, Kp = patch.shape
    H, W = hw
    Cout = w.shape[-1]
    Ho, Wo = (H // 2, W // 2) if fuse_pool else (H, W)
    kernel = functools.partial(_conv_first_kernel, H=H, W=W,
                               apply_relu=apply_relu, fuse_pool=fuse_pool)
    return pl.pallas_call(
        kernel,
        out_shape=jax.ShapeDtypeStruct((B, Ho, Wo, Cout), jnp.bfloat16),
        grid=(B,),
        in_specs=[
            pl.BlockSpec((1, HW, Kp), lambda n: (n, 0, 0)),
            pl.BlockSpec((Kp, Cout), lambda n: (0, 0)),
            pl.BlockSpec((1, Cout), lambda n: (0, 0)),
        ],
        out_specs=pl.BlockSpec((1, Ho, Wo, Cout), lambda n: (n, 0, 0, 0)),
        compiler_params=_cparams(("parallel",)),
    )(patch, w, b)


# --------------------------------------------------------------------------
# generic 3x3 conv (pad=1, stride=1) for deep layers (Cin >= 64):
# 3 MXU dots with K = 3*Cin, value-summed partials (no accumulator scratch),
# halo scratch with border-only zeroing, optional fused ReLU / 2x2 maxpool.
# --------------------------------------------------------------------------
def _conv3x3_kernel(x_ref, w_ref, b_ref, o_ref, pad_ref, *, apply_relu,
                    fuse_pool):
    # x_ref:   (1, H, W, Cin)    bf16 feature block
    # w_ref:   (3, 3*Cin, Cout)  bf16, grouped per kernel row (K = 3*Cin)
    # b_ref:   (1, Cout)         f32
    # pad_ref: (H+2, W+2, Cin)   bf16 halo scratch (only the border is zeroed)
    H, W = x_ref.shape[1], x_ref.shape[2]
    Cin = x_ref.shape[3]
    Cout = o_ref.shape[-1]
    dt = pad_ref.dtype

    # Zero only the 1-px border, unconditionally (the "parallel" grid axis can
    # be split across TensorCores, so program_id gating would be wrong); the
    # interior is fully overwritten from x_ref every step.
    pad_ref[0:1, :, :] = jnp.zeros((1, W + 2, Cin), dt)
    pad_ref[H + 1:H + 2, :, :] = jnp.zeros((1, W + 2, Cin), dt)
    pad_ref[:, 0:1, :] = jnp.zeros((H + 2, 1, Cin), dt)
    pad_ref[:, W + 1:W + 2, :] = jnp.zeros((H + 2, 1, Cin), dt)
    pad_ref[1:H + 1, 1:W + 1, :] = x_ref[0].astype(dt)

    # Three dots with K = 3*Cin (one per kernel row); partial sums stay as
    # values -- no VMEM accumulator read-modify-write.
    acc = None
    for dy in range(3):
        rows = pad_ref[dy:dy + H, :, :]                  # (H, W+2, Cin)
        patch = jnp.concatenate(
            [rows[:, 0:W, :], rows[:, 1:W + 1, :], rows[:, 2:W + 2, :]],
            axis=-1).reshape(H * W, 3 * Cin)
        part = jnp.dot(patch, w_ref[dy], preferred_element_type=jnp.float32)
        acc = part if acc is None else acc + part

    out = acc + b_ref[...]
    if apply_relu:
        out = jnp.maximum(out, 0.0)
    out = out.reshape(H, W, Cout)
    if fuse_pool:
        Ho, Wo = H // 2, W // 2
        out = out[:2 * Ho, :2 * Wo, :].reshape(Ho, 2, Wo, 2, Cout)
        out = jnp.max(out, axis=(1, 3))
    o_ref[0] = out.astype(o_ref.dtype)


def conv3x3(x, w3, b, apply_relu, fuse_pool):
    N, H, W, Cin = x.shape
    Cout = w3.shape[-1]
    Ho, Wo = (H // 2, W // 2) if fuse_pool else (H, W)
    kernel = functools.partial(_conv3x3_kernel, apply_relu=apply_relu,
                               fuse_pool=fuse_pool)
    return pl.pallas_call(
        kernel,
        out_shape=jax.ShapeDtypeStruct((N, Ho, Wo, Cout), jnp.bfloat16),
        grid=(N,),
        in_specs=[
            pl.BlockSpec((1, H, W, Cin), lambda n: (n, 0, 0, 0)),
            pl.BlockSpec((3, 3 * Cin, Cout), lambda n: (0, 0, 0)),
            pl.BlockSpec((1, Cout), lambda n: (0, 0)),
        ],
        out_specs=pl.BlockSpec((1, Ho, Wo, Cout), lambda n: (n, 0, 0, 0)),
        scratch_shapes=[pltpu.VMEM((H + 2, W + 2, Cin), jnp.bfloat16)],
        compiler_params=_cparams(("parallel",)),
    )(x, w3, b)


# --------------------------------------------------------------------------
# standalone 2x2 maxpool fallback (normally unused: pooling is fused into the
# preceding conv epilogue for every VGG16 prefix).  No strided ref loads.
# --------------------------------------------------------------------------
def _maxpool_kernel(x_ref, o_ref):
    _, Ho, Wo, C = o_ref.shape
    x = x_ref[0]
    x = x[:2 * Ho, :2 * Wo, :].reshape(Ho, 2, Wo, 2, C)
    o_ref[0] = jnp.max(x, axis=(1, 3))


def maxpool2x2(x):
    N, H, W, C = x.shape
    Ho, Wo = H // 2, W // 2
    return pl.pallas_call(
        _maxpool_kernel,
        out_shape=jax.ShapeDtypeStruct((N, Ho, Wo, C), x.dtype),
        grid=(N,),
        in_specs=[pl.BlockSpec((1, H, W, C), lambda n: (n, 0, 0, 0))],
        out_specs=pl.BlockSpec((1, Ho, Wo, C), lambda n: (n, 0, 0, 0)),
        compiler_params=_cparams(("parallel",)),
    )(x)


# --------------------------------------------------------------------------
# feature loss: mean(L2 or L1 over all elements) * 0.001, two-way parallel
# partial sums (v7x megacore), partials combined in JAX.
# --------------------------------------------------------------------------
def _loss_kernel(a_ref, b_ref, o_ref, acc_ref, *, n, loss_type):
    # a_ref/b_ref: (1, H, W, C) feature blocks; acc_ref: (W, C) f32 partial.
    p = pl.program_id(0)
    m = pl.program_id(1)
    M = pl.num_programs(1)

    @pl.when(m == 0)
    def _():
        acc_ref[...] = jnp.zeros_like(acc_ref)

    @pl.when(p * M + m < n)
    def _():
        d = a_ref[0].astype(jnp.float32) - b_ref[0].astype(jnp.float32)
        v = d * d if loss_type == "L2" else jnp.abs(d)
        acc_ref[...] += jnp.sum(v, axis=0)

    @pl.when(m == M - 1)
    def _():
        o_ref[0] = jnp.sum(acc_ref[...], keepdims=True)


def feature_loss(feats, n, loss_type="L2", scale=0.001):
    # feats: (2n, H, W, C) with feats[:n] = x features, feats[n:] = gt features.
    _, H, W, C = feats.shape
    count = float(n * H * W * C)
    P = 2 if n >= 2 else 1
    M = pl.cdiv(n, P)
    kernel = functools.partial(_loss_kernel, n=n, loss_type=loss_type)

    def a_map(p, m):
        return (jnp.minimum(p * M + m, n - 1), 0, 0, 0)

    def b_map(p, m):
        return (jnp.minimum(p * M + m, n - 1) + n, 0, 0, 0)

    partials = pl.pallas_call(
        kernel,
        out_shape=jax.ShapeDtypeStruct((P, 1, 1), jnp.float32),
        grid=(P, M),
        in_specs=[
            pl.BlockSpec((1, H, W, C), a_map),
            pl.BlockSpec((1, H, W, C), b_map),
        ],
        out_specs=pl.BlockSpec((1, 1, 1), lambda p, m: (p, 0, 0)),
        scratch_shapes=[pltpu.VMEM((W, C), jnp.float32)],
        compiler_params=_cparams(("parallel", "arbitrary")),
    )(feats, feats)
    return jnp.sum(partials) * (scale / count)


# --------------------------------------------------------------------------
# VGG16 feature prefix (torchvision layer ordering), sliced at `vgg_layer`
# --------------------------------------------------------------------------
def vgg16_layer_cfg():
    cfg = [64, 64, "M", 128, 128, "M", 256, 256, 256, "M",
           512, 512, 512, "M", 512, 512, 512, "M"]
    layers, cin = [], 3
    for v in cfg:
        if v == "M":
            layers.append(("pool", None, None))
        else:
            layers.append(("conv", cin, v))
            layers.append(("relu", None, None))
            cin = v
    return layers


def init_vgg_params(key, vgg_layer):
    # Deterministic synthetic weights (no checkpoint load), same shapes as
    # torchvision vgg16 features[:vgg_layer].  Stored f32 HWIO; packed/cast to
    # bf16 per-kernel (f32 accumulation in-kernel, ~1e-3 rel. vs f32 torch).
    params = []
    for kind, cin, cout in vgg16_layer_cfg()[:vgg_layer]:
        if kind == "conv":
            key, kw, kb = jax.random.split(key, 3)
            w = jax.random.normal(kw, (3, 3, cin, cout), jnp.float32) * 0.05
            b = jax.random.normal(kb, (cout,), jnp.float32) * 0.01
            params.append((w, b))
    return params


def vgg_features(x, params, vgg_layer):
    # x: (B, H, W, 3) f32, already preprocessed (per-channel affine) + resized.
    layers = vgg16_layer_cfg()[:vgg_layer]
    p, i = 0, 0
    first_conv = True
    while i < len(layers):
        kind = layers[i][0]
        if kind == "conv":
            fuse_relu = i + 1 < len(layers) and layers[i + 1][0] == "relu"
            fuse_pool = (fuse_relu and i + 2 < len(layers)
                         and layers[i + 2][0] == "pool")
            w, b = params[p]
            cin, cout = w.shape[2], w.shape[3]
            b2 = b.reshape(1, cout)
            if first_conv:
                B, H, W, _ = x.shape
                patch = _first_conv_im2col(x)
                w2 = jnp.pad(w.reshape(9 * cin, cout),
                             ((0, _K_FIRST - 9 * cin), (0, 0))
                             ).astype(jnp.bfloat16)
                x = conv3x3_first(patch, w2, b2, (H, W), fuse_relu, fuse_pool)
                first_conv = False
            else:
                w2 = w.reshape(3, 3 * cin, cout).astype(jnp.bfloat16)
                x = conv3x3(x, w2, b2, fuse_relu, fuse_pool)
            p += 1
            i += 1 + int(fuse_relu) + int(fuse_pool)
        elif kind == "relu":
            x = jnp.maximum(x, 0.0)   # unreachable for VGG16 prefixes
            i += 1
        else:
            x = maxpool2x2(x)         # unreachable for VGG16 prefixes
            i += 1
    return x


def vgg_loss(x_nchw, gt_nchw, params, *, vgg_layer, image_size,
             loss_type="L2"):
    n = x_nchw.shape[0]
    # One fused tower on concat(x, gt): conv weights stay resident across 2N
    # grid steps and both v7x TensorCores get parallel work.
    both = jnp.concatenate([x_nchw, gt_nchw], axis=0)
    both = jnp.transpose(both, (0, 2, 3, 1)).astype(jnp.float32)  # NCHW->NHWC
    both = nearest_resize(both, image_size)
    mean = jnp.asarray(VGG_MEAN, jnp.float32).reshape(1, 1, 1, 3)
    std = jnp.asarray(VGG_STD, jnp.float32).reshape(1, 1, 1, 3)
    both = (both * 0.5 + 0.5 - mean) / std   # exact; commutes with nearest resize
    feats = vgg_features(both, params, vgg_layer)
    return feature_loss(feats, n, loss_type=loss_type, scale=0.001)


if __name__ == "__main__":
    VGG_LAYER = 5      # conv(3->64), relu, conv(64->64), relu, maxpool
    IMAGE_SIZE = 16    # args.image_size
    LOSS_TYPE = "L2"   # args.vgg_loss_type

    key = jax.random.PRNGKey(0)
    kx, kg, kp = jax.random.split(key, 3)
    N, C, H, W = 2, 3, 16, 16
    x = jax.random.uniform(kx, (N, C, H, W), jnp.float32, -1.0, 1.0)
    gt = jax.random.uniform(kg, (N, C, H, W), jnp.float32, -1.0, 1.0)

    params = init_vgg_params(kp, VGG_LAYER)
    loss_fn = jax.jit(functools.partial(vgg_loss, vgg_layer=VGG_LAYER,
                                        image_size=IMAGE_SIZE,
                                        loss_type=LOSS_TYPE))
    loss = jax.block_until_ready(loss_fn(x, gt, params))
    assert loss.shape == () and bool(jnp.isfinite(loss))
    print("KERNEL_OK")
</pallas_src>

<mosaic_0001>
module attributes {stable_mosaic.version = 11 : i64} {
  func.func @_conv3x3_kernel(%arg0: i32, %arg1: memref<1x16x16x64xbf16, #tpu.memory_space<vmem>>, %arg2: memref<3x192x64xbf16, #tpu.memory_space<vmem>>, %arg3: memref<1x64xf32, #tpu.memory_space<vmem>>, %arg4: memref<1x8x8x64xbf16, #tpu.memory_space<vmem>>, %arg5: memref<18x18x64xbf16, #tpu.memory_space<vmem>>) attributes {dimension_semantics = [#tpu.dimension_semantics<parallel>], iteration_bounds = array<i64: 4>, scalar_prefetch = 0 : i64, scratch_operands = 1 : i64, tpu.core_type = #tpu.core_type<tc>, window_params = [{transform_indices = @transform_0, window_bounds = array<i64: 1, 16, 16, 64>}, {pipeline_mode = #tpu.pipeline_mode<synchronous>, transform_indices = @transform_1, window_bounds = array<i64: 3, 192, 64>}, {pipeline_mode = #tpu.pipeline_mode<synchronous>, transform_indices = @transform_2, window_bounds = array<i64: 1, 64>}, {transform_indices = @transform_3, window_bounds = array<i64: 1, 8, 8, 64>}]} {
    %cst = arith.constant 0.000000e+00 : bf16
    %0 = vector.broadcast %cst : bf16 to vector<1x18x64xbf16>
    %c0 = arith.constant 0 : index
    %c0_0 = arith.constant 0 : index
    %c0_1 = arith.constant 0 : index
    %1 = vector.load %arg5[%c0, %c0_0, %c0_1] : memref<18x18x64xbf16, #tpu.memory_space<vmem>>, vector<1x18x64xbf16>
    tpu.vector_store %arg5[%c0, %c0_0, %c0_1], %0 {strides = array<i32>} : memref<18x18x64xbf16, #tpu.memory_space<vmem>>, vector<1x18x64xbf16>,
    %cst_2 = arith.constant 0.000000e+00 : bf16
    %2 = vector.broadcast %cst_2 : bf16 to vector<1x18x64xbf16>
    %c17 = arith.constant 17 : index
    %c0_3 = arith.constant 0 : index
    %c0_4 = arith.constant 0 : index
    %3 = vector.load %arg5[%c17, %c0_3, %c0_4] : memref<18x18x64xbf16, #tpu.memory_space<vmem>>, vector<1x18x64xbf16>
    tpu.vector_store %arg5[%c17, %c0_3, %c0_4], %2 {strides = array<i32>} : memref<18x18x64xbf16, #tpu.memory_space<vmem>>, vector<1x18x64xbf16>,
    %cst_5 = arith.constant 0.000000e+00 : bf16
    %4 = vector.broadcast %cst_5 : bf16 to vector<18x1x64xbf16>
    %c0_6 = arith.constant 0 : index
    %c0_7 = arith.constant 0 : index
    %c0_8 = arith.constant 0 : index
    %5 = vector.load %arg5[%c0_6, %c0_7, %c0_8] : memref<18x18x64xbf16, #tpu.memory_space<vmem>>, vector<18x1x64xbf16>
    tpu.vector_store %arg5[%c0_6, %c0_7, %c0_8], %4 {strides = array<i32>} : memref<18x18x64xbf16, #tpu.memory_space<vmem>>, vector<18x1x64xbf16>,
    %cst_9 = arith.constant 0.000000e+00 : bf16
    %6 = vector.broadcast %cst_9 : bf16 to vector<18x1x64xbf16>
    %c0_10 = arith.constant 0 : index
    %c17_11 = arith.constant 17 : index
    %c0_12 = arith.constant 0 : index
    %7 = vector.load %arg5[%c0_10, %c17_11, %c0_12] : memref<18x18x64xbf16, #tpu.memory_space<vmem>>, vector<18x1x64xbf16>
    tpu.vector_store %arg5[%c0_10, %c17_11, %c0_12], %6 {strides = array<i32>} : memref<18x18x64xbf16, #tpu.memory_space<vmem>>, vector<18x1x64xbf16>,
    %c0_13 = arith.constant 0 : index
    %c0_14 = arith.constant 0 : index
    %c0_15 = arith.constant 0 : index
    %c0_16 = arith.constant 0 : index
    %8 = vector.load %arg1[%c0_13, %c0_14, %c0_15, %c0_16] : memref<1x16x16x64xbf16, #tpu.memory_space<vmem>>, vector<1x16x16x64xbf16>
    %9 = vector.shape_cast %8 : vector<1x16x16x64xbf16> to vector<16x16x64xbf16>
    %c1 = arith.constant 1 : index
    %c1_17 = arith.constant 1 : index
    %c0_18 = arith.constant 0 : index
    %10 = vector.load %arg5[%c1, %c1_17, %c0_18] : memref<18x18x64xbf16, #tpu.memory_space<vmem>>, vector<16x16x64xbf16>
    tpu.vector_store %arg5[%c1, %c1_17, %c0_18], %9 {strides = array<i32>} : memref<18x18x64xbf16, #tpu.memory_space<vmem>>, vector<16x16x64xbf16>,
    %c0_19 = arith.constant 0 : index
    %c0_20 = arith.constant 0 : index
    %c0_21 = arith.constant 0 : index
    %11 = vector.load %arg5[%c0_19, %c0_20, %c0_21] : memref<18x18x64xbf16, #tpu.memory_space<vmem>>, vector<16x18x64xbf16>
    %12 = vector.extract_strided_slice %11 {offsets = [0, 0, 0], sizes = [16, 16, 64], strides = [1, 1, 1]} : vector<16x18x64xbf16> to vector<16x16x64xbf16>
    %13 = vector.extract_strided_slice %11 {offsets = [0, 1, 0], sizes = [16, 16, 64], strides = [1, 1, 1]} : vector<16x18x64xbf16> to vector<16x16x64xbf16>
    %14 = vector.extract_strided_slice %11 {offsets = [0, 2, 0], sizes = [16, 16, 64], strides = [1, 1, 1]} : vector<16x18x64xbf16> to vector<16x16x64xbf16>
    %15 = tpu.concatenate %12, %13, %14 in 2 : vector<16x16x64xbf16>, vector<16x16x64xbf16>, vector<16x16x64xbf16> -> vector<16x16x192xbf16>
    %16 = vector.shape_cast %15 : vector<16x16x192xbf16> to vector<256x192xbf16>
    %c0_22 = arith.constant 0 : index
    %c0_23 = arith.constant 0 : index
    %c0_24 = arith.constant 0 : index
    %17 = vector.load %arg2[%c0_22, %c0_23, %c0_24] : memref<3x192x64xbf16, #tpu.memory_space<vmem>>, vector<1x192x64xbf16>
    %18 = vector.shape_cast %17 : vector<1x192x64xbf16> to vector<192x64xbf16>
    %cst_25 = arith.constant dense<0.000000e+00> : vector<256x64xf32>
    %19 = tpu.matmul %16, %18, %cst_25 {dimension_numbers = #tpu.dot_dimension_numbers<[1], [0], [0], [1], [0, 0, 1, 1], [], []>} : vector<256x192xbf16>, vector<192x64xbf16>, vector<256x64xf32> -> vector<256x64xf32>
    %c1_26 = arith.constant 1 : index
    %c0_27 = arith.constant 0 : index
    %c0_28 = arith.constant 0 : index
    %20 = vector.load %arg5[%c1_26, %c0_27, %c0_28] : memref<18x18x64xbf16, #tpu.memory_space<vmem>>, vector<16x18x64xbf16>
    %21 = vector.extract_strided_slice %20 {offsets = [0, 0, 0], sizes = [16, 16, 64], strides = [1, 1, 1]} : vector<16x18x64xbf16> to vector<16x16x64xbf16>
    %22 = vector.extract_strided_slice %20 {offsets = [0, 1, 0], sizes = [16, 16, 64], strides = [1, 1, 1]} : vector<16x18x64xbf16> to vector<16x16x64xbf16>
    %23 = vector.extract_strided_slice %20 {offsets = [0, 2, 0], sizes = [16, 16, 64], strides = [1, 1, 1]} : vector<16x18x64xbf16> to vector<16x16x64xbf16>
    %24 = tpu.concatenate %21, %22, %23 in 2 : vector<16x16x64xbf16>, vector<16x16x64xbf16>, vector<16x16x64xbf16> -> vector<16x16x192xbf16>
    %25 = vector.shape_cast %24 : vector<16x16x192xbf16> to vector<256x192xbf16>
    %c1_29 = arith.constant 1 : index
    %c0_30 = arith.constant 0 : index
    %c0_31 = arith.constant 0 : index
    %26 = vector.load %arg2[%c1_29, %c0_30, %c0_31] : memref<3x192x64xbf16, #tpu.memory_space<vmem>>, vector<1x192x64xbf16>
    %27 = vector.shape_cast %26 : vector<1x192x64xbf16> to vector<192x64xbf16>
    %cst_32 = arith.constant dense<0.000000e+00> : vector<256x64xf32>
    %28 = tpu.matmul %25, %27, %cst_32 {dimension_numbers = #tpu.dot_dimension_numbers<[1], [0], [0], [1], [0, 0, 1, 1], [], []>} : vector<256x192xbf16>, vector<192x64xbf16>, vector<256x64xf32> -> vector<256x64xf32>
    %29 = arith.addf %19, %28 : vector<256x64xf32>
    %c2 = arith.constant 2 : index
    %c0_33 = arith.constant 0 : index
    %c0_34 = arith.constant 0 : index
    %30 = vector.load %arg5[%c2, %c0_33, %c0_34] : memref<18x18x64xbf16, #tpu.memory_space<vmem>>, vector<16x18x64xbf16>
    %31 = vector.extract_strided_slice %30 {offsets = [0, 0, 0], sizes = [16, 16, 64], strides = [1, 1, 1]} : vector<16x18x64xbf16> to vector<16x16x64xbf16>
    %32 = vector.extract_strided_slice %30 {offsets = [0, 1, 0], sizes = [16, 16, 64], strides = [1, 1, 1]} : vector<16x18x64xbf16> to vector<16x16x64xbf16>
    %33 = vector.extract_strided_slice %30 {offsets = [0, 2, 0], sizes = [16, 16, 64], strides = [1, 1, 1]} : vector<16x18x64xbf16> to vector<16x16x64xbf16>
    %34 = tpu.concatenate %31, %32, %33 in 2 : vector<16x16x64xbf16>, vector<16x16x64xbf16>, vector<16x16x64xbf16> -> vector<16x16x192xbf16>
    %35 = vector.shape_cast %34 : vector<16x16x192xbf16> to vector<256x192xbf16>
    %c2_35 = arith.constant 2 : index
    %c0_36 = arith.constant 0 : index
    %c0_37 = arith.constant 0 : index
    %36 = vector.load %arg2[%c2_35, %c0_36, %c0_37] : memref<3x192x64xbf16, #tpu.memory_space<vmem>>, vector<1x192x64xbf16>
    %37 = vector.shape_cast %36 : vector<1x192x64xbf16> to vector<192x64xbf16>
    %cst_38 = arith.constant dense<0.000000e+00> : vector<256x64xf32>
    %38 = tpu.matmul %35, %37, %cst_38 {dimension_numbers = #tpu.dot_dimension_numbers<[1], [0], [0], [1], [0, 0, 1, 1], [], []>} : vector<256x192xbf16>, vector<192x64xbf16>, vector<256x64xf32> -> vector<256x64xf32>
    %39 = arith.addf %29, %38 : vector<256x64xf32>
    %c0_39 = arith.constant 0 : index
    %c0_40 = arith.constant 0 : index
    %40 = vector.load %arg3[%c0_39, %c0_40] : memref<1x64xf32, #tpu.memory_space<vmem>>, vector<1x64xf32>
    %41 = vector.broadcast %40 : vector<1x64xf32> to vector<256x64xf32>
    %42 = arith.addf %39, %41 : vector<256x64xf32>
    %cst_41 = arith.constant 0.000000e+00 : f32
    %43 = vector.broadcast %cst_41 : f32 to vector<256x64xf32>
    %44 = arith.maximumf %42, %43 : vector<256x64xf32>
    %45 = vector.shape_cast %44 : vector<256x64xf32> to vector<16x16x64xf32>
    %46 = vector.shape_cast %45 : vector<16x16x64xf32> to vector<8x2x8x2x64xf32>
    %cst_42 = arith.constant dense<0xFF800000> : vector<8x8x64xf32>
    %47 = vector.multi_reduction <maximumf>, %46, %cst_42 [1, 3] : vector<8x2x8x2x64xf32> to vector<8x8x64xf32>
    %48 = arith.truncf %47 : vector<8x8x64xf32> to vector<8x8x64xbf16>
    %c0_43 = arith.constant 0 : index
    %c0_44 = arith.constant 0 : index
    %c0_45 = arith.constant 0 : index
    %c0_46 = arith.constant 0 : index
    %49 = vector.load %arg4[%c0_43, %c0_44, %c0_45, %c0_46] : memref<1x8x8x64xbf16, #tpu.memory_space<vmem>>, vector<1x8x8x64xbf16>
    %50 = vector.shape_cast %49 : vector<1x8x8x64xbf16> to vector<8x8x64xbf16>
    %51 = vector.shape_cast %48 : vector<8x8x64xbf16> to vector<1x8x8x64xbf16>
    tpu.vector_store %arg4[%c0_43, %c0_44, %c0_45, %c0_46], %51 {strides = array<i32>} : memref<1x8x8x64xbf16, #tpu.memory_space<vmem>>, vector<1x8x8x64xbf16>,
    return
  }
  func.func @transform_0(%arg0: i32) -> (i32, i32, i32, i32) {
    %c0_i32 = arith.constant 0 : i32
    %c0_i32_0 = arith.constant 0 : i32
    %c0_i32_1 = arith.constant 0 : i32
    %c0_i32_2 = arith.constant 0 : i32
    return %arg0, %c0_i32, %c0_i32_0, %c0_i32_1 : i32, i32, i32, i32
  }
  func.func @transform_1(%arg0: i32) -> (i32, i32, i32) {
    %c0_i32 = arith.constant 0 : i32
    %c0_i32_0 = arith.constant 0 : i32
    %c0_i32_1 = arith.constant 0 : i32
    %c0_i32_2 = arith.constant 0 : i32
    return %c0_i32, %c0_i32_0, %c0_i32_1 : i32, i32, i32
  }
  func.func @transform_2(%arg0: i32) -> (i32, i32) {
    %c0_i32 = arith.constant 0 : i32
    %c0_i32_0 = arith.constant 0 : i32
    %c0_i32_1 = arith.constant 0 : i32
    return %c0_i32, %c0_i32_0 : i32, i32
  }
  func.func @transform_3(%arg0: i32) -> (i32, i32, i32, i32) {
    %c0_i32 = arith.constant 0 : i32
    %c0_i32_0 = arith.constant 0 : i32
    %c0_i32_1 = arith.constant 0 : i32
    %c0_i32_2 = arith.constant 0 : i32
    return %arg0, %c0_i32, %c0_i32_0, %c0_i32_1 : i32, i32, i32, i32
  }
}

module attributes {stable_mosaic.version = 11 : i64} {
  func.func @_conv_first_kernel(%arg0: i32, %arg1: memref<1x256x32xbf16, #tpu.memory_space<vmem>>, %arg2: memref<32x64xbf16, #tpu.memory_space<vmem>>, %arg3: memref<1x64xf32, #tpu.memory_space<vmem>>, %arg4: memref<1x16x16x64xbf16, #tpu.memory_space<vmem>>) attributes {dimension_semantics = [#tpu.dimension_semantics<parallel>], iteration_bounds = array<i64: 4>, scalar_prefetch = 0 : i64, scratch_operands = 0 : i64, tpu.core_type = #tpu.core_type<tc>, window_params = [{transform_indices = @transform_0, window_bounds = array<i64: 1, 256, 32>}, {pipeline_mode = #tpu.pipeline_mode<synchronous>, transform_indices = @transform_1, window_bounds = array<i64: 32, 64>}, {pipeline_mode = #tpu.pipeline_mode<synchronous>, transform_indices = @transform_2, window_bounds = array<i64: 1, 64>}, {transform_indices = @transform_3, window_bounds = array<i64: 1, 16, 16, 64>}]} {
    %c0 = arith.constant 0 : index
    %c0_0 = arith.constant 0 : index
    %c0_1 = arith.constant 0 : index
    %0 = vector.load %arg1[%c0, %c0_0, %c0_1] : memref<1x256x32xbf16, #tpu.memory_space<vmem>>, vector<1x256x32xbf16>
    %1 = vector.shape_cast %0 : vector<1x256x32xbf16> to vector<256x32xbf16>
    %c0_2 = arith.constant 0 : index
    %c0_3 = arith.constant 0 : index
    %2 = vector.load %arg2[%c0_2, %c0_3] : memref<32x64xbf16, #tpu.memory_space<vmem>>, vector<32x64xbf16>
    %cst = arith.constant dense<0.000000e+00> : vector<256x64xf32>
    %3 = tpu.matmul %1, %2, %cst {dimension_numbers = #tpu.dot_dimension_numbers<[1], [0], [0], [1], [0, 0, 1, 1], [], []>} : vector<256x32xbf16>, vector<32x64xbf16>, vector<256x64xf32> -> vector<256x64xf32>
    %c0_4 = arith.constant 0 : index
    %c0_5 = arith.constant 0 : index
    %4 = vector.load %arg3[%c0_4, %c0_5] : memref<1x64xf32, #tpu.memory_space<vmem>>, vector<1x64xf32>
    %5 = vector.broadcast %4 : vector<1x64xf32> to vector<256x64xf32>
    %6 = arith.addf %3, %5 : vector<256x64xf32>
    %cst_6 = arith.constant 0.000000e+00 : f32
    %7 = vector.broadcast %cst_6 : f32 to vector<256x64xf32>
    %8 = arith.maximumf %6, %7 : vector<256x64xf32>
    %9 = vector.shape_cast %8 : vector<256x64xf32> to vector<16x16x64xf32>
    %10 = arith.truncf %9 : vector<16x16x64xf32> to vector<16x16x64xbf16>
    %c0_7 = arith.constant 0 : index
    %c0_8 = arith.constant 0 : index
    %c0_9 = arith.constant 0 : index
    %c0_10 = arith.constant 0 : index
    %11 = vector.load %arg4[%c0_7, %c0_8, %c0_9, %c0_10] : memref<1x16x16x64xbf16, #tpu.memory_space<vmem>>, vector<1x16x16x64xbf16>
    %12 = vector.shape_cast %11 : vector<1x16x16x64xbf16> to vector<16x16x64xbf16>
    %13 = vector.shape_cast %10 : vector<16x16x64xbf16> to vector<1x16x16x64xbf16>
    tpu.vector_store %arg4[%c0_7, %c0_8, %c0_9, %c0_10], %13 {strides = array<i32>} : memref<1x16x16x64xbf16, #tpu.memory_space<vmem>>, vector<1x16x16x64xbf16>,
    return
  }
  func.func @transform_0(%arg0: i32) -> (i32, i32, i32) {
    %c0_i32 = arith.constant 0 : i32
    %c0_i32_0 = arith.constant 0 : i32
    %c0_i32_1 = arith.constant 0 : i32
    return %arg0, %c0_i32, %c0_i32_0 : i32, i32, i32
  }
  func.func @transform_1(%arg0: i32) -> (i32, i32) {
    %c0_i32 = arith.constant 0 : i32
    %c0_i32_0 = arith.constant 0 : i32
    %c0_i32_1 = arith.constant 0 : i32
    return %c0_i32, %c0_i32_0 : i32, i32
  }
  func.func @transform_2(%arg0: i32) -> (i32, i32) {
    %c0_i32 = arith.constant 0 : i32
    %c0_i32_0 = arith.constant 0 : i32
    %c0_i32_1 = arith.constant 0 : i32
    return %c0_i32, %c0_i32_0 : i32, i32
  }
  func.func @transform_3(%arg0: i32) -> (i32, i32, i32, i32) {
    %c0_i32 = arith.constant 0 : i32
    %c0_i32_0 = arith.constant 0 : i32
    %c0_i32_1 = arith.constant 0 : i32
    %c0_i32_2 = arith.constant 0 : i32
    return %arg0, %c0_i32, %c0_i32_0, %c0_i32_1 : i32, i32, i32, i32
  }
}

module attributes {stable_mosaic.version = 11 : i64} {
  func.func @_loss_kernel(%arg0: i32, %arg1: i32, %arg2: memref<1x8x8x64xbf16, #tpu.memory_space<vmem>>, %arg3: memref<1x8x8x64xbf16, #tpu.memory_space<vmem>>, %arg4: memref<1x1x1xf32, #tpu.memory_space<vmem>>, %arg5: memref<8x64xf32, #tpu.memory_space<vmem>>) attributes {dimension_semantics = [#tpu.dimension_semantics<parallel>, #tpu.dimension_semantics<arbitrary>], iteration_bounds = array<i64: 2, 1>, scalar_prefetch = 0 : i64, scratch_operands = 1 : i64, tpu.core_type = #tpu.core_type<tc>, window_params = [{transform_indices = @transform_0, window_bounds = array<i64: 1, 8, 8, 64>}, {transform_indices = @transform_1, window_bounds = array<i64: 1, 8, 8, 64>}, {transform_indices = @transform_2, window_bounds = array<i64: 1, 1, 1>}]} {
    %c0_i32 = arith.constant 0 : i32
    %0 = arith.cmpi eq, %arg1, %c0_i32 : i32
    %1 = arith.extui %0 : i1 to i32
    %c0_i32_0 = arith.constant 0 : i32
    %2 = arith.cmpi ne, %1, %c0_i32_0 : i32
    scf.if %2 {
      %cst = arith.constant 0.000000e+00 : f32
      %11 = vector.broadcast %cst : f32 to vector<8x64xf32>
      %c0 = arith.constant 0 : index
      %c0_4 = arith.constant 0 : index
      %12 = vector.load %arg5[%c0, %c0_4] : memref<8x64xf32, #tpu.memory_space<vmem>>, vector<8x64xf32>
      tpu.vector_store %arg5[%c0, %c0_4], %11 {strides = array<i32>} : memref<8x64xf32, #tpu.memory_space<vmem>>, vector<8x64xf32>,
    } else {
    }
    %c1_i32 = arith.constant 1 : i32
    %3 = arith.muli %arg0, %c1_i32 : i32
    %4 = arith.addi %3, %arg1 : i32
    %c2_i32 = arith.constant 2 : i32
    %5 = arith.cmpi slt, %4, %c2_i32 : i32
    %6 = arith.extui %5 : i1 to i32
    %c0_i32_1 = arith.constant 0 : i32
    %7 = arith.cmpi ne, %6, %c0_i32_1 : i32
    scf.if %7 {
      %c0 = arith.constant 0 : index
      %c0_4 = arith.constant 0 : index
      %c0_5 = arith.constant 0 : index
      %c0_6 = arith.constant 0 : index
      %11 = vector.load %arg2[%c0, %c0_4, %c0_5, %c0_6] : memref<1x8x8x64xbf16, #tpu.memory_space<vmem>>, vector<1x8x8x64xbf16>
      %12 = vector.shape_cast %11 : vector<1x8x8x64xbf16> to vector<8x8x64xbf16>
      %13 = arith.extf %12 : vector<8x8x64xbf16> to vector<8x8x64xf32>
      %c0_7 = arith.constant 0 : index
      %c0_8 = arith.constant 0 : index
      %c0_9 = arith.constant 0 : index
      %c0_10 = arith.constant 0 : index
      %14 = vector.load %arg3[%c0_7, %c0_8, %c0_9, %c0_10] : memref<1x8x8x64xbf16, #tpu.memory_space<vmem>>, vector<1x8x8x64xbf16>
      %15 = vector.shape_cast %14 : vector<1x8x8x64xbf16> to vector<8x8x64xbf16>
      %16 = arith.extf %15 : vector<8x8x64xbf16> to vector<8x8x64xf32>
      %17 = arith.subf %13, %16 : vector<8x8x64xf32>
      %18 = arith.mulf %17, %17 : vector<8x8x64xf32>
      %c0_11 = arith.constant 0 : index
      %c0_12 = arith.constant 0 : index
      %19 = vector.load %arg5[%c0_11, %c0_12] : memref<8x64xf32, #tpu.memory_space<vmem>>, vector<8x64xf32>
      %cst = arith.constant dense<0.000000e+00> : vector<8x64xf32>
      %20 = vector.multi_reduction <add>, %18, %cst [0] : vector<8x8x64xf32> to vector<8x64xf32>
      %21 = arith.addf %19, %20 : vector<8x64xf32>
      %c0_13 = arith.constant 0 : index
      %c0_14 = arith.constant 0 : index
      %22 = vector.load %arg5[%c0_13, %c0_14] : memref<8x64xf32, #tpu.memory_space<vmem>>, vector<8x64xf32>
      tpu.vector_store %arg5[%c0_13, %c0_14], %21 {strides = array<i32>} : memref<8x64xf32, #tpu.memory_space<vmem>>, vector<8x64xf32>,
    } else {
    }
    %c0_i32_2 = arith.constant 0 : i32
    %8 = arith.cmpi eq, %arg1, %c0_i32_2 : i32
    %9 = arith.extui %8 : i1 to i32
    %c0_i32_3 = arith.constant 0 : i32
    %10 = arith.cmpi ne, %9, %c0_i32_3 : i32
    scf.if %10 {
      %c0 = arith.constant 0 : index
      %c0_4 = arith.constant 0 : index
      %11 = vector.load %arg5[%c0, %c0_4] : memref<8x64xf32, #tpu.memory_space<vmem>>, vector<8x64xf32>
      %12 = vector.shape_cast %11 : vector<8x64xf32> to vector<1x8x64xf32>
      %cst = arith.constant dense<0.000000e+00> : vector<1xf32>
      %13 = vector.multi_reduction <add>, %12, %cst [1, 2] : vector<1x8x64xf32> to vector<1xf32>
      %14 = vector.shape_cast %13 : vector<1xf32> to vector<1x1x1xf32>
      %15 = vector.extract %14[0, 0, 0] : f32 from vector<1x1x1xf32>
      %16 = vector.broadcast %15 : f32 to vector<1x1xf32>
      %c0_5 = arith.constant 0 : index
      %c0_6 = arith.constant 0 : index
      %c0_7 = arith.constant 0 : index
      %17 = vector.load %arg4[%c0_5, %c0_6, %c0_7] : memref<1x1x1xf32, #tpu.memory_space<vmem>>, vector<1x1x1xf32>
      %18 = vector.shape_cast %17 : vector<1x1x1xf32> to vector<1x1xf32>
      %19 = vector.shape_cast %16 : vector<1x1xf32> to vector<1x1x1xf32>
      tpu.vector_store %arg4[%c0_5, %c0_6, %c0_7], %19 {strides = array<i32>} : memref<1x1x1xf32, #tpu.memory_space<vmem>>, vector<1x1x1xf32>,
    } else {
    }
    return
  }
  func.func @transform_0(%arg0: i32, %arg1: i32) -> (i32, i32, i32, i32) {
    %c1_i32 = arith.constant 1 : i32
    %0 = arith.muli %arg0, %c1_i32 : i32
    %1 = arith.addi %0, %arg1 : i32
    %c1_i32_0 = arith.constant 1 : i32
    %2 = arith.minsi %1, %c1_i32_0 : i32
    %c0_i32 = arith.constant 0 : i32
    %c0_i32_1 = arith.constant 0 : i32
    %c0_i32_2 = arith.constant 0 : i32
    %c0_i32_3 = arith.constant 0 : i32
    return %2, %c0_i32, %c0_i32_1, %c0_i32_2 : i32, i32, i32, i32
  }
  func.func @transform_1(%arg0: i32, %arg1: i32) -> (i32, i32, i32, i32) {
    %c1_i32 = arith.constant 1 : i32
    %0 = arith.muli %arg0, %c1_i32 : i32
    %1 = arith.addi %0, %arg1 : i32
    %c1_i32_0 = arith.constant 1 : i32
    %2 = arith.minsi %1, %c1_i32_0 : i32
    %c2_i32 = arith.constant 2 : i32
    %3 = arith.addi %2, %c2_i32 : i32
    %c0_i32 = arith.constant 0 : i32
    %c0_i32_1 = arith.constant 0 : i32
    %c0_i32_2 = arith.constant 0 : i32
    %c0_i32_3 = arith.constant 0 : i32
    return %3, %c0_i32, %c0_i32_1, %c0_i32_2 : i32, i32, i32, i32
  }
  func.func @transform_2(%arg0: i32, %arg1: i32) -> (i32, i32, i32) {
    %c0_i32 = arith.constant 0 : i32
    %c0_i32_0 = arith.constant 0 : i32
    %c0_i32_1 = arith.constant 0 : i32
    return %arg0, %c0_i32, %c0_i32_0 : i32, i32, i32
  }
}

</mosaic_0001>

<llo_original>
// kernel: vgg_loss.3
$region0: #{vgg_loss.3}
  #allocation0 [shape = 'u32[]', space=smem, size = 0x4, offset = 0x4, fixed_abs, tag = 'smem constant byte address 0x4 - core index']
  #allocation1 [shape = 'u32[144,128]{1,0:T(1,128)}', space=vmem, size = 0x12000, scoped, tag = 'internal scratch']
  %s0 = inlined_call_operand.vmem [shape: bf16[4,256,32], index: 0, kind: input, shape index: {}]
  %s1 = inlined_call_operand.vmem [shape: bf16[32,64], index: 1, kind: input, shape index: {}]
  %s2 = inlined_call_operand.vmem [shape: f32[1,64], index: 2, kind: input, shape index: {}]
  %s3 = inlined_call_operand.vmem [shape: bf16[4,16,16,64], index: 3, kind: output, shape index: {}]
  %s4 = sld [smem:[#allocation0]]
  $region45: #{vgg_loss.3} parent=0
    _
  %s6 = ssub.s32 1, %s4
  %s7 = scalar_select 0, %s6, %s4
  loop: start=0, step=1, limit=6
  $region2: #{vgg_loss.3} parent=0 // loop_pre_header
    _
  $region3: #{vgg_loss.3} parent=0 // loop_header
    %s9 = sphi 0, %s13
    %p10 = scmp.ge.s32.totalorder %s9, 6
    %s19 = sphi 0, %s21
    %s22 = sphi 0, %s19
    %s23 = sphi 0, %s22
    %s39 = sphi 0, %s23
    %s43 = sphi 0, %s43
    %s45 = sphi 0, %s43
    %s46 = sphi 0, %s45
    %s60 = sphi 0, %s46
    %s64 = sphi 0, %s64
    %s66 = sphi 0, %s64
    %s67 = sphi 0, %s66
    %s81 = sphi 0, %s67
    %s87 = sphi 0, %s89
    %s90 = sphi 0, %s87
    %s91 = sphi 0, %s90
    %s107 = sphi 0, %s91
  $region4: #{vgg_loss.3} parent=0 // loop_header_branch
    %12 = sbr.rel (%p10) target = $region8
  $region5: #{vgg_loss.3} parent=0 // loop_body
    %s14 = ssub.s32 %s9, 1
    %s15 = ssub.s32 %s9, 2
    %s16 = sadd.s32 %s9, 1
    %s17 = ssub.s32 %s9, %s16
    %p18 = scmp.eq.s32.totalorder %s17, 0
    %s20 = sadd.s32 %s19, 1
    %s21 = scalar_select %p18, %s19, %s20
    %p24 = pneg %p18
    %p25 = scmp.eq.s32.totalorder %s9, 3
    %p26 = por %p24, %p25
    %p27 = scmp.ne.s32.totalorder %s19, %s22
    %p28 = scmp.eq.s32.totalorder %s9, 0
    %p29 = por %p27, %p28
    %p30 = scmp.ne.s32.totalorder %s19, %s22
    %p31 = scmp.eq.s32.totalorder %s14, 3
    %p32 = por %p30, %p31
    %p33 = scmp.ne.s32.totalorder %s22, %s23
    %p34 = scmp.eq.s32.totalorder %s14, 0
    %p35 = por %p33, %p34
    %p36 = scmp.ne.s32.totalorder %s22, %s23
    %p37 = scmp.eq.s32.totalorder %s15, 3
    %p38 = por %p36, %p37
    %p40 = scmp.ne.s32.totalorder %s23, %s39
    %p41 = scmp.eq.s32.totalorder %s15, 0
    %p42 = por %p40, %p41
    %s44 = sadd.s32 %s43, 1
    %p47 = scmp.eq.s32.totalorder %s9, 3
    %p48 = scmp.ne.s32.totalorder %s43, %s45
    %p49 = scmp.eq.s32.totalorder %s9, 0
    %p50 = por %p48, %p49
    %p51 = scmp.ne.s32.totalorder %s43, %s45
    %p52 = scmp.eq.s32.totalorder %s14, 3
    %p53 = por %p51, %p52
    %p54 = scmp.ne.s32.totalorder %s45, %s46
    %p55 = scmp.eq.s32.totalorder %s14, 0
    %p56 = por %p54, %p55
    %p57 = scmp.ne.s32.totalorder %s45, %s46
    %p58 = scmp.eq.s32.totalorder %s15, 3
    %p59 = por %p57, %p58
    %p61 = scmp.ne.s32.totalorder %s46, %s60
    %p62 = scmp.eq.s32.totalorder %s15, 0
    %p63 = por %p61, %p62
    %s65 = sadd.s32 %s64, 1
    %p68 = scmp.eq.s32.totalorder %s9, 3
    %p69 = scmp.ne.s32.totalorder %s64, %s66
    %p70 = scmp.eq.s32.totalorder %s9, 0
    %p71 = por %p69, %p70
    %p72 = scmp.ne.s32.totalorder %s64, %s66
    %p73 = scmp.eq.s32.totalorder %s14, 3
    %p74 = por %p72, %p73
    %p75 = scmp.ne.s32.totalorder %s66, %s67
    %p76 = scmp.eq.s32.totalorder %s14, 0
    %p77 = por %p75, %p76
    %p78 = scmp.ne.s32.totalorder %s66, %s67
    %p79 = scmp.eq.s32.totalorder %s15, 3
    %p80 = por %p78, %p79
    %p82 = scmp.ne.s32.totalorder %s67, %s81
    %p83 = scmp.eq.s32.totalorder %s15, 0
    %p84 = por %p82, %p83
    %s85 = ssub.s32 %s9, %s16
    %p86 = scmp.eq.s32.totalorder %s85, 0
    %s88 = sadd.s32 %s87, 1
    %s89 = scalar_select %p86, %s87, %s88
    %p92 = pneg %p86
    %p93 = scmp.eq.s32.totalorder %s9, 3
    %p94 = por %p92, %p93
    %p95 = scmp.ne.s32.totalorder %s87, %s90
    %p96 = scmp.eq.s32.totalorder %s9, 0
    %p97 = por %p95, %p96
    %p98 = scmp.ne.s32.totalorder %s87, %s90
    %p99 = scmp.eq.s32.totalorder %s14, 3
    %p100 = por %p98, %p99
    %p101 = scmp.ne.s32.totalorder %s90, %s91
    %p102 = scmp.eq.s32.totalorder %s14, 0
    %p103 = por %p101, %p102
    %p104 = scmp.ne.s32.totalorder %s90, %s91
    %p105 = scmp.eq.s32.totalorder %s15, 3
    %p106 = por %p104, %p105
    %p108 = scmp.ne.s32.totalorder %s91, %s107
    %p109 = scmp.eq.s32.totalorder %s15, 0
    %p110 = por %p108, %p109
    %p111 = scmp.le.s32.totalorder 1, %s9
    %p112 = scmp.lt.s32.totalorder %s9, 5
    %p113 = pnand %p111, %p112
    %p114 = pneg %p113
    // Predicated region
    $region9: #{vgg_loss.3} parent=5 // pred_check
      _
    $region10: #{vgg_loss.3} parent=5 // pred_check_branch
      %116 = sbr.rel (%p113) target = $region12
    $region11: #{vgg_loss.3} parent=5 // pred_region
      %s117 = ssub.s32 %s9, 1
      // Predicated region
      $region13: #{vgg_loss.3} parent=11 // pred_check
        %p118 = pneg %p56
      $region14: #{vgg_loss.3} parent=11 // pred_check_branch
        %120 = sbr.rel (%p118) target = $region16
      $region15: #{vgg_loss.3} parent=11 // pred_region
        _
      $region16: #{vgg_loss.3} parent=11 // pred_fallthru
        _
      // Predicated region
      $region17: #{vgg_loss.3} parent=11 // pred_check
        %p121 = pneg %p77
      $region18: #{vgg_loss.3} parent=11 // pred_check_branch
        %123 = sbr.rel (%p121) target = $region20
      $region19: #{vgg_loss.3} parent=11 // pred_region
        _
      $region20: #{vgg_loss.3} parent=11 // pred_fallthru
        _
    $region12: #{vgg_loss.3} parent=5 // pred_fallthru
      _
    %p124 = scmp.lt.s32.totalorder %s9, 4
    // Predicated region
    $region21: #{vgg_loss.3} parent=5 // pred_check
      %p125 = pneg %p124
    $region22: #{vgg_loss.3} parent=5 // pred_check_branch
      %127 = sbr.rel (%p125) target = $region24
    $region23: #{vgg_loss.3} parent=5 // pred_region
      // Predicated region
      $region25: #{vgg_loss.3} parent=23 // pred_check
        %p128 = pneg %p29
      $region26: #{vgg_loss.3} parent=23 // pred_check_branch
        %130 = sbr.rel (%p128) target = $region28
      $region27: #{vgg_loss.3} parent=23 // pred_region
        %p131 = scmp.lt.s32.totalorder %s9, 3
        %s132 = scalar_select %p131, %s9, 3
        %s133 = smul.addr %s132, 32
        %s134 = smul.addr %s133, 4
        %s135 = scalar_lea.vmem %s0, %s134
      $region28: #{vgg_loss.3} parent=23 // pred_fallthru
        _
    $region24: #{vgg_loss.3} parent=5 // pred_fallthru
      _
    %p136 = scmp.le.s32.totalorder 1, %s9
    %p137 = scmp.lt.s32.totalorder %s9, 5
    %p138 = pnand %p136, %p137
    %p139 = pneg %p138
    // Predicated region
    $region29: #{vgg_loss.3} parent=5 // pred_check
      _
    $region30: #{vgg_loss.3} parent=5 // pred_check_branch
      %141 = sbr.rel (%p138) target = $region32
    $region31: #{vgg_loss.3} parent=5 // pred_region
      %s142 = ssub.s32 %s9, 1
      %p143 = scmp.lt.s32.totalorder %s14, 3
      %s144 = scalar_select %p143, %s14, 3
      %s145 = smul.addr %s144, 32
      %s146 = smul.addr %s145, 4
      %s147 = scalar_lea.vmem %s0, %s146
      %p148 = pneg %p35
      %p149 = pneg %p32
      %p150 = pneg %p56
      %p151 = pneg %p53
      %p152 = pneg %p77
      %p153 = pneg %p74
      %p154 = pneg %p103
      %p155 = pneg %p100
      %p156 = scmp.lt.s32.totalorder %s14, 3
      %s157 = scalar_select %p156, %s14, 3
      %s158 = smul.addr %s157, 32
      %s159 = smul.addr %s158, 4
      %s160 = scalar_lea.vmem %s3, %s159
      %p161 = scmp.lt.s32.totalorder %s14, 3
      %s162 = scalar_select %p161, %s14, 3
      %s163 = smul.addr %s162, 32
      %s164 = smul.addr %s163, 4
      %s165 = scalar_lea.vmem %s0, %s164
      %p166 = scmp.lt.s32.totalorder %s14, 3
      %s167 = scalar_select %p166, %s14, 3
      %s168 = smul.addr %s167, 32
      %s169 = smul.addr %s168, 4
      %s170 = scalar_lea.vmem %s3, %s169
      %v172 = vld [vmem:[%s165] sm:$0xf]
      %v173 = vld [vmem:[%s165 + $0x4] sm:$0xf]
      %v174 = vld [vmem:[%s165 + $0x8] sm:$0xf]
      %v175 = vld [vmem:[%s165 + $0xc] sm:$0xf]
      %v176 = vld [vmem:[%s165 + $0x10] sm:$0xf]
      %v177 = vld [vmem:[%s165 + $0x14] sm:$0xf]
      %v178 = vld [vmem:[%s165 + $0x18] sm:$0xf]
      %v179 = vld [vmem:[%s165 + $0x1c] sm:$0xf]
      %v180 = vld [vmem:[%s165 + $0x20] sm:$0xf]
      %v181 = vld [vmem:[%s165 + $0x24] sm:$0xf]
      %v182 = vld [vmem:[%s165 + $0x28] sm:$0xf]
      %v183 = vld [vmem:[%s165 + $0x2c] sm:$0xf]
      %v184 = vld [vmem:[%s165 + $0x30] sm:$0xf]
      %v185 = vld [vmem:[%s165 + $0x34] sm:$0xf]
      %v186 = vld [vmem:[%s165 + $0x38] sm:$0xf]
      %v187 = vld [vmem:[%s165 + $0x3c] sm:$0xf]
      %v188 = vld [vmem:[%s165 + $0x40] sm:$0xf]
      %v189 = vld [vmem:[%s165 + $0x44] sm:$0xf]
      %v190 = vld [vmem:[%s165 + $0x48] sm:$0xf]
      %v191 = vld [vmem:[%s165 + $0x4c] sm:$0xf]
      %v192 = vld [vmem:[%s165 + $0x50] sm:$0xf]
      %v193 = vld [vmem:[%s165 + $0x54] sm:$0xf]
      %v194 = vld [vmem:[%s165 + $0x58] sm:$0xf]
      %v195 = vld [vmem:[%s165 + $0x5c] sm:$0xf]
      %v196 = vld [vmem:[%s165 + $0x60] sm:$0xf]
      %v197 = vld [vmem:[%s165 + $0x64] sm:$0xf]
      %v198 = vld [vmem:[%s165 + $0x68] sm:$0xf]
      %v199 = vld [vmem:[%s165 + $0x6c] sm:$0xf]
      %v200 = vld [vmem:[%s165 + $0x70] sm:$0xf]
      %v201 = vld [vmem:[%s165 + $0x74] sm:$0xf]
      %v202 = vld [vmem:[%s165 + $0x78] sm:$0xf]
      %v203 = vld [vmem:[%s165 + $0x7c] sm:$0xf]
      %v204 = vld [vmem:[%s1] sm:$0xf]
      %v205 = vld [vmem:[%s1 + $0x4] sm:$0xf]
      %v206 = vld [vmem:[%s1 + $0x8] sm:$0xf]
      %v207 = vld [vmem:[%s1 + $0xc] sm:$0xf]
      %v208 = vld [vmem:[%s2] sm:$0x1]
      %v210 = vlaneseq
      %v211 = vshrl.u32 %v210, 7
      %v212 = vsub.s32 0, %v211
      %v213 = vrot.slane %v208, %v212
      %v247 = vunpack.c.l.b16 %v172
      %v248 = vunpack.c.l.b16 %v173
      %v249 = vunpack.c.l.b16 %v174
      %v250 = vunpack.c.l.b16 %v175
      %v251 = vunpack.c.l.b16 %v176
      %v252 = vunpack.c.l.b16 %v177
      %v253 = vunpack.c.l.b16 %v178
      %v254 = vunpack.c.l.b16 %v179
      %v255 = vunpack.c.l.b16 %v180
      %v256 = vunpack.c.l.b16 %v181
      %v257 = vunpack.c.l.b16 %v182
      %v258 = vunpack.c.l.b16 %v183
      %v259 = vunpack.c.l.b16 %v184
      %v260 = vunpack.c.l.b16 %v185
      %v261 = vunpack.c.l.b16 %v186
      %v262 = vunpack.c.l.b16 %v187
      %v263 = vunpack.c.l.b16 %v188
      %v264 = vunpack.c.l.b16 %v189
      %v265 = vunpack.c.l.b16 %v190
      %v266 = vunpack.c.l.b16 %v191
      %v267 = vunpack.c.l.b16 %v192
      %v268 = vunpack.c.l.b16 %v193
      %v269 = vunpack.c.l.b16 %v194
      %v270 = vunpack.c.l.b16 %v195
      %v271 = vunpack.c.l.b16 %v196
      %v272 = vunpack.c.l.b16 %v197
      %v273 = vunpack.c.l.b16 %v198
      %v274 = vunpack.c.l.b16 %v199
      %v275 = vunpack.c.l.b16 %v200
      %v276 = vunpack.c.l.b16 %v201
      %v277 = vunpack.c.l.b16 %v202
      %v278 = vunpack.c.l.b16 %v203
      %v279 = vpack.c.b16 %v248, %v247
      %v280 = vpack.c.b16 %v250, %v249
      %v281 = vpack.c.b16 %v252, %v251
      %v282 = vpack.c.b16 %v254, %v253
      %v283 = vpack.c.b16 %v256, %v255
      %v284 = vpack.c.b16 %v258, %v257
      %v285 = vpack.c.b16 %v260, %v259
      %v286 = vpack.c.b16 %v262, %v261
      %v287 = vpack.c.b16 %v264, %v263
      %v288 = vpack.c.b16 %v266, %v265
      %v289 = vpack.c.b16 %v268, %v267
      %v290 = vpack.c.b16 %v270, %v269
      %v291 = vpack.c.b16 %v272, %v271
      %v292 = vpack.c.b16 %v274, %v273
      %v293 = vpack.c.b16 %v276, %v275
      %v294 = vpack.c.b16 %v278, %v277
      %v299 = vunpack.c.l.b16 %v204
      %v300 = vunpack.c.l.b16 %v205
      %v301 = vunpack.c.l.b16 %v206
      %v302 = vunpack.c.l.b16 %v207
      %v303 = vpack.c.b16 %v300, %v299
      %v304 = vpack.c.b16 %v302, %v301
      %vm307 = vcmask 261120
      %v309 = vsel %vm307, %v279, 0
      %v312 = vsel %vm307, %v280, 0
      %v315 = vsel %vm307, %v281, 0
      %v318 = vsel %vm307, %v282, 0
      %v321 = vsel %vm307, %v283, 0
      %v324 = vsel %vm307, %v284, 0
      %v327 = vsel %vm307, %v285, 0
      %v330 = vsel %vm307, %v286, 0
      %v333 = vsel %vm307, %v287, 0
      %v336 = vsel %vm307, %v288, 0
      %v339 = vsel %vm307, %v289, 0
      %v342 = vsel %vm307, %v290, 0
      %v345 = vsel %vm307, %v291, 0
      %v348 = vsel %vm307, %v292, 0
      %v351 = vsel %vm307, %v293, 0
      %v354 = vsel %vm307, %v294, 0
      %356 = vmatprep.subr.bf16.mxu0 0
      %357 = vmatpush1.bf16.msra.mxu0 %v303
      %358 = vmatprep.subr.bf16.mxu0 0
      %359 = vmatpush1.bf16.msra.mxu0 %v304
      %360 = vmatprep.subr.bf16.mxu0 0
      %361 = vmatpush1.bf16.msra.mxu0 0
      %362 = vmatprep.subr.bf16.mxu0 0
      %363 = vmatpush1.bf16.msra.mxu0 0
      %364 = vmatprep.subr.bf16.mxu0 0
      %365 = vmatpush1.bf16.msra.mxu0 0
      %366 = vmatprep.subr.bf16.mxu0 0
      %367 = vmatpush1.bf16.msra.mxu0 0
      %368 = vmatprep.subr.bf16.mxu0 0
      %369 = vmatpush1.bf16.msra.mxu0 0
      %370 = vmatprep.subr.bf16.mxu0 0
      %371 = vmatpush1.bf16.msra.mxu0 0
      %372 = vmatprep.subr.bf16.mxu0 0
      %373 = vmatpush1.bf16.msra.mxu0 0
      %374 = vmatprep.subr.bf16.mxu0 0
      %375 = vmatpush1.bf16.msra.mxu0 0
      %376 = vmatprep.subr.bf16.mxu0 0
      %377 = vmatpush1.bf16.msra.mxu0 0
      %378 = vmatprep.subr.bf16.mxu0 0
      %379 = vmatpush1.bf16.msra.mxu0 0
      %380 = vmatprep.subr.bf16.mxu0 0
      %381 = vmatpush1.bf16.msra.mxu0 0
      %382 = vmatprep.subr.bf16.mxu0 0
      %383 = vmatpush1.bf16.msra.mxu0 0
      %384 = vmatprep.subr.bf16.mxu0 0
      %385 = vmatpush1.bf16.msra.mxu0 0
      %386 = vmatprep.subr.bf16.mxu0 0
      %387 = vmatpush1.bf16.msra.mxu0 0
      %388 = vmatprep.mubr.bf16.mxu0 0
      %389 = vmatmul.mubr.bf16.gmra.mrb[0].mxu0 %v309
      %v390 = vpop.f32.mrb[0].mxu0
      %v391 = vadd.f32 %v213, %v390
      %v392 = vpop.f32.mrb[0].mxu0
      %v393 = vpop.f32.mrb[0].mxu0
      %v394 = vadd.f32 %v213, %v393
      %v395 = vpop.f32.mrb[0].mxu0
      %396 = vmatprep.mubr.bf16.mxu0 0
      %397 = vmatmul.mubr.bf16.gmra.mrb[0].mxu0 %v312
      %v398 = vpop.f32.mrb[0].mxu0
      %v399 = vadd.f32 %v213, %v398
      %v400 = vpop.f32.mrb[0].mxu0
      %v401 = vpop.f32.mrb[0].mxu0
      %v402 = vadd.f32 %v213, %v401
      %v403 = vpop.f32.mrb[0].mxu0
      %404 = vmatprep.mubr.bf16.mxu0 0
      %405 = vmatmul.mubr.bf16.gmra.mrb[0].mxu0 %v315
      %v406 = vpop.f32.mrb[0].mxu0
      %v407 = vadd.f32 %v213, %v406
      %v408 = vpop.f32.mrb[0].mxu0
      %v409 = vpop.f32.mrb[0].mxu0
      %v410 = vadd.f32 %v213, %v409
      %v411 = vpop.f32.mrb[0].mxu0
      %412 = vmatprep.mubr.bf16.mxu0 0
      %413 = vmatmul.mubr.bf16.gmra.mrb[0].mxu0 %v318
      %v414 = vpop.f32.mrb[0].mxu0
      %v415 = vadd.f32 %v213, %v414
      %v416 = vpop.f32.mrb[0].mxu0
      %v417 = vpop.f32.mrb[0].mxu0
      %v418 = vadd.f32 %v213, %v417
      %v419 = vpop.f32.mrb[0].mxu0
      %420 = vmatprep.mubr.bf16.mxu0 0
      %421 = vmatmul.mubr.bf16.gmra.mrb[0].mxu0 %v321
      %v422 = vpop.f32.mrb[0].mxu0
      %v423 = vadd.f32 %v213, %v422
      %v424 = vpop.f32.mrb[0].mxu0
      %v425 = vpop.f32.mrb[0].mxu0
      %v426 = vadd.f32 %v213, %v425
      %v427 = vpop.f32.mrb[0].mxu0
      %428 = vmatprep.mubr.bf16.mxu0 0
      %429 = vmatmul.mubr.bf16.gmra.mrb[0].mxu0 %v324
      %v430 = vpop.f32.mrb[0].mxu0
      %v431 = vadd.f32 %v213, %v430
      %v432 = vpop.f32.mrb[0].mxu0
      %v433 = vpop.f32.mrb[0].mxu0
      %v434 = vadd.f32 %v213, %v433
      %v435 = vpop.f32.mrb[0].mxu0
      %436 = vmatprep.mubr.bf16.mxu0 0
      %437 = vmatmul.mubr.bf16.gmra.mrb[0].mxu0 %v327
      %v438 = vpop.f32.mrb[0].mxu0
      %v439 = vadd.f32 %v213, %v438
      %v440 = vpop.f32.mrb[0].mxu0
      %v441 = vpop.f32.mrb[0].mxu0
      %v442 = vadd.f32 %v213, %v441
      %v443 = vpop.f32.mrb[0].mxu0
      %444 = vmatprep.mubr.bf16.mxu0 0
      %445 = vmatmul.mubr.bf16.gmra.mrb[0].mxu0 %v330
      %v446 = vpop.f32.mrb[0].mxu0
      %v447 = vadd.f32 %v213, %v446
      %v448 = vpop.f32.mrb[0].mxu0
      %v449 = vpop.f32.mrb[0].mxu0
      %v450 = vadd.f32 %v213, %v449
      %v451 = vpop.f32.mrb[0].mxu0
      %452 = vmatprep.mubr.bf16.mxu0 0
      %453 = vmatmul.mubr.bf16.gmra.mrb[0].mxu0 %v333
      %v454 = vpop.f32.mrb[0].mxu0
      %v455 = vadd.f32 %v213, %v454
      %v456 = vpop.f32.mrb[0].mxu0
      %v457 = vpop.f32.mrb[0].mxu0
      %v458 = vadd.f32 %v213, %v457
      %v459 = vpop.f32.mrb[0].mxu0
      %460 = vmatprep.mubr.bf16.mxu0 0
      %461 = vmatmul.mubr.bf16.gmra.mrb[0].mxu0 %v336
      %v462 = vpop.f32.mrb[0].mxu0
      %v463 = vadd.f32 %v213, %v462
      %v464 = vpop.f32.mrb[0].mxu0
      %v465 = vpop.f32.mrb[0].mxu0
      %v466 = vadd.f32 %v213, %v465
      %v467 = vpop.f32.mrb[0].mxu0
      %468 = vmatprep.mubr.bf16.mxu0 0
      %469 = vmatmul.mubr.bf16.gmra.mrb[0].mxu0 %v339
      %v470 = vpop.f32.mrb[0].mxu0
      %v471 = vadd.f32 %v213, %v470
      %v472 = vpop.f32.mrb[0].mxu0
      %v473 = vpop.f32.mrb[0].mxu0
      %v474 = vadd.f32 %v213, %v473
      %v475 = vpop.f32.mrb[0].mxu0
      %476 = vmatprep.mubr.bf16.mxu0 0
      %477 = vmatmul.mubr.bf16.gmra.mrb[0].mxu0 %v342
      %v478 = vpop.f32.mrb[0].mxu0
      %v479 = vadd.f32 %v213, %v478
      %v480 = vpop.f32.mrb[0].mxu0
      %v481 = vpop.f32.mrb[0].mxu0
      %v482 = vadd.f32 %v213, %v481
      %v483 = vpop.f32.mrb[0].mxu0
      %484 = vmatprep.mubr.bf16.mxu0 0
      %485 = vmatmul.mubr.bf16.gmra.mrb[0].mxu0 %v345
      %v486 = vpop.f32.mrb[0].mxu0
      %v487 = vadd.f32 %v213, %v486
      %v488 = vpop.f32.mrb[0].mxu0
      %v489 = vpop.f32.mrb[0].mxu0
      %v490 = vadd.f32 %v213, %v489
      %v491 = vpop.f32.mrb[0].mxu0
      %492 = vmatprep.mubr.bf16.mxu0 0
      %493 = vmatmul.mubr.bf16.gmra.mrb[0].mxu0 %v348
      %v494 = vpop.f32.mrb[0].mxu0
      %v495 = vadd.f32 %v213, %v494
      %v496 = vpop.f32.mrb[0].mxu0
      %v497 = vpop.f32.mrb[0].mxu0
      %v498 = vadd.f32 %v213, %v497
      %v499 = vpop.f32.mrb[0].mxu0
      %500 = vmatprep.mubr.bf16.mxu0 0
      %501 = vmatmul.mubr.bf16.gmra.mrb[0].mxu0 %v351
      %v502 = vpop.f32.mrb[0].mxu0
      %v503 = vadd.f32 %v213, %v502
      %v504 = vpop.f32.mrb[0].mxu0
      %v505 = vpop.f32.mrb[0].mxu0
      %v506 = vadd.f32 %v213, %v505
      %v507 = vpop.f32.mrb[0].mxu0
      %508 = vmatprep.mubr.bf16.mxu0 0
      %509 = vmatmul.mubr.bf16.gmra.mrb[0].mxu0 %v354
      %v510 = vpop.f32.mrb[0].mxu0
      %v511 = vadd.f32 %v213, %v510
      %v512 = vpop.f32.mrb[0].mxu0
      %v513 = vpop.f32.mrb[0].mxu0
      %v514 = vadd.f32 %v213, %v513
      %v515 = vpop.f32.mrb[0].mxu0
      %516 = vdwg.mxu0
      %v517 = vmax.f32 %v391, 0.0
      %v518 = vmax.f32 %v394, 0.0
      %v519 = vmax.f32 %v399, 0.0
      %v520 = vmax.f32 %v402, 0.0
      %v521 = vmax.f32 %v407, 0.0
      %v522 = vmax.f32 %v410, 0.0
      %v523 = vmax.f32 %v415, 0.0
      %v524 = vmax.f32 %v418, 0.0
      %v525 = vmax.f32 %v423, 0.0
      %v526 = vmax.f32 %v426, 0.0
      %v527 = vmax.f32 %v431, 0.0
      %v528 = vmax.f32 %v434, 0.0
      %v529 = vmax.f32 %v439, 0.0
      %v530 = vmax.f32 %v442, 0.0
      %v531 = vmax.f32 %v447, 0.0
      %v532 = vmax.f32 %v450, 0.0
      %v533 = vmax.f32 %v455, 0.0
      %v534 = vmax.f32 %v458, 0.0
      %v535 = vmax.f32 %v463, 0.0
      %v536 = vmax.f32 %v466, 0.0
      %v537 = vmax.f32 %v471, 0.0
      %v538 = vmax.f32 %v474, 0.0
      %v539 = vmax.f32 %v479, 0.0
      %v540 = vmax.f32 %v482, 0.0
      %v541 = vmax.f32 %v487, 0.0
      %v542 = vmax.f32 %v490, 0.0
      %v543 = vmax.f32 %v495, 0.0
      %v544 = vmax.f32 %v498, 0.0
      %v545 = vmax.f32 %v503, 0.0
      %v546 = vmax.f32 %v506, 0.0
      %v547 = vmax.f32 %v511, 0.0
      %v548 = vmax.f32 %v514, 0.0
      %v549 = vpack.c.bf16 %v518, %v517
      %v550 = vpack.c.bf16 %v520, %v519
      %v551 = vpack.c.bf16 %v522, %v521
      %v552 = vpack.c.bf16 %v524, %v523
      %v553 = vpack.c.bf16 %v526, %v525
      %v554 = vpack.c.bf16 %v528, %v527
      %v555 = vpack.c.bf16 %v530, %v529
      %v556 = vpack.c.bf16 %v532, %v531
      %v557 = vpack.c.bf16 %v534, %v533
      %v558 = vpack.c.bf16 %v536, %v535
      %v559 = vpack.c.bf16 %v538, %v537
      %v560 = vpack.c.bf16 %v540, %v539
      %v561 = vpack.c.bf16 %v542, %v541
      %v562 = vpack.c.bf16 %v544, %v543
      %v563 = vpack.c.bf16 %v546, %v545
      %v564 = vpack.c.bf16 %v548, %v547
      %v581 = vunpack.c.l.b16 %v549
      %v582 = vunpack.c.h.b16 %v549
      %v583 = vunpack.c.l.b16 %v550
      %v584 = vunpack.c.h.b16 %v550
      %v585 = vunpack.c.l.b16 %v551
      %v586 = vunpack.c.h.b16 %v551
      %v587 = vunpack.c.l.b16 %v552
      %v588 = vunpack.c.h.b16 %v552
      %v589 = vunpack.c.l.b16 %v553
      %v590 = vunpack.c.h.b16 %v553
      %v591 = vunpack.c.l.b16 %v554
      %v592 = vunpack.c.h.b16 %v554
      %v593 = vunpack.c.l.b16 %v555
      %v594 = vunpack.c.h.b16 %v555
      %v595 = vunpack.c.l.b16 %v556
      %v596 = vunpack.c.h.b16 %v556
      %v597 = vunpack.c.l.b16 %v557
      %v598 = vunpack.c.h.b16 %v557
      %v599 = vunpack.c.l.b16 %v558
      %v600 = vunpack.c.h.b16 %v558
      %v601 = vunpack.c.l.b16 %v559
      %v602 = vunpack.c.h.b16 %v559
      %v603 = vunpack.c.l.b16 %v560
      %v604 = vunpack.c.h.b16 %v560
      %v605 = vunpack.c.l.b16 %v561
      %v606 = vunpack.c.h.b16 %v561
      %v607 = vunpack.c.l.b16 %v562
      %v608 = vunpack.c.h.b16 %v562
      %v609 = vunpack.c.l.b16 %v563
      %v610 = vunpack.c.h.b16 %v563
      %v611 = vunpack.c.l.b16 %v564
      %v612 = vunpack.c.h.b16 %v564
      %v613 = vpack.c.b16 %v581, %v581
      %v614 = vpack.c.b16 %v582, %v582
      %v615 = vpack.c.b16 %v583, %v583
      %v616 = vpack.c.b16 %v584, %v584
      %v617 = vpack.c.b16 %v585, %v585
      %v618 = vpack.c.b16 %v586, %v586
      %v619 = vpack.c.b16 %v587, %v587
      %v620 = vpack.c.b16 %v588, %v588
      %v621 = vpack.c.b16 %v589, %v589
      %v622 = vpack.c.b16 %v590, %v590
      %v623 = vpack.c.b16 %v591, %v591
      %v624 = vpack.c.b16 %v592, %v592
      %v625 = vpack.c.b16 %v593, %v593
      %v626 = vpack.c.b16 %v594, %v594
      %v627 = vpack.c.b16 %v595, %v595
      %v628 = vpack.c.b16 %v596, %v596
      %v629 = vpack.c.b16 %v597, %v597
      %v630 = vpack.c.b16 %v598, %v598
      %v631 = vpack.c.b16 %v599, %v599
      %v632 = vpack.c.b16 %v600, %v600
      %v633 = vpack.c.b16 %v601, %v601
      %v634 = vpack.c.b16 %v602, %v602
      %v635 = vpack.c.b16 %v603, %v603
      %v636 = vpack.c.b16 %v604, %v604
      %v637 = vpack.c.b16 %v605, %v605
      %v638 = vpack.c.b16 %v606, %v606
      %v639 = vpack.c.b16 %v607, %v607
      %v640 = vpack.c.b16 %v608, %v608
      %v641 = vpack.c.b16 %v609, %v609
      %v642 = vpack.c.b16 %v610, %v610
      %v643 = vpack.c.b16 %v611, %v611
      %v644 = vpack.c.b16 %v612, %v612
      %vm677 = vcmask 519168
      %678 = vst.msk [vmem:[%s170] sm:$0xf] %vm677, %v613
      %679 = vst.msk [vmem:[%s170 + $0x4] sm:$0xf] %vm677, %v614
      %680 = vst.msk [vmem:[%s170 + $0x8] sm:$0xf] %vm677, %v615
      %681 = vst.msk [vmem:[%s170 + $0xc] sm:$0xf] %vm677, %v616
      %682 = vst.msk [vmem:[%s170 + $0x10] sm:$0xf] %vm677, %v617
      %683 = vst.msk [vmem:[%s170 + $0x14] sm:$0xf] %vm677, %v618
      %684 = vst.msk [vmem:[%s170 + $0x18] sm:$0xf] %vm677, %v619
      %685 = vst.msk [vmem:[%s170 + $0x1c] sm:$0xf] %vm677, %v620
      %686 = vst.msk [vmem:[%s170 + $0x20] sm:$0xf] %vm677, %v621
      %687 = vst.msk [vmem:[%s170 + $0x24] sm:$0xf] %vm677, %v622
      %688 = vst.msk [vmem:[%s170 + $0x28] sm:$0xf] %vm677, %v623
      %689 = vst.msk [vmem:[%s170 + $0x2c] sm:$0xf] %vm677, %v624
      %690 = vst.msk [vmem:[%s170 + $0x30] sm:$0xf] %vm677, %v625
      %691 = vst.msk [vmem:[%s170 + $0x34] sm:$0xf] %vm677, %v626
      %692 = vst.msk [vmem:[%s170 + $0x38] sm:$0xf] %vm677, %v627
      %693 = vst.msk [vmem:[%s170 + $0x3c] sm:$0xf] %vm677, %v628
      %694 = vst.msk [vmem:[%s170 + $0x40] sm:$0xf] %vm677, %v629
      %695 = vst.msk [vmem:[%s170 + $0x44] sm:$0xf] %vm677, %v630
      %696 = vst.msk [vmem:[%s170 + $0x48] sm:$0xf] %vm677, %v631
      %697 = vst.msk [vmem:[%s170 + $0x4c] sm:$0xf] %vm677, %v632
      %698 = vst.msk [vmem:[%s170 + $0x50] sm:$0xf] %vm677, %v633
      %699 = vst.msk [vmem:[%s170 + $0x54] sm:$0xf] %vm677, %v634
      %700 = vst.msk [vmem:[%s170 + $0x58] sm:$0xf] %vm677, %v635
      %701 = vst.msk [vmem:[%s170 + $0x5c] sm:$0xf] %vm677, %v636
      %702 = vst.msk [vmem:[%s170 + $0x60] sm:$0xf] %vm677, %v637
      %703 = vst.msk [vmem:[%s170 + $0x64] sm:$0xf] %vm677, %v638
      %704 = vst.msk [vmem:[%s170 + $0x68] sm:$0xf] %vm677, %v639
      %705 = vst.msk [vmem:[%s170 + $0x6c] sm:$0xf] %vm677, %v640
      %706 = vst.msk [vmem:[%s170 + $0x70] sm:$0xf] %vm677, %v641
      %707 = vst.msk [vmem:[%s170 + $0x74] sm:$0xf] %vm677, %v642
      %708 = vst.msk [vmem:[%s170 + $0x78] sm:$0xf] %vm677, %v643
      %709 = vst.msk [vmem:[%s170 + $0x7c] sm:$0xf] %vm677, %v644
      %p710 = scmp.lt.s32.totalorder %s14, 3
      %s711 = scalar_select %p710, %s14, 3
      %s712 = smul.addr %s711, 32
      %s713 = smul.addr %s712, 4
      %s714 = scalar_lea.vmem %s3, %s713
      // Predicated region
      $region33: #{vgg_loss.3} parent=31 // pred_check
        %p715 = pneg %p100
      $region34: #{vgg_loss.3} parent=31 // pred_check_branch
        %717 = sbr.rel (%p715) target = $region36
      $region35: #{vgg_loss.3} parent=31 // pred_region
        _
      $region36: #{vgg_loss.3} parent=31 // pred_fallthru
        _
    $region32: #{vgg_loss.3} parent=5 // pred_fallthru
      _
    %p718 = scmp.le.s32.totalorder 2, %s9
    // Predicated region
    $region37: #{vgg_loss.3} parent=5 // pred_check
      %p719 = pneg %p718
    $region38: #{vgg_loss.3} parent=5 // pred_check_branch
      %721 = sbr.rel (%p719) target = $region40
    $region39: #{vgg_loss.3} parent=5 // pred_region
      %s722 = ssub.s32 %s9, 2
      // Predicated region
      $region41: #{vgg_loss.3} parent=39 // pred_check
        %p723 = pneg %p106
      $region42: #{vgg_loss.3} parent=39 // pred_check_branch
        %725 = sbr.rel (%p723) target = $region44
      $region43: #{vgg_loss.3} parent=39 // pred_region
        %p726 = scmp.lt.s32.totalorder %s15, 3
        %s727 = scalar_select %p726, %s15, 3
        %s728 = smul.addr %s727, 32
        %s729 = smul.addr %s728, 4
        %s730 = scalar_lea.vmem %s3, %s729
      $region44: #{vgg_loss.3} parent=39 // pred_fallthru
        _
    $region40: #{vgg_loss.3} parent=5 // pred_fallthru
      _
  $region6: #{vgg_loss.3} parent=0 // loop_footer
    %s13 = sadd.s32 1, %s9
  $region7: #{vgg_loss.3} parent=0 // loop_footer_branch
    %8 = sbr.rel target = $region3
  $region8: #{vgg_loss.3} parent=0 // loop_exit
    _

// kernel: vgg_loss.5
$region0: #{vgg_loss.5}
  #allocation0 [shape = 'u32[]', space=smem, size = 0x4, offset = 0x4, fixed_abs, tag = 'smem constant byte address 0x4 - core index']
  #allocation1 [shape = 'u32[144,128]{1,0:T(1,128)}', space=vmem, size = 0x12000, scoped, tag = 'internal scratch']
  #allocation2 [shape = 'f32[8,64]{1,0:T(8,128)}', space=vmem, size = 0x1000, scoped, tag = 'scratch operand']
  %s0 = inlined_call_operand.vmem [shape: bf16[4,8,8,64], index: 0, kind: input, shape index: {}, may-alias: {0,1}]
  %s1 = inlined_call_operand.vmem [shape: bf16[4,8,8,64], index: 1, kind: input, shape index: {}, may-alias: {0,1}]
  %s2 = inlined_call_operand.vmem [shape: f32[2,1,1], index: 2, kind: output, shape index: {}]
  %s3 = sld [smem:[#allocation0]]
  $region53: #{vgg_loss.5} parent=0
    _
  %s5 = ssub.s32 1, %s3
  %s6 = scalar_select 0, %s5, %s3
  loop: start=0, step=1, limit=4
  $region2: #{vgg_loss.5} parent=0 // loop_pre_header
    _
  $region3: #{vgg_loss.5} parent=0 // loop_header
    %s8 = sphi 0, %s12
    %p9 = scmp.ge.s32.totalorder %s8, 4
    %s15 = sphi 0, %s27
    %s16 = sphi 0, %s23
    %s17 = sphi 0, %s15
    %s18 = sphi 0, %s16
    %s19 = sphi 0, %s17
    %s20 = sphi 0, %s18
    %s36 = sphi 0, %s38
    %s39 = sphi 0, %s36
    %s40 = sphi 0, %s39
    %s56 = sphi 0, %s40
    %s70 = sphi 0, %s72
    %s73 = sphi 0, %s70
    %s74 = sphi 0, %s73
    %s90 = sphi 0, %s74
    %s96 = sphi 0, %s98
    %s99 = sphi 0, %s96
    %s100 = sphi 0, %s99
    %s116 = sphi 0, %s100
  $region4: #{vgg_loss.5} parent=0 // loop_header_branch
    %11 = sbr.rel (%p9) target = $region8
  $region5: #{vgg_loss.5} parent=0 // loop_body
    %s13 = ssub.s32 %s8, 1
    %s14 = ssub.s32 %s8, 2
    %s21 = sadd.s32 1, %s16
    %p22 = scmp.ge.s32.totalorder %s21, 1
    %s23 = scalar_select %p22, 0, %s21
    %s24 = sadd.s32 1, %s15
    %s25 = scalar_select %p22, %s24, %s15
    %p26 = scmp.ge.s32.totalorder %s25, 2
    %s27 = scalar_select %p26, 0, %s25
    %s28 = sadd.s32 %s15, %s16
    %p29 = scmp.lt.s32.totalorder %s28, 1
    %s30 = scalar_select %p29, %s28, 1
    %s31 = sadd.s32 %s27, %s23
    %p32 = scmp.lt.s32.totalorder %s31, 1
    %s33 = scalar_select %p32, %s31, 1
    %s34 = ssub.s32 %s30, %s33
    %p35 = scmp.eq.s32.totalorder %s34, 0
    %s37 = sadd.s32 %s36, 1
    %s38 = scalar_select %p35, %s36, %s37
    %p41 = pneg %p35
    %p42 = scmp.eq.s32.totalorder %s8, 1
    %p43 = por %p41, %p42
    %p44 = scmp.ne.s32.totalorder %s36, %s39
    %p45 = scmp.eq.s32.totalorder %s8, 0
    %p46 = por %p44, %p45
    %p47 = scmp.ne.s32.totalorder %s36, %s39
    %p48 = scmp.eq.s32.totalorder %s13, 1
    %p49 = por %p47, %p48
    %p50 = scmp.ne.s32.totalorder %s39, %s40
    %p51 = scmp.eq.s32.totalorder %s13, 0
    %p52 = por %p50, %p51
    %p53 = scmp.ne.s32.totalorder %s39, %s40
    %p54 = scmp.eq.s32.totalorder %s14, 1
    %p55 = por %p53, %p54
    %p57 = scmp.ne.s32.totalorder %s40, %s56
    %p58 = scmp.eq.s32.totalorder %s14, 0
    %p59 = por %p57, %p58
    %s60 = sadd.s32 %s15, %s16
    %p61 = scmp.lt.s32.totalorder %s60, 1
    %s62 = scalar_select %p61, %s60, 1
    %s63 = sadd.s32 %s62, 2
    %s64 = sadd.s32 %s27, %s23
    %p65 = scmp.lt.s32.totalorder %s64, 1
    %s66 = scalar_select %p65, %s64, 1
    %s67 = sadd.s32 %s66, 2
    %s68 = ssub.s32 %s63, %s67
    %p69 = scmp.eq.s32.totalorder %s68, 0
    %s71 = sadd.s32 %s70, 1
    %s72 = scalar_select %p69, %s70, %s71
    %p75 = pneg %p69
    %p76 = scmp.eq.s32.totalorder %s8, 1
    %p77 = por %p75, %p76
    %p78 = scmp.ne.s32.totalorder %s70, %s73
    %p79 = scmp.eq.s32.totalorder %s8, 0
    %p80 = por %p78, %p79
    %p81 = scmp.ne.s32.totalorder %s70, %s73
    %p82 = scmp.eq.s32.totalorder %s13, 1
    %p83 = por %p81, %p82
    %p84 = scmp.ne.s32.totalorder %s73, %s74
    %p85 = scmp.eq.s32.totalorder %s13, 0
    %p86 = por %p84, %p85
    %p87 = scmp.ne.s32.totalorder %s73, %s74
    %p88 = scmp.eq.s32.totalorder %s14, 1
    %p89 = por %p87, %p88
    %p91 = scmp.ne.s32.totalorder %s74, %s90
    %p92 = scmp.eq.s32.totalorder %s14, 0
    %p93 = por %p91, %p92
    %s94 = ssub.s32 %s15, %s27
    %p95 = scmp.eq.s32.totalorder %s94, 0
    %s97 = sadd.s32 %s96, 1
    %s98 = scalar_select %p95, %s96, %s97
    %p101 = pneg %p95
    %p102 = scmp.eq.s32.totalorder %s8, 1
    %p103 = por %p101, %p102
    %p104 = scmp.ne.s32.totalorder %s96, %s99
    %p105 = scmp.eq.s32.totalorder %s8, 0
    %p106 = por %p104, %p105
    %p107 = scmp.ne.s32.totalorder %s96, %s99
    %p108 = scmp.eq.s32.totalorder %s13, 1
    %p109 = por %p107, %p108
    %p110 = scmp.ne.s32.totalorder %s99, %s100
    %p111 = scmp.eq.s32.totalorder %s13, 0
    %p112 = por %p110, %p111
    %p113 = scmp.ne.s32.totalorder %s99, %s100
    %p114 = scmp.eq.s32.totalorder %s14, 1
    %p115 = por %p113, %p114
    %p117 = scmp.ne.s32.totalorder %s100, %s116
    %p118 = scmp.eq.s32.totalorder %s14, 0
    %p119 = por %p117, %p118
    %p120 = scmp.le.s32.totalorder 1, %s8
    %p121 = scmp.lt.s32.totalorder %s8, 3
    %p122 = pnand %p120, %p121
    %p123 = pneg %p122
    // Predicated region
    $region9: #{vgg_loss.5} parent=5 // pred_check
      _
    $region10: #{vgg_loss.5} parent=5 // pred_check_branch
      %125 = sbr.rel (%p122) target = $region12
    $region11: #{vgg_loss.5} parent=5 // pred_region
      %s126 = ssub.s32 %s8, 1
    $region12: #{vgg_loss.5} parent=5 // pred_fallthru
      _
    %p127 = scmp.lt.s32.totalorder %s8, 2
    // Predicated region
    $region13: #{vgg_loss.5} parent=5 // pred_check
      %p128 = pneg %p127
    $region14: #{vgg_loss.5} parent=5 // pred_check_branch
      %130 = sbr.rel (%p128) target = $region16
    $region15: #{vgg_loss.5} parent=5 // pred_region
      // Predicated region
      $region17: #{vgg_loss.5} parent=15 // pred_check
        %p131 = pneg %p46
      $region18: #{vgg_loss.5} parent=15 // pred_check_branch
        %133 = sbr.rel (%p131) target = $region20
      $region19: #{vgg_loss.5} parent=15 // pred_region
        %s134 = sadd.s32 %s15, %s16
        %p135 = scmp.lt.s32.totalorder %s134, 1
        %s136 = scalar_select %p135, %s134, 1
        %p137 = scmp.lt.s32.totalorder %s136, 3
        %s138 = scalar_select %p137, %s136, 3
        %s139 = smul.addr %s138, 8
        %s140 = smul.addr %s139, 4
        %s141 = scalar_lea.vmem %s0, %s140
        %s142 = sadd.s32 %s15, %s16
        %p143 = scmp.lt.s32.totalorder %s142, 1
        %s144 = scalar_select %p143, %s142, 1
      $region20: #{vgg_loss.5} parent=15 // pred_fallthru
        _
      // Predicated region
      $region21: #{vgg_loss.5} parent=15 // pred_check
        %p145 = pneg %p80
      $region22: #{vgg_loss.5} parent=15 // pred_check_branch
        %147 = sbr.rel (%p145) target = $region24
      $region23: #{vgg_loss.5} parent=15 // pred_region
        %s148 = sadd.s32 %s15, %s16
        %p149 = scmp.lt.s32.totalorder %s148, 1
        %s150 = scalar_select %p149, %s148, 1
        %s151 = sadd.s32 %s150, 2
        %p152 = scmp.lt.s32.totalorder %s151, 3
        %s153 = scalar_select %p152, %s151, 3
        %s154 = smul.addr %s153, 8
        %s155 = smul.addr %s154, 4
        %s156 = scalar_lea.vmem %s1, %s155
        %s157 = sadd.s32 %s15, %s16
        %p158 = scmp.lt.s32.totalorder %s157, 1
        %s159 = scalar_select %p158, %s157, 1
        %s160 = sadd.s32 %s159, 2
      $region24: #{vgg_loss.5} parent=15 // pred_fallthru
        _
    $region16: #{vgg_loss.5} parent=5 // pred_fallthru
      _
    %p161 = scmp.le.s32.totalorder 1, %s8
    %p162 = scmp.lt.s32.totalorder %s8, 3
    %p163 = pnand %p161, %p162
    %p164 = pneg %p163
    // Predicated region
    $region25: #{vgg_loss.5} parent=5 // pred_check
      _
    $region26: #{vgg_loss.5} parent=5 // pred_check_branch
      %166 = sbr.rel (%p163) target = $region28
    $region27: #{vgg_loss.5} parent=5 // pred_region
      %s167 = ssub.s32 %s8, 1
      %s168 = sadd.s32 %s17, %s18
      %p169 = scmp.lt.s32.totalorder %s168, 1
      %s170 = scalar_select %p169, %s168, 1
      %p171 = scmp.lt.s32.totalorder %s170, 3
      %s172 = scalar_select %p171, %s170, 3
      %s173 = smul.addr %s172, 8
      %s174 = smul.addr %s173, 4
      %s175 = scalar_lea.vmem %s0, %s174
      %p176 = pneg %p52
      %p177 = pneg %p49
      %s178 = sadd.s32 %s17, %s18
      %p179 = scmp.lt.s32.totalorder %s178, 1
      %s180 = scalar_select %p179, %s178, 1
      %s181 = sadd.s32 %s180, 2
      %p182 = scmp.lt.s32.totalorder %s181, 3
      %s183 = scalar_select %p182, %s181, 3
      %s184 = smul.addr %s183, 8
      %s185 = smul.addr %s184, 4
      %s186 = scalar_lea.vmem %s1, %s185
      %p187 = pneg %p86
      %p188 = pneg %p83
      %p189 = pneg %p112
      %p190 = pneg %p109
      %p191 = scmp.lt.s32.totalorder %s17, 1
      %s192 = scalar_select %p191, %s17, 1
      %s193 = scalar_lea.vmem %s2, %s192
      %s194 = sadd.s32 %s17, %s18
      %p195 = scmp.lt.s32.totalorder %s194, 1
      %s196 = scalar_select %p195, %s194, 1
      %p197 = scmp.lt.s32.totalorder %s196, 3
      %s198 = scalar_select %p197, %s196, 3
      %s199 = smul.addr %s198, 8
      %s200 = smul.addr %s199, 4
      %s201 = scalar_lea.vmem %s0, %s200
      %s202 = sadd.s32 %s17, %s18
      %p203 = scmp.lt.s32.totalorder %s202, 1
      %s204 = scalar_select %p203, %s202, 1
      %s205 = sadd.s32 %s17, %s18
      %p206 = scmp.lt.s32.totalorder %s205, 1
      %s207 = scalar_select %p206, %s205, 1
      %s208 = sadd.s32 %s207, 2
      %p209 = scmp.lt.s32.totalorder %s208, 3
      %s210 = scalar_select %p209, %s208, 3
      %s211 = smul.addr %s210, 8
      %s212 = smul.addr %s211, 4
      %s213 = scalar_lea.vmem %s1, %s212
      %s214 = sadd.s32 %s17, %s18
      %p215 = scmp.lt.s32.totalorder %s214, 1
      %s216 = scalar_select %p215, %s214, 1
      %s217 = sadd.s32 %s216, 2
      %p218 = scmp.lt.s32.totalorder %s17, 1
      %s219 = scalar_select %p218, %s17, 1
      %s220 = scalar_lea.vmem %s2, %s219
      %p221 = scmp.eq.s32.totalorder %s18, 0
      // Predicated region
      $region29: #{vgg_loss.5} parent=27 // pred_check
        %p222 = pneg %p221
      $region30: #{vgg_loss.5} parent=27 // pred_check_branch
        %224 = sbr.rel (%p222) target = $region32
      $region31: #{vgg_loss.5} parent=27 // pred_region
        %vm225 = vcmask 523264
        %226 = vst.msk [vmem:[#allocation2] sm:$0xff] %vm225, 0.0
      $region32: #{vgg_loss.5} parent=27 // pred_fallthru
        _
      %s227 = sadd.s32 %s17, %s18
      %p228 = scmp.lt.s32.totalorder %s227, 2
      // Predicated region
      $region33: #{vgg_loss.5} parent=27 // pred_check
        %p229 = pneg %p228
      $region34: #{vgg_loss.5} parent=27 // pred_check_branch
        %231 = sbr.rel (%p229) target = $region36
      $region35: #{vgg_loss.5} parent=27 // pred_region
        %v232 = vld [vmem:[%s201] sm:$0xf]
        %v233 = vld [vmem:[%s201 + $0x4] sm:$0xf]
        %v234 = vld [vmem:[%s201 + $0x8] sm:$0xf]
        %v235 = vld [vmem:[%s201 + $0xc] sm:$0xf]
        %v236 = vld [vmem:[%s201 + $0x10] sm:$0xf]
        %v237 = vld [vmem:[%s201 + $0x14] sm:$0xf]
        %v238 = vld [vmem:[%s201 + $0x18] sm:$0xf]
        %v239 = vld [vmem:[%s201 + $0x1c] sm:$0xf]
        %v240 = vunpack.c.l.bf16 %v232
        %v241 = vunpack.c.l.bf16 %v233
        %v242 = vunpack.c.l.bf16 %v234
        %v243 = vunpack.c.l.bf16 %v235
        %v244 = vunpack.c.l.bf16 %v236
        %v245 = vunpack.c.l.bf16 %v237
        %v246 = vunpack.c.l.bf16 %v238
        %v247 = vunpack.c.l.bf16 %v239
        %v248 = vld [vmem:[%s213] sm:$0xf]
        %v249 = vld [vmem:[%s213 + $0x4] sm:$0xf]
        %v250 = vld [vmem:[%s213 + $0x8] sm:$0xf]
        %v251 = vld [vmem:[%s213 + $0xc] sm:$0xf]
        %v252 = vld [vmem:[%s213 + $0x10] sm:$0xf]
        %v253 = vld [vmem:[%s213 + $0x14] sm:$0xf]
        %v254 = vld [vmem:[%s213 + $0x18] sm:$0xf]
        %v255 = vld [vmem:[%s213 + $0x1c] sm:$0xf]
        %v256 = vunpack.c.l.bf16 %v248
        %v257 = vunpack.c.l.bf16 %v249
        %v258 = vunpack.c.l.bf16 %v250
        %v259 = vunpack.c.l.bf16 %v251
        %v260 = vunpack.c.l.bf16 %v252
        %v261 = vunpack.c.l.bf16 %v253
        %v262 = vunpack.c.l.bf16 %v254
        %v263 = vunpack.c.l.bf16 %v255
        %v264 = vsub.f32 %v240, %v256
        %v265 = vsub.f32 %v241, %v257
        %v266 = vsub.f32 %v242, %v258
        %v267 = vsub.f32 %v243, %v259
        %v268 = vsub.f32 %v244, %v260
        %v269 = vsub.f32 %v245, %v261
        %v270 = vsub.f32 %v246, %v262
        %v271 = vsub.f32 %v247, %v263
        %v272 = vmul.f32 %v264, %v264
        %v273 = vmul.f32 %v265, %v265
        %v274 = vmul.f32 %v266, %v266
        %v275 = vmul.f32 %v267, %v267
        %v276 = vmul.f32 %v268, %v268
        %v277 = vmul.f32 %v269, %v269
        %v278 = vmul.f32 %v270, %v270
        %v279 = vmul.f32 %v271, %v271
        %v280 = vld [vmem:[#allocation2] sm:$0xff]
        %vm281 = vcmask 523264
        %v282 = vsel %vm281, %v272, 0.0
        %v283 = vsel %vm281, %v273, 0.0
        %v284 = vadd.f32 %v282, %v283
        %v285 = vsel %vm281, %v274, 0.0
        %v286 = vadd.f32 %v284, %v285
        %v287 = vsel %vm281, %v275, 0.0
        %v288 = vadd.f32 %v286, %v287
        %v289 = vsel %vm281, %v276, 0.0
        %v290 = vadd.f32 %v288, %v289
        %v291 = vsel %vm281, %v277, 0.0
        %v292 = vadd.f32 %v290, %v291
        %v293 = vsel %vm281, %v278, 0.0
        %v294 = vadd.f32 %v292, %v293
        %v295 = vsel %vm281, %v279, 0.0
        %v296 = vadd.f32 %v294, %v295
        %v297 = vadd.f32 %v280, %v296
        %298 = vst.msk [vmem:[#allocation2] sm:$0xff] %vm281, %v297
      $region36: #{vgg_loss.5} parent=27 // pred_fallthru
        _
      // Predicated region
      $region37: #{vgg_loss.5} parent=27 // pred_check
        %p299 = pneg %p221
      $region38: #{vgg_loss.5} parent=27 // pred_check_branch
        %301 = sbr.rel (%p299) target = $region40
      $region39: #{vgg_loss.5} parent=27 // pred_region
        %v302 = vld [vmem:[#allocation2] sm:$0xff]
        %vm303 = vcmask 523264
        %v304 = vsel %vm303, %v302, 0.0
        %305 = vadd.xlane.f32.xlu0 %v304
        %v306 = vpop.xlane.xlu0 %305
        %v307 = vrot.slane %v306, 4
        %v308 = vadd.f32 %v306, %v307
        %v309 = vrot.slane %v308, 2
        %v310 = vadd.f32 %v308, %v309
        %v311 = vrot.slane %v310, 1
        %v312 = vadd.f32 %v310, %v311
        %s313 = vtos %v312
        %v314 = vstv %s313
        %vm315 = vcmask 0
        %316 = vst.msk [vmem:[%s220] sm:$0x1] %vm315, %v314
      $region40: #{vgg_loss.5} parent=27 // pred_fallthru
        _
      %p317 = scmp.lt.s32.totalorder %s17, 1
      %s318 = scalar_select %p317, %s17, 1
      %s319 = scalar_lea.vmem %s2, %s318
      // Predicated region
      $region41: #{vgg_loss.5} parent=27 // pred_check
        %p320 = pneg %p109
      $region42: #{vgg_loss.5} parent=27 // pred_check_branch
        %322 = sbr.rel (%p320) target = $region44
      $region43: #{vgg_loss.5} parent=27 // pred_region
        _
      $region44: #{vgg_loss.5} parent=27 // pred_fallthru
        _
    $region28: #{vgg_loss.5} parent=5 // pred_fallthru
      _
    %p323 = scmp.le.s32.totalorder 2, %s8
    // Predicated region
    $region45: #{vgg_loss.5} parent=5 // pred_check
      %p324 = pneg %p323
    $region46: #{vgg_loss.5} parent=5 // pred_check_branch
      %326 = sbr.rel (%p324) target = $region48
    $region47: #{vgg_loss.5} parent=5 // pred_region
      %s327 = ssub.s32 %s8, 2
      // Predicated region
      $region49: #{vgg_loss.5} parent=47 // pred_check
        %p328 = pneg %p115
      $region50: #{vgg_loss.5} parent=47 // pred_check_branch
        %330 = sbr.rel (%p328) target = $region52
      $region51: #{vgg_loss.5} parent=47 // pred_region
        %p331 = scmp.lt.s32.totalorder %s19, 1
        %s332 = scalar_select %p331, %s19, 1
        %s333 = scalar_lea.vmem %s2, %s332
      $region52: #{vgg_loss.5} parent=47 // pred_fallthru
        _
    $region48: #{vgg_loss.5} parent=5 // pred_fallthru
      _
  $region6: #{vgg_loss.5} parent=0 // loop_footer
    %s12 = sadd.s32 1, %s8
  $region7: #{vgg_loss.5} parent=0 // loop_footer_branch
    %7 = sbr.rel target = $region3
  $region8: #{vgg_loss.5} parent=0 // loop_exit
    _

// kernel: vgg_loss.4
$region0: #{vgg_loss.4}
  #allocation0 [shape = 'u32[]', space=smem, size = 0x4, offset = 0x4, fixed_abs, tag = 'smem constant byte address 0x4 - core index']
  #allocation1 [shape = 'u32[144,128]{1,0:T(1,128)}', space=vmem, size = 0x12000, scoped, tag = 'internal scratch']
  #allocation2 [shape = 'bf16[18,18,64]{2,1,0:T(8,128)(2,1)}', space=vmem, size = 0x1b000, scoped, tag = 'scratch operand']
  %s0 = inlined_call_operand.vmem [shape: bf16[4,16,16,64], index: 0, kind: input, shape index: {}]
  %s1 = inlined_call_operand.vmem [shape: bf16[3,192,64], index: 1, kind: input, shape index: {}]
  %s2 = inlined_call_operand.vmem [shape: f32[1,64], index: 2, kind: input, shape index: {}]
  %s3 = inlined_call_operand.vmem [shape: bf16[4,8,8,64], index: 3, kind: output, shape index: {}]
  %s4 = sld [smem:[#allocation0]]
  $region45: #{vgg_loss.4} parent=0
    _
  %s6 = ssub.s32 1, %s4
  %s7 = scalar_select 0, %s6, %s4
  loop: start=0, step=1, limit=6
  $region2: #{vgg_loss.4} parent=0 // loop_pre_header
    _
  $region3: #{vgg_loss.4} parent=0 // loop_header
    %s9 = sphi 0, %s13
    %p10 = scmp.ge.s32.totalorder %s9, 6
    %s19 = sphi 0, %s21
    %s22 = sphi 0, %s19
    %s23 = sphi 0, %s22
    %s39 = sphi 0, %s23
    %s43 = sphi 0, %s43
    %s45 = sphi 0, %s43
    %s46 = sphi 0, %s45
    %s60 = sphi 0, %s46
    %s64 = sphi 0, %s64
    %s66 = sphi 0, %s64
    %s67 = sphi 0, %s66
    %s81 = sphi 0, %s67
    %s87 = sphi 0, %s89
    %s90 = sphi 0, %s87
    %s91 = sphi 0, %s90
    %s107 = sphi 0, %s91
  $region4: #{vgg_loss.4} parent=0 // loop_header_branch
    %12 = sbr.rel (%p10) target = $region8
  $region5: #{vgg_loss.4} parent=0 // loop_body
    %s14 = ssub.s32 %s9, 1
    %s15 = ssub.s32 %s9, 2
    %s16 = sadd.s32 %s9, 1
    %s17 = ssub.s32 %s9, %s16
    %p18 = scmp.eq.s32.totalorder %s17, 0
    %s20 = sadd.s32 %s19, 1
    %s21 = scalar_select %p18, %s19, %s20
    %p24 = pneg %p18
    %p25 = scmp.eq.s32.totalorder %s9, 3
    %p26 = por %p24, %p25
    %p27 = scmp.ne.s32.totalorder %s19, %s22
    %p28 = scmp.eq.s32.totalorder %s9, 0
    %p29 = por %p27, %p28
    %p30 = scmp.ne.s32.totalorder %s19, %s22
    %p31 = scmp.eq.s32.totalorder %s14, 3
    %p32 = por %p30, %p31
    %p33 = scmp.ne.s32.totalorder %s22, %s23
    %p34 = scmp.eq.s32.totalorder %s14, 0
    %p35 = por %p33, %p34
    %p36 = scmp.ne.s32.totalorder %s22, %s23
    %p37 = scmp.eq.s32.totalorder %s15, 3
    %p38 = por %p36, %p37
    %p40 = scmp.ne.s32.totalorder %s23, %s39
    %p41 = scmp.eq.s32.totalorder %s15, 0
    %p42 = por %p40, %p41
    %s44 = sadd.s32 %s43, 1
    %p47 = scmp.eq.s32.totalorder %s9, 3
    %p48 = scmp.ne.s32.totalorder %s43, %s45
    %p49 = scmp.eq.s32.totalorder %s9, 0
    %p50 = por %p48, %p49
    %p51 = scmp.ne.s32.totalorder %s43, %s45
    %p52 = scmp.eq.s32.totalorder %s14, 3
    %p53 = por %p51, %p52
    %p54 = scmp.ne.s32.totalorder %s45, %s46
    %p55 = scmp.eq.s32.totalorder %s14, 0
    %p56 = por %p54, %p55
    %p57 = scmp.ne.s32.totalorder %s45, %s46
    %p58 = scmp.eq.s32.totalorder %s15, 3
    %p59 = por %p57, %p58
    %p61 = scmp.ne.s32.totalorder %s46, %s60
    %p62 = scmp.eq.s32.totalorder %s15, 0
    %p63 = por %p61, %p62
    %s65 = sadd.s32 %s64, 1
    %p68 = scmp.eq.s32.totalorder %s9, 3
    %p69 = scmp.ne.s32.totalorder %s64, %s66
    %p70 = scmp.eq.s32.totalorder %s9, 0
    %p71 = por %p69, %p70
    %p72 = scmp.ne.s32.totalorder %s64, %s66
    %p73 = scmp.eq.s32.totalorder %s14, 3
    %p74 = por %p72, %p73
    %p75 = scmp.ne.s32.totalorder %s66, %s67
    %p76 = scmp.eq.s32.totalorder %s14, 0
    %p77 = por %p75, %p76
    %p78 = scmp.ne.s32.totalorder %s66, %s67
    %p79 = scmp.eq.s32.totalorder %s15, 3
    %p80 = por %p78, %p79
    %p82 = scmp.ne.s32.totalorder %s67, %s81
    %p83 = scmp.eq.s32.totalorder %s15, 0
    %p84 = por %p82, %p83
    %s85 = ssub.s32 %s9, %s16
    %p86 = scmp.eq.s32.totalorder %s85, 0
    %s88 = sadd.s32 %s87, 1
    %s89 = scalar_select %p86, %s87, %s88
    %p92 = pneg %p86
    %p93 = scmp.eq.s32.totalorder %s9, 3
    %p94 = por %p92, %p93
    %p95 = scmp.ne.s32.totalorder %s87, %s90
    %p96 = scmp.eq.s32.totalorder %s9, 0
    %p97 = por %p95, %p96
    %p98 = scmp.ne.s32.totalorder %s87, %s90
    %p99 = scmp.eq.s32.totalorder %s14, 3
    %p100 = por %p98, %p99
    %p101 = scmp.ne.s32.totalorder %s90, %s91
    %p102 = scmp.eq.s32.totalorder %s14, 0
    %p103 = por %p101, %p102
    %p104 = scmp.ne.s32.totalorder %s90, %s91
    %p105 = scmp.eq.s32.totalorder %s15, 3
    %p106 = por %p104, %p105
    %p108 = scmp.ne.s32.totalorder %s91, %s107
    %p109 = scmp.eq.s32.totalorder %s15, 0
    %p110 = por %p108, %p109
    %p111 = scmp.le.s32.totalorder 1, %s9
    %p112 = scmp.lt.s32.totalorder %s9, 5
    %p113 = pnand %p111, %p112
    %p114 = pneg %p113
    // Predicated region
    $region9: #{vgg_loss.4} parent=5 // pred_check
      _
    $region10: #{vgg_loss.4} parent=5 // pred_check_branch
      %116 = sbr.rel (%p113) target = $region12
    $region11: #{vgg_loss.4} parent=5 // pred_region
      %s117 = ssub.s32 %s9, 1
      // Predicated region
      $region13: #{vgg_loss.4} parent=11 // pred_check
        %p118 = pneg %p56
      $region14: #{vgg_loss.4} parent=11 // pred_check_branch
        %120 = sbr.rel (%p118) target = $region16
      $region15: #{vgg_loss.4} parent=11 // pred_region
        _
      $region16: #{vgg_loss.4} parent=11 // pred_fallthru
        _
      // Predicated region
      $region17: #{vgg_loss.4} parent=11 // pred_check
        %p121 = pneg %p77
      $region18: #{vgg_loss.4} parent=11 // pred_check_branch
        %123 = sbr.rel (%p121) target = $region20
      $region19: #{vgg_loss.4} parent=11 // pred_region
        _
      $region20: #{vgg_loss.4} parent=11 // pred_fallthru
        _
    $region12: #{vgg_loss.4} parent=5 // pred_fallthru
      _
    %p124 = scmp.lt.s32.totalorder %s9, 4
    // Predicated region
    $region21: #{vgg_loss.4} parent=5 // pred_check
      %p125 = pneg %p124
    $region22: #{vgg_loss.4} parent=5 // pred_check_branch
      %127 = sbr.rel (%p125) target = $region24
    $region23: #{vgg_loss.4} parent=5 // pred_region
      // Predicated region
      $region25: #{vgg_loss.4} parent=23 // pred_check
        %p128 = pneg %p29
      $region26: #{vgg_loss.4} parent=23 // pred_check_branch
        %130 = sbr.rel (%p128) target = $region28
      $region27: #{vgg_loss.4} parent=23 // pred_region
        %p131 = scmp.lt.s32.totalorder %s9, 3
        %s132 = scalar_select %p131, %s9, 3
        %s133 = smul.addr %s132, 32
        %s134 = smul.addr %s133, 4
        %s135 = scalar_lea.vmem %s0, %s134
      $region28: #{vgg_loss.4} parent=23 // pred_fallthru
        _
    $region24: #{vgg_loss.4} parent=5 // pred_fallthru
      _
    %p136 = scmp.le.s32.totalorder 1, %s9
    %p137 = scmp.lt.s32.totalorder %s9, 5
    %p138 = pnand %p136, %p137
    %p139 = pneg %p138
    // Predicated region
    $region29: #{vgg_loss.4} parent=5 // pred_check
      _
    $region30: #{vgg_loss.4} parent=5 // pred_check_branch
      %141 = sbr.rel (%p138) target = $region32
    $region31: #{vgg_loss.4} parent=5 // pred_region
      %s142 = ssub.s32 %s9, 1
      %p143 = scmp.lt.s32.totalorder %s14, 3
      %s144 = scalar_select %p143, %s14, 3
      %s145 = smul.addr %s144, 32
      %s146 = smul.addr %s145, 4
      %s147 = scalar_lea.vmem %s0, %s146
      %p148 = pneg %p35
      %p149 = pneg %p32
      %p150 = pneg %p56
      %p151 = pneg %p53
      %p152 = pneg %p77
      %p153 = pneg %p74
      %p154 = pneg %p103
      %p155 = pneg %p100
      %p156 = scmp.lt.s32.totalorder %s14, 3
      %s157 = scalar_select %p156, %s14, 3
      %s158 = smul.addr %s157, 8
      %s159 = smul.addr %s158, 4
      %s160 = scalar_lea.vmem %s3, %s159
      %p161 = scmp.lt.s32.totalorder %s14, 3
      %s162 = scalar_select %p161, %s14, 3
      %s163 = smul.addr %s162, 32
      %s164 = smul.addr %s163, 4
      %s165 = scalar_lea.vmem %s0, %s164
      %p166 = scmp.lt.s32.totalorder %s14, 3
      %s167 = scalar_select %p166, %s14, 3
      %s168 = smul.addr %s167, 8
      %s169 = smul.addr %s168, 4
      %s170 = scalar_lea.vmem %s3, %s169
      %vm172 = vcmask 519168
      %173 = vst.msk [vmem:[#allocation2] sm:$0xf] %vm172, 0
      %174 = vst.msk [vmem:[#allocation2 + $0x4] sm:$0xf] %vm172, 0
      %vm175 = vcmask 516096
      %176 = vst.msk [vmem:[#allocation2 + $0x8] sm:$0x1] %vm175, 0
      %s177 = scalar_lea.vmem [#allocation2], 204
      %178 = vst.msk [vmem:[%s177] sm:$0xf] %vm172, 0
      %179 = vst.msk [vmem:[%s177 + $0x4] sm:$0xf] %vm172, 0
      %180 = vst.msk [vmem:[%s177 + $0x8] sm:$0x1] %vm175, 0
      %vm181 = vcmask 516096
      %vm182 = vsmask.f32 256
      %vm183 = vmand %vm181, %vm182
      %v184 = vld [vmem:[#allocation2] sm:$0x1]
      %v185 = vsel %vm183, 0, %v184
      %186 = vst [vmem:[#allocation2] sm:$0x1] %v185
      %v187 = vld [vmem:[#allocation2 + $0xc] sm:$0x1]
      %v188 = vsel %vm183, 0, %v187
      %189 = vst [vmem:[#allocation2 + $0xc] sm:$0x1] %v188
      %v190 = vld [vmem:[#allocation2 + $0x18] sm:$0x1]
      %v191 = vsel %vm183, 0, %v190
      %192 = vst [vmem:[#allocation2 + $0x18] sm:$0x1] %v191
      %v193 = vld [vmem:[#allocation2 + $0x24] sm:$0x1]
      %v194 = vsel %vm183, 0, %v193
      %195 = vst [vmem:[#allocation2 + $0x24] sm:$0x1] %v194
      %v196 = vld [vmem:[#allocation2 + $0x30] sm:$0x1]
      %v197 = vsel %vm183, 0, %v196
      %198 = vst [vmem:[#allocation2 + $0x30] sm:$0x1] %v197
      %v199 = vld [vmem:[#allocation2 + $0x3c] sm:$0x1]
      %v200 = vsel %vm183, 0, %v199
      %201 = vst [vmem:[#allocation2 + $0x3c] sm:$0x1] %v200
      %v202 = vld [vmem:[#allocation2 + $0x48] sm:$0x1]
      %v203 = vsel %vm183, 0, %v202
      %204 = vst [vmem:[#allocation2 + $0x48] sm:$0x1] %v203
      %v205 = vld [vmem:[#allocation2 + $0x54] sm:$0x1]
      %v206 = vsel %vm183, 0, %v205
      %207 = vst [vmem:[#allocation2 + $0x54] sm:$0x1] %v206
      %v208 = vld [vmem:[#allocation2 + $0x60] sm:$0x1]
      %v209 = vsel %vm183, 0, %v208
      %210 = vst [vmem:[#allocation2 + $0x60] sm:$0x1] %v209
      %v211 = vld [vmem:[#allocation2 + $0x6c] sm:$0x1]
      %v212 = vsel %vm183, 0, %v211
      %213 = vst [vmem:[#allocation2 + $0x6c] sm:$0x1] %v212
      %v214 = vld [vmem:[#allocation2 + $0x78] sm:$0x1]
      %v215 = vsel %vm183, 0, %v214
      %216 = vst [vmem:[#allocation2 + $0x78] sm:$0x1] %v215
      %v217 = vld [vmem:[#allocation2 + $0x84] sm:$0x1]
      %v218 = vsel %vm183, 0, %v217
      %219 = vst [vmem:[#allocation2 + $0x84] sm:$0x1] %v218
      %v220 = vld [vmem:[#allocation2 + $0x90] sm:$0x1]
      %v221 = vsel %vm183, 0, %v220
      %222 = vst [vmem:[#allocation2 + $0x90] sm:$0x1] %v221
      %v223 = vld [vmem:[#allocation2 + $0x9c] sm:$0x1]
      %v224 = vsel %vm183, 0, %v223
      %225 = vst [vmem:[#allocation2 + $0x9c] sm:$0x1] %v224
      %v226 = vld [vmem:[#allocation2 + $0xa8] sm:$0x1]
      %v227 = vsel %vm183, 0, %v226
      %228 = vst [vmem:[#allocation2 + $0xa8] sm:$0x1] %v227
      %v229 = vld [vmem:[#allocation2 + $0xb4] sm:$0x1]
      %v230 = vsel %vm183, 0, %v229
      %231 = vst [vmem:[#allocation2 + $0xb4] sm:$0x1] %v230
      %v232 = vld [vmem:[#allocation2 + $0xc0] sm:$0x1]
      %v233 = vsel %vm183, 0, %v232
      %234 = vst [vmem:[#allocation2 + $0xc0] sm:$0x1] %v233
      %v235 = vld [vmem:[#allocation2 + $0xcc] sm:$0x1]
      %v236 = vsel %vm183, 0, %v235
      %237 = vst [vmem:[#allocation2 + $0xcc] sm:$0x1] %v236
      %vm238 = vsmask.f32 7938
      %vm239 = vmand %vm181, %vm238
      %v240 = vld [vmem:[#allocation2 + $0x8] sm:$0x1]
      %v241 = vsel %vm239, 0, %v240
      %242 = vst [vmem:[#allocation2 + $0x8] sm:$0x1] %v241
      %v243 = vld [vmem:[#allocation2 + $0x14] sm:$0x1]
      %v244 = vsel %vm239, 0, %v243
      %245 = vst [vmem:[#allocation2 + $0x14] sm:$0x1] %v244
      %v246 = vld [vmem:[#allocation2 + $0x20] sm:$0x1]
      %v247 = vsel %vm239, 0, %v246
      %248 = vst [vmem:[#allocation2 + $0x20] sm:$0x1] %v247
      %v249 = vld [vmem:[#allocation2 + $0x2c] sm:$0x1]
      %v250 = vsel %vm239, 0, %v249
      %251 = vst [vmem:[#allocation2 + $0x2c] sm:$0x1] %v250
      %v252 = vld [vmem:[#allocation2 + $0x38] sm:$0x1]
      %v253 = vsel %vm239, 0, %v252
      %254 = vst [vmem:[#allocation2 + $0x38] sm:$0x1] %v253
      %v255 = vld [vmem:[#allocation2 + $0x44] sm:$0x1]
      %v256 = vsel %vm239, 0, %v255
      %257 = vst [vmem:[#allocation2 + $0x44] sm:$0x1] %v256
      %v258 = vld [vmem:[#allocation2 + $0x50] sm:$0x1]
      %v259 = vsel %vm239, 0, %v258
      %260 = vst [vmem:[#allocation2 + $0x50] sm:$0x1] %v259
      %v261 = vld [vmem:[#allocation2 + $0x5c] sm:$0x1]
      %v262 = vsel %vm239, 0, %v261
      %263 = vst [vmem:[#allocation2 + $0x5c] sm:$0x1] %v262
      %v264 = vld [vmem:[#allocation2 + $0x68] sm:$0x1]
      %v265 = vsel %vm239, 0, %v264
      %266 = vst [vmem:[#allocation2 + $0x68] sm:$0x1] %v265
      %v267 = vld [vmem:[#allocation2 + $0x74] sm:$0x1]
      %v268 = vsel %vm239, 0, %v267
      %269 = vst [vmem:[#allocation2 + $0x74] sm:$0x1] %v268
      %v270 = vld [vmem:[#allocation2 + $0x80] sm:$0x1]
      %v271 = vsel %vm239, 0, %v270
      %272 = vst [vmem:[#allocation2 + $0x80] sm:$0x1] %v271
      %v273 = vld [vmem:[#allocation2 + $0x8c] sm:$0x1]
      %v274 = vsel %vm239, 0, %v273
      %275 = vst [vmem:[#allocation2 + $0x8c] sm:$0x1] %v274
      %v276 = vld [vmem:[#allocation2 + $0x98] sm:$0x1]
      %v277 = vsel %vm239, 0, %v276
      %278 = vst [vmem:[#allocation2 + $0x98] sm:$0x1] %v277
      %v279 = vld [vmem:[#allocation2 + $0xa4] sm:$0x1]
      %v280 = vsel %vm239, 0, %v279
      %281 = vst [vmem:[#allocation2 + $0xa4] sm:$0x1] %v280
      %v282 = vld [vmem:[#allocation2 + $0xb0] sm:$0x1]
      %v283 = vsel %vm239, 0, %v282
      %284 = vst [vmem:[#allocation2 + $0xb0] sm:$0x1] %v283
      %v285 = vld [vmem:[#allocation2 + $0xbc] sm:$0x1]
      %v286 = vsel %vm239, 0, %v285
      %287 = vst [vmem:[#allocation2 + $0xbc] sm:$0x1] %v286
      %v288 = vld [vmem:[#allocation2 + $0xc8] sm:$0x1]
      %v289 = vsel %vm239, 0, %v288
      %290 = vst [vmem:[#allocation2 + $0xc8] sm:$0x1] %v289
      %v291 = vld [vmem:[#allocation2 + $0xd4] sm:$0x1]
      %v292 = vsel %vm239, 0, %v291
      %293 = vst [vmem:[#allocation2 + $0xd4] sm:$0x1] %v292
      %v294 = vld [vmem:[%s165] sm:$0xf]
      %v295 = vld [vmem:[%s165 + $0x4] sm:$0xf]
      %v296 = vld [vmem:[%s165 + $0x8] sm:$0xf]
      %v297 = vld [vmem:[%s165 + $0xc] sm:$0xf]
      %v298 = vld [vmem:[%s165 + $0x10] sm:$0xf]
      %v299 = vld [vmem:[%s165 + $0x14] sm:$0xf]
      %v300 = vld [vmem:[%s165 + $0x18] sm:$0xf]
      %v301 = vld [vmem:[%s165 + $0x1c] sm:$0xf]
      %v302 = vld [vmem:[%s165 + $0x20] sm:$0xf]
      %v303 = vld [vmem:[%s165 + $0x24] sm:$0xf]
      %v304 = vld [vmem:[%s165 + $0x28] sm:$0xf]
      %v305 = vld [vmem:[%s165 + $0x2c] sm:$0xf]
      %v306 = vld [vmem:[%s165 + $0x30] sm:$0xf]
      %v307 = vld [vmem:[%s165 + $0x34] sm:$0xf]
      %v308 = vld [vmem:[%s165 + $0x38] sm:$0xf]
      %v309 = vld [vmem:[%s165 + $0x3c] sm:$0xf]
      %v310 = vld [vmem:[%s165 + $0x40] sm:$0xf]
      %v311 = vld [vmem:[%s165 + $0x44] sm:$0xf]
      %v312 = vld [vmem:[%s165 + $0x48] sm:$0xf]
      %v313 = vld [vmem:[%s165 + $0x4c] sm:$0xf]
      %v314 = vld [vmem:[%s165 + $0x50] sm:$0xf]
      %v315 = vld [vmem:[%s165 + $0x54] sm:$0xf]
      %v316 = vld [vmem:[%s165 + $0x58] sm:$0xf]
      %v317 = vld [vmem:[%s165 + $0x5c] sm:$0xf]
      %v318 = vld [vmem:[%s165 + $0x60] sm:$0xf]
      %v319 = vld [vmem:[%s165 + $0x64] sm:$0xf]
      %v320 = vld [vmem:[%s165 + $0x68] sm:$0xf]
      %v321 = vld [vmem:[%s165 + $0x6c] sm:$0xf]
      %v322 = vld [vmem:[%s165 + $0x70] sm:$0xf]
      %v323 = vld [vmem:[%s165 + $0x74] sm:$0xf]
      %v324 = vld [vmem:[%s165 + $0x78] sm:$0xf]
      %v325 = vld [vmem:[%s165 + $0x7c] sm:$0xf]
      %vm326 = vsmask.f32 4368
      %vm327 = vmor %vm182, %vm326
      %v329 = vshrl.u32 %v294, 16
      %v331 = vrot.slane %v329, 7
      %v332 = vshll.u32 %v294, 16
      %v334 = vor.u32 %v331, %v332
      %v335 = vrot.slane %v331, 4
      %v337 = vshrl.u32 %v295, 16
      %v339 = vrot.slane %v337, 7
      %v340 = vshll.u32 %v295, 16
      %v342 = vor.u32 %v339, %v340
      %v343 = vsel %vm327, %v335, %v342
      %v344 = vrot.slane %v339, 4
      %v346 = vshrl.u32 %v296, 16
      %v348 = vrot.slane %v346, 7
      %v349 = vshll.u32 %v296, 16
      %v351 = vor.u32 %v348, %v349
      %v352 = vrot.slane %v348, 4
      %v354 = vshrl.u32 %v297, 16
      %v356 = vrot.slane %v354, 7
      %v357 = vshll.u32 %v297, 16
      %v359 = vor.u32 %v356, %v357
      %v360 = vsel %vm327, %v352, %v359
      %v361 = vrot.slane %v356, 4
      %v363 = vshrl.u32 %v298, 16
      %v365 = vrot.slane %v363, 7
      %v366 = vshll.u32 %v298, 16
      %v368 = vor.u32 %v365, %v366
      %v369 = vrot.slane %v365, 4
      %v371 = vshrl.u32 %v299, 16
      %v373 = vrot.slane %v371, 7
      %v374 = vshll.u32 %v299, 16
      %v376 = vor.u32 %v373, %v374
      %v377 = vsel %vm327, %v369, %v376
      %v378 = vrot.slane %v373, 4
      %v380 = vshrl.u32 %v300, 16
      %v382 = vrot.slane %v380, 7
      %v383 = vshll.u32 %v300, 16
      %v385 = vor.u32 %v382, %v383
      %v386 = vrot.slane %v382, 4
      %v388 = vshrl.u32 %v301, 16
      %v390 = vrot.slane %v388, 7
      %v391 = vshll.u32 %v301, 16
      %v393 = vor.u32 %v390, %v391
      %v394 = vsel %vm327, %v386, %v393
      %v395 = vrot.slane %v390, 4
      %v397 = vshrl.u32 %v302, 16
      %v399 = vrot.slane %v397, 7
      %v400 = vshll.u32 %v302, 16
      %v402 = vor.u32 %v399, %v400
      %v403 = vrot.slane %v399, 4
      %v405 = vshrl.u32 %v303, 16
      %v407 = vrot.slane %v405, 7
      %v408 = vshll.u32 %v303, 16
      %v410 = vor.u32 %v407, %v408
      %v411 = vsel %vm327, %v403, %v410
      %v412 = vrot.slane %v407, 4
      %v414 = vshrl.u32 %v304, 16
      %v416 = vrot.slane %v414, 7
      %v417 = vshll.u32 %v304, 16
      %v419 = vor.u32 %v416, %v417
      %v420 = vrot.slane %v416, 4
      %v422 = vshrl.u32 %v305, 16
      %v424 = vrot.slane %v422, 7
      %v425 = vshll.u32 %v305, 16
      %v427 = vor.u32 %v424, %v425
      %v428 = vsel %vm327, %v420, %v427
      %v429 = vrot.slane %v424, 4
      %v431 = vshrl.u32 %v306, 16
      %v433 = vrot.slane %v431, 7
      %v434 = vshll.u32 %v306, 16
      %v436 = vor.u32 %v433, %v434
      %v437 = vrot.slane %v433, 4
      %v439 = vshrl.u32 %v307, 16
      %v441 = vrot.slane %v439, 7
      %v442 = vshll.u32 %v307, 16
      %v444 = vor.u32 %v441, %v442
      %v445 = vsel %vm327, %v437, %v444
      %v446 = vrot.slane %v441, 4
      %v448 = vshrl.u32 %v308, 16
      %v450 = vrot.slane %v448, 7
      %v451 = vshll.u32 %v308, 16
      %v453 = vor.u32 %v450, %v451
      %v454 = vrot.slane %v450, 4
      %v456 = vshrl.u32 %v309, 16
      %v458 = vrot.slane %v456, 7
      %v459 = vshll.u32 %v309, 16
      %v461 = vor.u32 %v458, %v459
      %v462 = vsel %vm327, %v454, %v461
      %v463 = vrot.slane %v458, 4
      %v465 = vshrl.u32 %v310, 16
      %v467 = vrot.slane %v465, 7
      %v468 = vshll.u32 %v310, 16
      %v470 = vor.u32 %v467, %v468
      %v471 = vrot.slane %v467, 4
      %v473 = vshrl.u32 %v311, 16
      %v475 = vrot.slane %v473, 7
      %v476 = vshll.u32 %v311, 16
      %v478 = vor.u32 %v475, %v476
      %v479 = vsel %vm327, %v471, %v478
      %v480 = vrot.slane %v475, 4
      %v482 = vshrl.u32 %v312, 16
      %v484 = vrot.slane %v482, 7
      %v485 = vshll.u32 %v312, 16
      %v487 = vor.u32 %v484, %v485
      %v488 = vrot.slane %v484, 4
      %v490 = vshrl.u32 %v313, 16
      %v492 = vrot.slane %v490, 7
      %v493 = vshll.u32 %v313, 16
      %v495 = vor.u32 %v492, %v493
      %v496 = vsel %vm327, %v488, %v495
      %v497 = vrot.slane %v492, 4
      %v499 = vshrl.u32 %v314, 16
      %v501 = vrot.slane %v499, 7
      %v502 = vshll.u32 %v314, 16
      %v504 = vor.u32 %v501, %v502
      %v505 = vrot.slane %v501, 4
      %v507 = vshrl.u32 %v315, 16
      %v509 = vrot.slane %v507, 7
      %v510 = vshll.u32 %v315, 16
      %v512 = vor.u32 %v509, %v510
      %v513 = vsel %vm327, %v505, %v512
      %v514 = vrot.slane %v509, 4
      %v516 = vshrl.u32 %v316, 16
      %v518 = vrot.slane %v516, 7
      %v519 = vshll.u32 %v316, 16
      %v521 = vor.u32 %v518, %v519
      %v522 = vrot.slane %v518, 4
      %v524 = vshrl.u32 %v317, 16
      %v526 = vrot.slane %v524, 7
      %v527 = vshll.u32 %v317, 16
      %v529 = vor.u32 %v526, %v527
      %v530 = vsel %vm327, %v522, %v529
      %v531 = vrot.slane %v526, 4
      %v533 = vshrl.u32 %v318, 16
      %v535 = vrot.slane %v533, 7
      %v536 = vshll.u32 %v318, 16
      %v538 = vor.u32 %v535, %v536
      %v539 = vrot.slane %v535, 4
      %v541 = vshrl.u32 %v319, 16
      %v543 = vrot.slane %v541, 7
      %v544 = vshll.u32 %v319, 16
      %v546 = vor.u32 %v543, %v544
      %v547 = vsel %vm327, %v539, %v546
      %v548 = vrot.slane %v543, 4
      %v550 = vshrl.u32 %v320, 16
      %v552 = vrot.slane %v550, 7
      %v553 = vshll.u32 %v320, 16
      %v555 = vor.u32 %v552, %v553
      %v556 = vrot.slane %v552, 4
      %v558 = vshrl.u32 %v321, 16
      %v560 = vrot.slane %v558, 7
      %v561 = vshll.u32 %v321, 16
      %v563 = vor.u32 %v560, %v561
      %v564 = vsel %vm327, %v556, %v563
      %v565 = vrot.slane %v560, 4
      %v567 = vshrl.u32 %v322, 16
      %v569 = vrot.slane %v567, 7
      %v570 = vshll.u32 %v322, 16
      %v572 = vor.u32 %v569, %v570
      %v573 = vrot.slane %v569, 4
      %v575 = vshrl.u32 %v323, 16
      %v577 = vrot.slane %v575, 7
      %v578 = vshll.u32 %v323, 16
      %v580 = vor.u32 %v577, %v578
      %v581 = vsel %vm327, %v573, %v580
      %v582 = vrot.slane %v577, 4
      %v584 = vshrl.u32 %v324, 16
      %v586 = vrot.slane %v584, 7
      %v587 = vshll.u32 %v324, 16
      %v589 = vor.u32 %v586, %v587
      %v590 = vrot.slane %v586, 4
      %v592 = vshrl.u32 %v325, 16
      %v594 = vrot.slane %v592, 7
      %v595 = vshll.u32 %v325, 16
      %v597 = vor.u32 %v594, %v595
      %v598 = vsel %vm327, %v590, %v597
      %v599 = vrot.slane %v594, 4
      %s648 = scalar_lea.vmem [#allocation2], 12
      %vm649 = vcmask 519168
      %vm650 = vmand %vm649, %vm238
      %v651 = vld [vmem:[%s648] sm:$0xf]
      %v652 = vsel %vm650, %v334, %v651
      %653 = vst [vmem:[%s648] sm:$0xf] %v652
      %654 = vst.msk [vmem:[%s648 + $0x4] sm:$0xf] %vm172, %v343
      %v655 = vld [vmem:[%s648 + $0x8] sm:$0x1]
      %v656 = vsel %vm183, %v344, %v655
      %657 = vst [vmem:[%s648 + $0x8] sm:$0x1] %v656
      %v658 = vld [vmem:[%s648 + $0xc] sm:$0xf]
      %v659 = vsel %vm650, %v351, %v658
      %660 = vst [vmem:[%s648 + $0xc] sm:$0xf] %v659
      %661 = vst.msk [vmem:[%s648 + $0x10] sm:$0xf] %vm172, %v360
      %v662 = vld [vmem:[%s648 + $0x14] sm:$0x1]
      %v663 = vsel %vm183, %v361, %v662
      %664 = vst [vmem:[%s648 + $0x14] sm:$0x1] %v663
      %v665 = vld [vmem:[%s648 + $0x18] sm:$0xf]
      %v666 = vsel %vm650, %v368, %v665
      %667 = vst [vmem:[%s648 + $0x18] sm:$0xf] %v666
      %668 = vst.msk [vmem:[%s648 + $0x1c] sm:$0xf] %vm172, %v377
      %v669 = vld [vmem:[%s648 + $0x20] sm:$0x1]
      %v670 = vsel %vm183, %v378, %v669
      %671 = vst [vmem:[%s648 + $0x20] sm:$0x1] %v670
      %v672 = vld [vmem:[%s648 + $0x24] sm:$0xf]
      %v673 = vsel %vm650, %v385, %v672
      %674 = vst [vmem:[%s648 + $0x24] sm:$0xf] %v673
      %675 = vst.msk [vmem:[%s648 + $0x28] sm:$0xf] %vm172, %v394
      %v676 = vld [vmem:[%s648 + $0x2c] sm:$0x1]
      %v677 = vsel %vm183, %v395, %v676
      %678 = vst [vmem:[%s648 + $0x2c] sm:$0x1] %v677
      %v679 = vld [vmem:[%s648 + $0x30] sm:$0xf]
      %v680 = vsel %vm650, %v402, %v679
      %681 = vst [vmem:[%s648 + $0x30] sm:$0xf] %v680
      %682 = vst.msk [vmem:[%s648 + $0x34] sm:$0xf] %vm172, %v411
      %v683 = vld [vmem:[%s648 + $0x38] sm:$0x1]
      %v684 = vsel %vm183, %v412, %v683
      %685 = vst [vmem:[%s648 + $0x38] sm:$0x1] %v684
      %v686 = vld [vmem:[%s648 + $0x3c] sm:$0xf]
      %v687 = vsel %vm650, %v419, %v686
      %688 = vst [vmem:[%s648 + $0x3c] sm:$0xf] %v687
      %689 = vst.msk [vmem:[%s648 + $0x40] sm:$0xf] %vm172, %v428
      %v690 = vld [vmem:[%s648 + $0x44] sm:$0x1]
      %v691 = vsel %vm183, %v429, %v690
      %692 = vst [vmem:[%s648 + $0x44] sm:$0x1] %v691
      %v693 = vld [vmem:[%s648 + $0x48] sm:$0xf]
      %v694 = vsel %vm650, %v436, %v693
      %695 = vst [vmem:[%s648 + $0x48] sm:$0xf] %v694
      %696 = vst.msk [vmem:[%s648 + $0x4c] sm:$0xf] %vm172, %v445
      %v697 = vld [vmem:[%s648 + $0x50] sm:$0x1]
      %v698 = vsel %vm183, %v446, %v697
      %699 = vst [vmem:[%s648 + $0x50] sm:$0x1] %v698
      %v700 = vld [vmem:[%s648 + $0x54] sm:$0xf]
      %v701 = vsel %vm650, %v453, %v700
      %702 = vst [vmem:[%s648 + $0x54] sm:$0xf] %v701
      %703 = vst.msk [vmem:[%s648 + $0x58] sm:$0xf] %vm172, %v462
      %v704 = vld [vmem:[%s648 + $0x5c] sm:$0x1]
      %v705 = vsel %vm183, %v463, %v704
      %706 = vst [vmem:[%s648 + $0x5c] sm:$0x1] %v705
      %v707 = vld [vmem:[%s648 + $0x60] sm:$0xf]
      %v708 = vsel %vm650, %v470, %v707
      %709 = vst [vmem:[%s648 + $0x60] sm:$0xf] %v708
      %710 = vst.msk [vmem:[%s648 + $0x64] sm:$0xf] %vm172, %v479
      %v711 = vld [vmem:[%s648 + $0x68] sm:$0x1]
      %v712 = vsel %vm183, %v480, %v711
      %713 = vst [vmem:[%s648 + $0x68] sm:$0x1] %v712
      %v714 = vld [vmem:[%s648 + $0x6c] sm:$0xf]
      %v715 = vsel %vm650, %v487, %v714
      %716 = vst [vmem:[%s648 + $0x6c] sm:$0xf] %v715
      %717 = vst.msk [vmem:[%s648 + $0x70] sm:$0xf] %vm172, %v496
      %v718 = vld [vmem:[%s648 + $0x74] sm:$0x1]
      %v719 = vsel %vm183, %v497, %v718
      %720 = vst [vmem:[%s648 + $0x74] sm:$0x1] %v719
      %v721 = vld [vmem:[%s648 + $0x78] sm:$0xf]
      %v722 = vsel %vm650, %v504, %v721
      %723 = vst [vmem:[%s648 + $0x78] sm:$0xf] %v722
      %724 = vst.msk [vmem:[%s648 + $0x7c] sm:$0xf] %vm172, %v513
      %v725 = vld [vmem:[%s648 + $0x80] sm:$0x1]
      %v726 = vsel %vm183, %v514, %v725
      %727 = vst [vmem:[%s648 + $0x80] sm:$0x1] %v726
      %v728 = vld [vmem:[%s648 + $0x84] sm:$0xf]
      %v729 = vsel %vm650, %v521, %v728
      %730 = vst [vmem:[%s648 + $0x84] sm:$0xf] %v729
      %731 = vst.msk [vmem:[%s648 + $0x88] sm:$0xf] %vm172, %v530
      %v732 = vld [vmem:[%s648 + $0x8c] sm:$0x1]
      %v733 = vsel %vm183, %v531, %v732
      %734 = vst [vmem:[%s648 + $0x8c] sm:$0x1] %v733
      %v735 = vld [vmem:[%s648 + $0x90] sm:$0xf]
      %v736 = vsel %vm650, %v538, %v735
      %737 = vst [vmem:[%s648 + $0x90] sm:$0xf] %v736
      %738 = vst.msk [vmem:[%s648 + $0x94] sm:$0xf] %vm172, %v547
      %v739 = vld [vmem:[%s648 + $0x98] sm:$0x1]
      %v740 = vsel %vm183, %v548, %v739
      %741 = vst [vmem:[%s648 + $0x98] sm:$0x1] %v740
      %v742 = vld [vmem:[%s648 + $0x9c] sm:$0xf]
      %v743 = vsel %vm650, %v555, %v742
      %744 = vst [vmem:[%s648 + $0x9c] sm:$0xf] %v743
      %745 = vst.msk [vmem:[%s648 + $0xa0] sm:$0xf] %vm172, %v564
      %v746 = vld [vmem:[%s648 + $0xa4] sm:$0x1]
      %v747 = vsel %vm183, %v565, %v746
      %748 = vst [vmem:[%s648 + $0xa4] sm:$0x1] %v747
      %v749 = vld [vmem:[%s648 + $0xa8] sm:$0xf]
      %v750 = vsel %vm650, %v572, %v749
      %751 = vst [vmem:[%s648 + $0xa8] sm:$0xf] %v750
      %752 = vst.msk [vmem:[%s648 + $0xac] sm:$0xf] %vm172, %v581
      %v753 = vld [vmem:[%s648 + $0xb0] sm:$0x1]
      %v754 = vsel %vm183, %v582, %v753
      %755 = vst [vmem:[%s648 + $0xb0] sm:$0x1] %v754
      %v756 = vld [vmem:[%s648 + $0xb4] sm:$0xf]
      %v757 = vsel %vm650, %v589, %v756
      %758 = vst [vmem:[%s648 + $0xb4] sm:$0xf] %v757
      %759 = vst.msk [vmem:[%s648 + $0xb8] sm:$0xf] %vm172, %v598
      %v760 = vld [vmem:[%s648 + $0xbc] sm:$0x1]
      %v761 = vsel %vm183, %v599, %v760
      %762 = vst [vmem:[%s648 + $0xbc] sm:$0x1] %v761
      %v763 = vld [vmem:[#allocation2] sm:$0xf]
      %v764 = vld [vmem:[#allocation2 + $0x4] sm:$0xf]
      %v765 = vld [vmem:[#allocation2 + $0x8] sm:$0x1]
      %v766 = vld [vmem:[#allocation2 + $0xc] sm:$0xf]
      %v767 = vld [vmem:[#allocation2 + $0x10] sm:$0xf]
      %v768 = vld [vmem:[#allocation2 + $0x14] sm:$0x1]
      %v769 = vld [vmem:[#allocation2 + $0x18] sm:$0xf]
      %v770 = vld [vmem:[#allocation2 + $0x1c] sm:$0xf]
      %v771 = vld [vmem:[#allocation2 + $0x20] sm:$0x1]
      %v772 = vld [vmem:[#allocation2 + $0x24] sm:$0xf]
      %v773 = vld [vmem:[#allocation2 + $0x28] sm:$0xf]
      %v774 = vld [vmem:[#allocation2 + $0x2c] sm:$0x1]
      %v775 = vld [vmem:[#allocation2 + $0x30] sm:$0xf]
      %v776 = vld [vmem:[#allocation2 + $0x34] sm:$0xf]
      %v777 = vld [vmem:[#allocation2 + $0x38] sm:$0x1]
      %v778 = vld [vmem:[#allocation2 + $0x3c] sm:$0xf]
      %v779 = vld [vmem:[#allocation2 + $0x40] sm:$0xf]
      %v780 = vld [vmem:[#allocation2 + $0x44] sm:$0x1]
      %v781 = vld [vmem:[#allocation2 + $0x48] sm:$0xf]
      %v782 = vld [vmem:[#allocation2 + $0x4c] sm:$0xf]
      %v783 = vld [vmem:[#allocation2 + $0x50] sm:$0x1]
      %v784 = vld [vmem:[#allocation2 + $0x54] sm:$0xf]
      %v785 = vld [vmem:[#allocation2 + $0x58] sm:$0xf]
      %v786 = vld [vmem:[#allocation2 + $0x5c] sm:$0x1]
      %v787 = vld [vmem:[#allocation2 + $0x60] sm:$0xf]
      %v788 = vld [vmem:[#allocation2 + $0x64] sm:$0xf]
      %v789 = vld [vmem:[#allocation2 + $0x68] sm:$0x1]
      %v790 = vld [vmem:[#allocation2 + $0x6c] sm:$0xf]
      %v791 = vld [vmem:[#allocation2 + $0x70] sm:$0xf]
      %v792 = vld [vmem:[#allocation2 + $0x74] sm:$0x1]
      %v793 = vld [vmem:[#allocation2 + $0x78] sm:$0xf]
      %v794 = vld [vmem:[#allocation2 + $0x7c] sm:$0xf]
      %v795 = vld [vmem:[#allocation2 + $0x80] sm:$0x1]
      %v796 = vld [vmem:[#allocation2 + $0x84] sm:$0xf]
      %v797 = vld [vmem:[#allocation2 + $0x88] sm:$0xf]
      %v798 = vld [vmem:[#allocation2 + $0x8c] sm:$0x1]
      %v799 = vld [vmem:[#allocation2 + $0x90] sm:$0xf]
      %v800 = vld [vmem:[#allocation2 + $0x94] sm:$0xf]
      %v801 = vld [vmem:[#allocation2 + $0x98] sm:$0x1]
      %v802 = vld [vmem:[#allocation2 + $0x9c] sm:$0xf]
      %v803 = vld [vmem:[#allocation2 + $0xa0] sm:$0xf]
      %v804 = vld [vmem:[#allocation2 + $0xa4] sm:$0x1]
      %v805 = vld [vmem:[#allocation2 + $0xa8] sm:$0xf]
      %v806 = vld [vmem:[#allocation2 + $0xac] sm:$0xf]
      %v807 = vld [vmem:[#allocation2 + $0xb0] sm:$0x1]
      %v808 = vld [vmem:[#allocation2 + $0xb4] sm:$0xf]
      %v809 = vld [vmem:[#allocation2 + $0xb8] sm:$0xf]
      %v810 = vld [vmem:[#allocation2 + $0xbc] sm:$0x1]
      %v843 = vunpack.c.l.b16 %v763
      %v844 = vunpack.c.l.b16 %v764
      %v845 = vunpack.c.l.b16 %v766
      %v846 = vunpack.c.l.b16 %v767
      %v847 = vunpack.c.l.b16 %v769
      %v848 = vunpack.c.l.b16 %v770
      %v849 = vunpack.c.l.b16 %v772
      %v850 = vunpack.c.l.b16 %v773
      %v851 = vunpack.c.l.b16 %v775
      %v852 = vunpack.c.l.b16 %v776
      %v853 = vunpack.c.l.b16 %v778
      %v854 = vunpack.c.l.b16 %v779
      %v855 = vunpack.c.l.b16 %v781
      %v856 = vunpack.c.l.b16 %v782
      %v857 = vunpack.c.l.b16 %v784
      %v858 = vunpack.c.l.b16 %v785
      %v859 = vunpack.c.l.b16 %v787
      %v860 = vunpack.c.l.b16 %v788
      %v861 = vunpack.c.l.b16 %v790
      %v862 = vunpack.c.l.b16 %v791
      %v863 = vunpack.c.l.b16 %v793
      %v864 = vunpack.c.l.b16 %v794
      %v865 = vunpack.c.l.b16 %v796
      %v866 = vunpack.c.l.b16 %v797
      %v867 = vunpack.c.l.b16 %v799
      %v868 = vunpack.c.l.b16 %v800
      %v869 = vunpack.c.l.b16 %v802
      %v870 = vunpack.c.l.b16 %v803
      %v871 = vunpack.c.l.b16 %v805
      %v872 = vunpack.c.l.b16 %v806
      %v873 = vunpack.c.l.b16 %v808
      %v874 = vunpack.c.l.b16 %v809
      %v875 = vpack.c.b16 %v844, %v843
      %v876 = vpack.c.b16 %v846, %v845
      %v877 = vpack.c.b16 %v848, %v847
      %v878 = vpack.c.b16 %v850, %v849
      %v879 = vpack.c.b16 %v852, %v851
      %v880 = vpack.c.b16 %v854, %v853
      %v881 = vpack.c.b16 %v856, %v855
      %v882 = vpack.c.b16 %v858, %v857
      %v883 = vpack.c.b16 %v860, %v859
      %v884 = vpack.c.b16 %v862, %v861
      %v885 = vpack.c.b16 %v864, %v863
      %v886 = vpack.c.b16 %v866, %v865
      %v887 = vpack.c.b16 %v868, %v867
      %v888 = vpack.c.b16 %v870, %v869
      %v889 = vpack.c.b16 %v872, %v871
      %v890 = vpack.c.b16 %v874, %v873
      %v907 = vunpack.c.l.b16 %v765
      %v908 = vunpack.c.l.b16 %v768
      %v909 = vunpack.c.l.b16 %v771
      %v910 = vunpack.c.l.b16 %v774
      %v911 = vunpack.c.l.b16 %v777
      %v912 = vunpack.c.l.b16 %v780
      %v913 = vunpack.c.l.b16 %v783
      %v914 = vunpack.c.l.b16 %v786
      %v915 = vunpack.c.l.b16 %v789
      %v916 = vunpack.c.l.b16 %v792
      %v917 = vunpack.c.l.b16 %v795
      %v918 = vunpack.c.l.b16 %v798
      %v919 = vunpack.c.l.b16 %v801
      %v920 = vunpack.c.l.b16 %v804
      %v921 = vunpack.c.l.b16 %v807
      %v922 = vunpack.c.l.b16 %v810
      %v923 = vpack.c.b16 %v907, %v907
      %v924 = vpack.c.b16 %v908, %v908
      %v925 = vpack.c.b16 %v909, %v909
      %v926 = vpack.c.b16 %v910, %v910
      %v927 = vpack.c.b16 %v911, %v911
      %v928 = vpack.c.b16 %v912, %v912
      %v929 = vpack.c.b16 %v913, %v913
      %v930 = vpack.c.b16 %v914, %v914
      %v931 = vpack.c.b16 %v915, %v915
      %v932 = vpack.c.b16 %v916, %v916
      %v933 = vpack.c.b16 %v917, %v917
      %v934 = vpack.c.b16 %v918, %v918
      %v935 = vpack.c.b16 %v919, %v919
      %v936 = vpack.c.b16 %v920, %v920
      %v937 = vpack.c.b16 %v921, %v921
      %v938 = vpack.c.b16 %v922, %v922
      %vm939 = vsmask.f32 7424
      %v941 = vshrl.u32 %v875, 16
      %v943 = vshll.u32 %v875, 16
      %v945 = vrot.slane %v943, 1
      %v946 = vor.u32 %v941, %v945
      %v948 = vshll.u32 %v923, 16
      %v950 = vrot.slane %v948, 1
      %v951 = vsel %vm939, %v946, %v950
      %v953 = vshrl.u32 %v876, 16
      %v955 = vshll.u32 %v876, 16
      %v957 = vrot.slane %v955, 1
      %v958 = vor.u32 %v953, %v957
      %v960 = vshll.u32 %v924, 16
      %v962 = vrot.slane %v960, 1
      %v963 = vsel %vm939, %v958, %v962
      %v965 = vshrl.u32 %v877, 16
      %v967 = vshll.u32 %v877, 16
      %v969 = vrot.slane %v967, 1
      %v970 = vor.u32 %v965, %v969
      %v972 = vshll.u32 %v925, 16
      %v974 = vrot.slane %v972, 1
      %v975 = vsel %vm939, %v970, %v974
      %v977 = vshrl.u32 %v878, 16
      %v979 = vshll.u32 %v878, 16
      %v981 = vrot.slane %v979, 1
      %v982 = vor.u32 %v977, %v981
      %v984 = vshll.u32 %v926, 16
      %v986 = vrot.slane %v984, 1
      %v987 = vsel %vm939, %v982, %v986
      %v989 = vshrl.u32 %v879, 16
      %v991 = vshll.u32 %v879, 16
      %v993 = vrot.slane %v991, 1
      %v994 = vor.u32 %v989, %v993
      %v996 = vshll.u32 %v927, 16
      %v998 = vrot.slane %v996, 1
      %v999 = vsel %vm939, %v994, %v998
      %v1001 = vshrl.u32 %v880, 16
      %v1003 = vshll.u32 %v880, 16
      %v1005 = vrot.slane %v1003, 1
      %v1006 = vor.u32 %v1001, %v1005
      %v1008 = vshll.u32 %v928, 16
      %v1010 = vrot.slane %v1008, 1
      %v1011 = vsel %vm939, %v1006, %v1010
      %v1013 = vshrl.u32 %v881, 16
      %v1015 = vshll.u32 %v881, 16
      %v1017 = vrot.slane %v1015, 1
      %v1018 = vor.u32 %v1013, %v1017
      %v1020 = vshll.u32 %v929, 16
      %v1022 = vrot.slane %v1020, 1
      %v1023 = vsel %vm939, %v1018, %v1022
      %v1025 = vshrl.u32 %v882, 16
      %v1027 = vshll.u32 %v882, 16
      %v1029 = vrot.slane %v1027, 1
      %v1030 = vor.u32 %v1025, %v1029
      %v1032 = vshll.u32 %v930, 16
      %v1034 = vrot.slane %v1032, 1
      %v1035 = vsel %vm939, %v1030, %v1034
      %v1037 = vshrl.u32 %v883, 16
      %v1039 = vshll.u32 %v883, 16
      %v1041 = vrot.slane %v1039, 1
      %v1042 = vor.u32 %v1037, %v1041
      %v1044 = vshll.u32 %v931, 16
      %v1046 = vrot.slane %v1044, 1
      %v1047 = vsel %vm939, %v1042, %v1046
      %v1049 = vshrl.u32 %v884, 16
      %v1051 = vshll.u32 %v884, 16
      %v1053 = vrot.slane %v1051, 1
      %v1054 = vor.u32 %v1049, %v1053
      %v1056 = vshll.u32 %v932, 16
      %v1058 = vrot.slane %v1056, 1
      %v1059 = vsel %vm939, %v1054, %v1058
      %v1061 = vshrl.u32 %v885, 16
      %v1063 = vshll.u32 %v885, 16
      %v1065 = vrot.slane %v1063, 1
      %v1066 = vor.u32 %v1061, %v1065
      %v1068 = vshll.u32 %v933, 16
      %v1070 = vrot.slane %v1068, 1
      %v1071 = vsel %vm939, %v1066, %v1070
      %v1073 = vshrl.u32 %v886, 16
      %v1075 = vshll.u32 %v886, 16
      %v1077 = vrot.slane %v1075, 1
      %v1078 = vor.u32 %v1073, %v1077
      %v1080 = vshll.u32 %v934, 16
      %v1082 = vrot.slane %v1080, 1
      %v1083 = vsel %vm939, %v1078, %v1082
      %v1085 = vshrl.u32 %v887, 16
      %v1087 = vshll.u32 %v887, 16
      %v1089 = vrot.slane %v1087, 1
      %v1090 = vor.u32 %v1085, %v1089
      %v1092 = vshll.u32 %v935, 16
      %v1094 = vrot.slane %v1092, 1
      %v1095 = vsel %vm939, %v1090, %v1094
      %v1097 = vshrl.u32 %v888, 16
      %v1099 = vshll.u32 %v888, 16
      %v1101 = vrot.slane %v1099, 1
      %v1102 = vor.u32 %v1097, %v1101
      %v1104 = vshll.u32 %v936, 16
      %v1106 = vrot.slane %v1104, 1
      %v1107 = vsel %vm939, %v1102, %v1106
      %v1109 = vshrl.u32 %v889, 16
      %v1111 = vshll.u32 %v889, 16
      %v1113 = vrot.slane %v1111, 1
      %v1114 = vor.u32 %v1109, %v1113
      %v1116 = vshll.u32 %v937, 16
      %v1118 = vrot.slane %v1116, 1
      %v1119 = vsel %vm939, %v1114, %v1118
      %v1121 = vshrl.u32 %v890, 16
      %v1123 = vshll.u32 %v890, 16
      %v1125 = vrot.slane %v1123, 1
      %v1126 = vor.u32 %v1121, %v1125
      %v1128 = vshll.u32 %v938, 16
      %v1130 = vrot.slane %v1128, 1
      %v1131 = vsel %vm939, %v1126, %v1130
      %1132 = vrot.lane.b32.xlu0 %v951, 64
      %v1133 = vpop.permute.xlu0 %1132
      %1134 = vrot.lane.b32.xlu0 %v963, 64
      %v1135 = vpop.permute.xlu0 %1134
      %1136 = vrot.lane.b32.xlu0 %v975, 64
      %v1137 = vpop.permute.xlu0 %1136
      %1138 = vrot.lane.b32.xlu0 %v987, 64
      %v1139 = vpop.permute.xlu0 %1138
      %1140 = vrot.lane.b32.xlu0 %v999, 64
      %v1141 = vpop.permute.xlu0 %1140
      %1142 = vrot.lane.b32.xlu0 %v1011, 64
      %v1143 = vpop.permute.xlu0 %1142
      %1144 = vrot.lane.b32.xlu0 %v1023, 64
      %v1145 = vpop.permute.xlu0 %1144
      %1146 = vrot.lane.b32.xlu0 %v1035, 64
      %v1147 = vpop.permute.xlu0 %1146
      %1148 = vrot.lane.b32.xlu0 %v1047, 64
      %v1149 = vpop.permute.xlu0 %1148
      %1150 = vrot.lane.b32.xlu0 %v1059, 64
      %v1151 = vpop.permute.xlu0 %1150
      %1152 = vrot.lane.b32.xlu0 %v1071, 64
      %v1153 = vpop.permute.xlu0 %1152
      %1154 = vrot.lane.b32.xlu0 %v1083, 64
      %v1155 = vpop.permute.xlu0 %1154
      %1156 = vrot.lane.b32.xlu0 %v1095, 64
      %v1157 = vpop.permute.xlu0 %1156
      %1158 = vrot.lane.b32.xlu0 %v1107, 64
      %v1159 = vpop.permute.xlu0 %1158
      %1160 = vrot.lane.b32.xlu0 %v1119, 64
      %v1161 = vpop.permute.xlu0 %1160
      %1162 = vrot.lane.b32.xlu0 %v1131, 64
      %v1163 = vpop.permute.xlu0 %1162
      %vm1164 = vcmask 1046528
      %v1165 = vrot.slane %v875, 1
      %v1166 = vrot.slane %v923, 1
      %v1167 = vsel %vm1164, %v1165, %v1166
      %v1168 = vrot.slane %v876, 1
      %v1169 = vrot.slane %v924, 1
      %v1170 = vsel %vm1164, %v1168, %v1169
      %v1171 = vrot.slane %v877, 1
      %v1172 = vrot.slane %v925, 1
      %v1173 = vsel %vm1164, %v1171, %v1172
      %v1174 = vrot.slane %v878, 1
      %v1175 = vrot.slane %v926, 1
      %v1176 = vsel %vm1164, %v1174, %v1175
      %v1177 = vrot.slane %v879, 1
      %v1178 = vrot.slane %v927, 1
      %v1179 = vsel %vm1164, %v1177, %v1178
      %v1180 = vrot.slane %v880, 1
      %v1181 = vrot.slane %v928, 1
      %v1182 = vsel %vm1164, %v1180, %v1181
      %v1183 = vrot.slane %v881, 1
      %v1184 = vrot.slane %v929, 1
      %v1185 = vsel %vm1164, %v1183, %v1184
      %v1186 = vrot.slane %v882, 1
      %v1187 = vrot.slane %v930, 1
      %v1188 = vsel %vm1164, %v1186, %v1187
      %v1189 = vrot.slane %v883, 1
      %v1190 = vrot.slane %v931, 1
      %v1191 = vsel %vm1164, %v1189, %v1190
      %v1192 = vrot.slane %v884, 1
      %v1193 = vrot.slane %v932, 1
      %v1194 = vsel %vm1164, %v1192, %v1193
      %v1195 = vrot.slane %v885, 1
      %v1196 = vrot.slane %v933, 1
      %v1197 = vsel %vm1164, %v1195, %v1196
      %v1198 = vrot.slane %v886, 1
      %v1199 = vrot.slane %v934, 1
      %v1200 = vsel %vm1164, %v1198, %v1199
      %v1201 = vrot.slane %v887, 1
      %v1202 = vrot.slane %v935, 1
      %v1203 = vsel %vm1164, %v1201, %v1202
      %v1204 = vrot.slane %v888, 1
      %v1205 = vrot.slane %v936, 1
      %v1206 = vsel %vm1164, %v1204, %v1205
      %v1207 = vrot.slane %v889, 1
      %v1208 = vrot.slane %v937, 1
      %v1209 = vsel %vm1164, %v1207, %v1208
      %v1210 = vrot.slane %v890, 1
      %v1211 = vrot.slane %v938, 1
      %v1212 = vsel %vm1164, %v1210, %v1211
      %vm1213 = vcmask 523264
      %v1215 = vsel %vm1213, %v875, %v1133
      %v1218 = vsel %vm1213, %v876, %v1135
      %v1221 = vsel %vm1213, %v877, %v1137
      %v1224 = vsel %vm1213, %v878, %v1139
      %v1227 = vsel %vm1213, %v879, %v1141
      %v1230 = vsel %vm1213, %v880, %v1143
      %v1233 = vsel %vm1213, %v881, %v1145
      %v1236 = vsel %vm1213, %v882, %v1147
      %v1239 = vsel %vm1213, %v883, %v1149
      %v1242 = vsel %vm1213, %v884, %v1151
      %v1245 = vsel %vm1213, %v885, %v1153
      %v1248 = vsel %vm1213, %v886, %v1155
      %v1251 = vsel %vm1213, %v887, %v1157
      %v1254 = vsel %vm1213, %v888, %v1159
      %v1257 = vsel %vm1213, %v889, %v1161
      %v1260 = vsel %vm1213, %v890, %v1163
      %v1262 = vld [vmem:[%s1] sm:$0xf]
      %v1263 = vld [vmem:[%s1 + $0x4] sm:$0xf]
      %v1264 = vld [vmem:[%s1 + $0x8] sm:$0xf]
      %v1265 = vld [vmem:[%s1 + $0xc] sm:$0xf]
      %v1266 = vld [vmem:[%s1 + $0x10] sm:$0xf]
      %v1267 = vld [vmem:[%s1 + $0x14] sm:$0xf]
      %v1268 = vld [vmem:[%s1 + $0x18] sm:$0xf]
      %v1269 = vld [vmem:[%s1 + $0x1c] sm:$0xf]
      %v1270 = vld [vmem:[%s1 + $0x20] sm:$0xf]
      %v1271 = vld [vmem:[%s1 + $0x24] sm:$0xf]
      %v1272 = vld [vmem:[%s1 + $0x28] sm:$0xf]
      %v1273 = vld [vmem:[%s1 + $0x2c] sm:$0xf]
      %v1274 = vld [vmem:[%s1 + $0x30] sm:$0xf]
      %v1275 = vld [vmem:[%s1 + $0x34] sm:$0xf]
      %v1276 = vld [vmem:[%s1 + $0x38] sm:$0xf]
      %v1277 = vld [vmem:[%s1 + $0x3c] sm:$0xf]
      %v1278 = vld [vmem:[%s1 + $0x40] sm:$0xf]
      %v1279 = vld [vmem:[%s1 + $0x44] sm:$0xf]
      %v1280 = vld [vmem:[%s1 + $0x48] sm:$0xf]
      %v1281 = vld [vmem:[%s1 + $0x4c] sm:$0xf]
      %v1282 = vld [vmem:[%s1 + $0x50] sm:$0xf]
      %v1283 = vld [vmem:[%s1 + $0x54] sm:$0xf]
      %v1284 = vld [vmem:[%s1 + $0x58] sm:$0xf]
      %v1285 = vld [vmem:[%s1 + $0x5c] sm:$0xf]
      %v1286 = vld [vmem:[%s648] sm:$0xf]
      %v1287 = vld [vmem:[%s648 + $0x4] sm:$0xf]
      %v1288 = vld [vmem:[%s648 + $0x8] sm:$0x1]
      %v1289 = vld [vmem:[%s648 + $0xc] sm:$0xf]
      %v1290 = vld [vmem:[%s648 + $0x10] sm:$0xf]
      %v1291 = vld [vmem:[%s648 + $0x14] sm:$0x1]
      %v1292 = vld [vmem:[%s648 + $0x18] sm:$0xf]
      %v1293 = vld [vmem:[%s648 + $0x1c] sm:$0xf]
      %v1294 = vld [vmem:[%s648 + $0x20] sm:$0x1]
      %v1295 = vld [vmem:[%s648 + $0x24] sm:$0xf]
      %v1296 = vld [vmem:[%s648 + $0x28] sm:$0xf]
      %v1297 = vld [vmem:[%s648 + $0x2c] sm:$0x1]
      %v1298 = vld [vmem:[%s648 + $0x30] sm:$0xf]
      %v1299 = vld [vmem:[%s648 + $0x34] sm:$0xf]
      %v1300 = vld [vmem:[%s648 + $0x38] sm:$0x1]
      %v1301 = vld [vmem:[%s648 + $0x3c] sm:$0xf]
      %v1302 = vld [vmem:[%s648 + $0x40] sm:$0xf]
      %v1303 = vld [vmem:[%s648 + $0x44] sm:$0x1]
      %v1304 = vld [vmem:[%s648 + $0x48] sm:$0xf]
      %v1305 = vld [vmem:[%s648 + $0x4c] sm:$0xf]
      %v1306 = vld [vmem:[%s648 + $0x50] sm:$0x1]
      %v1307 = vld [vmem:[%s648 + $0x54] sm:$0xf]
      %v1308 = vld [vmem:[%s648 + $0x58] sm:$0xf]
      %v1309 = vld [vmem:[%s648 + $0x5c] sm:$0x1]
      %v1310 = vld [vmem:[%s648 + $0x60] sm:$0xf]
      %v1311 = vld [vmem:[%s648 + $0x64] sm:$0xf]
      %v1312 = vld [vmem:[%s648 + $0x68] sm:$0x1]
      %v1313 = vld [vmem:[%s648 + $0x6c] sm:$0xf]
      %v1314 = vld [vmem:[%s648 + $0x70] sm:$0xf]
      %v1315 = vld [vmem:[%s648 + $0x74] sm:$0x1]
      %v1316 = vld [vmem:[%s648 + $0x78] sm:$0xf]
      %v1317 = vld [vmem:[%s648 + $0x7c] sm:$0xf]
      %v1318 = vld [vmem:[%s648 + $0x80] sm:$0x1]
      %v1319 = vld [vmem:[%s648 + $0x84] sm:$0xf]
      %v1320 = vld [vmem:[%s648 + $0x88] sm:$0xf]
      %v1321 = vld [vmem:[%s648 + $0x8c] sm:$0x1]
      %v1322 = vld [vmem:[%s648 + $0x90] sm:$0xf]
      %v1323 = vld [vmem:[%s648 + $0x94] sm:$0xf]
      %v1324 = vld [vmem:[%s648 + $0x98] sm:$0x1]
      %v1325 = vld [vmem:[%s648 + $0x9c] sm:$0xf]
      %v1326 = vld [vmem:[%s648 + $0xa0] sm:$0xf]
      %v1327 = vld [vmem:[%s648 + $0xa4] sm:$0x1]
      %v1328 = vld [vmem:[%s648 + $0xa8] sm:$0xf]
      %v1329 = vld [vmem:[%s648 + $0xac] sm:$0xf]
      %v1330 = vld [vmem:[%s648 + $0xb0] sm:$0x1]
      %v1331 = vld [vmem:[%s648 + $0xb4] sm:$0xf]
      %v1332 = vld [vmem:[%s648 + $0xb8] sm:$0xf]
      %v1333 = vld [vmem:[%s648 + $0xbc] sm:$0x1]
      %v1366 = vunpack.c.l.b16 %v1286
      %v1367 = vunpack.c.l.b16 %v1287
      %v1368 = vunpack.c.l.b16 %v1289
      %v1369 = vunpack.c.l.b16 %v1290
      %v1370 = vunpack.c.l.b16 %v1292
      %v1371 = vunpack.c.l.b16 %v1293
      %v1372 = vunpack.c.l.b16 %v1295
      %v1373 = vunpack.c.l.b16 %v1296
      %v1374 = vunpack.c.l.b16 %v1298
      %v1375 = vunpack.c.l.b16 %v1299
      %v1376 = vunpack.c.l.b16 %v1301
      %v1377 = vunpack.c.l.b16 %v1302
      %v1378 = vunpack.c.l.b16 %v1304
      %v1379 = vunpack.c.l.b16 %v1305
      %v1380 = vunpack.c.l.b16 %v1307
      %v1381 = vunpack.c.l.b16 %v1308
      %v1382 = vunpack.c.l.b16 %v1310
      %v1383 = vunpack.c.l.b16 %v1311
      %v1384 = vunpack.c.l.b16 %v1313
      %v1385 = vunpack.c.l.b16 %v1314
      %v1386 = vunpack.c.l.b16 %v1316
      %v1387 = vunpack.c.l.b16 %v1317
      %v1388 = vunpack.c.l.b16 %v1319
      %v1389 = vunpack.c.l.b16 %v1320
      %v1390 = vunpack.c.l.b16 %v1322
      %v1391 = vunpack.c.l.b16 %v1323
      %v1392 = vunpack.c.l.b16 %v1325
      %v1393 = vunpack.c.l.b16 %v1326
      %v1394 = vunpack.c.l.b16 %v1328
      %v1395 = vunpack.c.l.b16 %v1329
      %v1396 = vunpack.c.l.b16 %v1331
      %v1397 = vunpack.c.l.b16 %v1332
      %v1398 = vpack.c.b16 %v1367, %v1366
      %v1399 = vpack.c.b16 %v1369, %v1368
      %v1400 = vpack.c.b16 %v1371, %v1370
      %v1401 = vpack.c.b16 %v1373, %v1372
      %v1402 = vpack.c.b16 %v1375, %v1374
      %v1403 = vpack.c.b16 %v1377, %v1376
      %v1404 = vpack.c.b16 %v1379, %v1378
      %v1405 = vpack.c.b16 %v1381, %v1380
      %v1406 = vpack.c.b16 %v1383, %v1382
      %v1407 = vpack.c.b16 %v1385, %v1384
      %v1408 = vpack.c.b16 %v1387, %v1386
      %v1409 = vpack.c.b16 %v1389, %v1388
      %v1410 = vpack.c.b16 %v1391, %v1390
      %v1411 = vpack.c.b16 %v1393, %v1392
      %v1412 = vpack.c.b16 %v1395, %v1394
      %v1413 = vpack.c.b16 %v1397, %v1396
      %v1430 = vunpack.c.l.b16 %v1288
      %v1431 = vunpack.c.l.b16 %v1291
      %v1432 = vunpack.c.l.b16 %v1294
      %v1433 = vunpack.c.l.b16 %v1297
      %v1434 = vunpack.c.l.b16 %v1300
      %v1435 = vunpack.c.l.b16 %v1303
      %v1436 = vunpack.c.l.b16 %v1306
      %v1437 = vunpack.c.l.b16 %v1309
      %v1438 = vunpack.c.l.b16 %v1312
      %v1439 = vunpack.c.l.b16 %v1315
      %v1440 = vunpack.c.l.b16 %v1318
      %v1441 = vunpack.c.l.b16 %v1321
      %v1442 = vunpack.c.l.b16 %v1324
      %v1443 = vunpack.c.l.b16 %v1327
      %v1444 = vunpack.c.l.b16 %v1330
      %v1445 = vunpack.c.l.b16 %v1333
      %v1446 = vpack.c.b16 %v1430, %v1430
      %v1447 = vpack.c.b16 %v1431, %v1431
      %v1448 = vpack.c.b16 %v1432, %v1432
      %v1449 = vpack.c.b16 %v1433, %v1433
      %v1450 = vpack.c.b16 %v1434, %v1434
      %v1451 = vpack.c.b16 %v1435, %v1435
      %v1452 = vpack.c.b16 %v1436, %v1436
      %v1453 = vpack.c.b16 %v1437, %v1437
      %v1454 = vpack.c.b16 %v1438, %v1438
      %v1455 = vpack.c.b16 %v1439, %v1439
      %v1456 = vpack.c.b16 %v1440, %v1440
      %v1457 = vpack.c.b16 %v1441, %v1441
      %v1458 = vpack.c.b16 %v1442, %v1442
      %v1459 = vpack.c.b16 %v1443, %v1443
      %v1460 = vpack.c.b16 %v1444, %v1444
      %v1461 = vpack.c.b16 %v1445, %v1445
      %v1463 = vshrl.u32 %v1398, 16
      %v1465 = vshll.u32 %v1398, 16
      %v1467 = vrot.slane %v1465, 1
      %v1468 = vor.u32 %v1463, %v1467
      %v1470 = vshll.u32 %v1446, 16
      %v1472 = vrot.slane %v1470, 1
      %v1473 = vsel %vm939, %v1468, %v1472
      %v1475 = vshrl.u32 %v1399, 16
      %v1477 = vshll.u32 %v1399, 16
      %v1479 = vrot.slane %v1477, 1
      %v1480 = vor.u32 %v1475, %v1479
      %v1482 = vshll.u32 %v1447, 16
      %v1484 = vrot.slane %v1482, 1
      %v1485 = vsel %vm939, %v1480, %v1484
      %v1487 = vshrl.u32 %v1400, 16
      %v1489 = vshll.u32 %v1400, 16
      %v1491 = vrot.slane %v1489, 1
      %v1492 = vor.u32 %v1487, %v1491
      %v1494 = vshll.u32 %v1448, 16
      %v1496 = vrot.slane %v1494, 1
      %v1497 = vsel %vm939, %v1492, %v1496
      %v1499 = vshrl.u32 %v1401, 16
      %v1501 = vshll.u32 %v1401, 16
      %v1503 = vrot.slane %v1501, 1
      %v1504 = vor.u32 %v1499, %v1503
      %v1506 = vshll.u32 %v1449, 16
      %v1508 = vrot.slane %v1506, 1
      %v1509 = vsel %vm939, %v1504, %v1508
      %v1511 = vshrl.u32 %v1402, 16
      %v1513 = vshll.u32 %v1402, 16
      %v1515 = vrot.slane %v1513, 1
      %v1516 = vor.u32 %v1511, %v1515
      %v1518 = vshll.u32 %v1450, 16
      %v1520 = vrot.slane %v1518, 1
      %v1521 = vsel %vm939, %v1516, %v1520
      %v1523 = vshrl.u32 %v1403, 16
      %v1525 = vshll.u32 %v1403, 16
      %v1527 = vrot.slane %v1525, 1
      %v1528 = vor.u32 %v1523, %v1527
      %v1530 = vshll.u32 %v1451, 16
      %v1532 = vrot.slane %v1530, 1
      %v1533 = vsel %vm939, %v1528, %v1532
      %v1535 = vshrl.u32 %v1404, 16
      %v1537 = vshll.u32 %v1404, 16
      %v1539 = vrot.slane %v1537, 1
      %v1540 = vor.u32 %v1535, %v1539
      %v1542 = vshll.u32 %v1452, 16
      %v1544 = vrot.slane %v1542, 1
      %v1545 = vsel %vm939, %v1540, %v1544
      %v1547 = vshrl.u32 %v1405, 16
      %v1549 = vshll.u32 %v1405, 16
      %v1551 = vrot.slane %v1549, 1
      %v1552 = vor.u32 %v1547, %v1551
      %v1554 = vshll.u32 %v1453, 16
      %v1556 = vrot.slane %v1554, 1
      %v1557 = vsel %vm939, %v1552, %v1556
      %v1559 = vshrl.u32 %v1406, 16
      %v1561 = vshll.u32 %v1406, 16
      %v1563 = vrot.slane %v1561, 1
      %v1564 = vor.u32 %v1559, %v1563
      %v1566 = vshll.u32 %v1454, 16
      %v1568 = vrot.slane %v1566, 1
      %v1569 = vsel %vm939, %v1564, %v1568
      %v1571 = vshrl.u32 %v1407, 16
      %v1573 = vshll.u32 %v1407, 16
      %v1575 = vrot.slane %v1573, 1
      %v1576 = vor.u32 %v1571, %v1575
      %v1578 = vshll.u32 %v1455, 16
      %v1580 = vrot.slane %v1578, 1
      %v1581 = vsel %vm939, %v1576, %v1580
      %v1583 = vshrl.u32 %v1408, 16
      %v1585 = vshll.u32 %v1408, 16
      %v1587 = vrot.slane %v1585, 1
      %v1588 = vor.u32 %v1583, %v1587
      %v1590 = vshll.u32 %v1456, 16
      %v1592 = vrot.slane %v1590, 1
      %v1593 = vsel %vm939, %v1588, %v1592
      %v1595 = vshrl.u32 %v1409, 16
      %v1597 = vshll.u32 %v1409, 16
      %v1599 = vrot.slane %v1597, 1
      %v1600 = vor.u32 %v1595, %v1599
      %v1602 = vshll.u32 %v1457, 16
      %v1604 = vrot.slane %v1602, 1
      %v1605 = vsel %vm939, %v1600, %v1604
      %v1607 = vshrl.u32 %v1410, 16
      %v1609 = vshll.u32 %v1410, 16
      %v1611 = vrot.slane %v1609, 1
      %v1612 = vor.u32 %v1607, %v1611
      %v1614 = vshll.u32 %v1458, 16
      %v1616 = vrot.slane %v1614, 1
      %v1617 = vsel %vm939, %v1612, %v1616
      %v1619 = vshrl.u32 %v1411, 16
      %v1621 = vshll.u32 %v1411, 16
      %v1623 = vrot.slane %v1621, 1
      %v1624 = vor.u32 %v1619, %v1623
      %v1626 = vshll.u32 %v1459, 16
      %v1628 = vrot.slane %v1626, 1
      %v1629 = vsel %vm939, %v1624, %v1628
      %v1631 = vshrl.u32 %v1412, 16
      %v1633 = vshll.u32 %v1412, 16
      %v1635 = vrot.slane %v1633, 1
      %v1636 = vor.u32 %v1631, %v1635
      %v1638 = vshll.u32 %v1460, 16
      %v1640 = vrot.slane %v1638, 1
      %v1641 = vsel %vm939, %v1636, %v1640
      %v1643 = vshrl.u32 %v1413, 16
      %v1645 = vshll.u32 %v1413, 16
      %v1647 = vrot.slane %v1645, 1
      %v1648 = vor.u32 %v1643, %v1647
      %v1650 = vshll.u32 %v1461, 16
      %v1652 = vrot.slane %v1650, 1
      %v1653 = vsel %vm939, %v1648, %v1652
      %1654 = vrot.lane.b32.xlu0 %v1473, 64
      %v1655 = vpop.permute.xlu0 %1654
      %1656 = vrot.lane.b32.xlu0 %v1485, 64
      %v1657 = vpop.permute.xlu0 %1656
      %1658 = vrot.lane.b32.xlu0 %v1497, 64
      %v1659 = vpop.permute.xlu0 %1658
      %1660 = vrot.lane.b32.xlu0 %v1509, 64
      %v1661 = vpop.permute.xlu0 %1660
      %1662 = vrot.lane.b32.xlu0 %v1521, 64
      %v1663 = vpop.permute.xlu0 %1662
      %1664 = vrot.lane.b32.xlu0 %v1533, 64
      %v1665 = vpop.permute.xlu0 %1664
      %1666 = vrot.lane.b32.xlu0 %v1545, 64
      %v1667 = vpop.permute.xlu0 %1666
      %1668 = vrot.lane.b32.xlu0 %v1557, 64
      %v1669 = vpop.permute.xlu0 %1668
      %1670 = vrot.lane.b32.xlu0 %v1569, 64
      %v1671 = vpop.permute.xlu0 %1670
      %1672 = vrot.lane.b32.xlu0 %v1581, 64
      %v1673 = vpop.permute.xlu0 %1672
      %1674 = vrot.lane.b32.xlu0 %v1593, 64
      %v1675 = vpop.permute.xlu0 %1674
      %1676 = vrot.lane.b32.xlu0 %v1605, 64
      %v1677 = vpop.permute.xlu0 %1676
      %1678 = vrot.lane.b32.xlu0 %v1617, 64
      %v1679 = vpop.permute.xlu0 %1678
      %1680 = vrot.lane.b32.xlu0 %v1629, 64
      %v1681 = vpop.permute.xlu0 %1680
      %1682 = vrot.lane.b32.xlu0 %v1641, 64
      %v1683 = vpop.permute.xlu0 %1682
      %1684 = vrot.lane.b32.xlu0 %v1653, 64
      %v1685 = vpop.permute.xlu0 %1684
      %v1686 = vrot.slane %v1398, 1
      %v1687 = vrot.slane %v1446, 1
      %v1688 = vsel %vm1164, %v1686, %v1687
      %v1689 = vrot.slane %v1399, 1
      %v1690 = vrot.slane %v1447, 1
      %v1691 = vsel %vm1164, %v1689, %v1690
      %v1692 = vrot.slane %v1400, 1
      %v1693 = vrot.slane %v1448, 1
      %v1694 = vsel %vm1164, %v1692, %v1693
      %v1695 = vrot.slane %v1401, 1
      %v1696 = vrot.slane %v1449, 1
      %v1697 = vsel %vm1164, %v1695, %v1696
      %v1698 = vrot.slane %v1402, 1
      %v1699 = vrot.slane %v1450, 1
      %v1700 = vsel %vm1164, %v1698, %v1699
      %v1701 = vrot.slane %v1403, 1
      %v1702 = vrot.slane %v1451, 1
      %v1703 = vsel %vm1164, %v1701, %v1702
      %v1704 = vrot.slane %v1404, 1
      %v1705 = vrot.slane %v1452, 1
      %v1706 = vsel %vm1164, %v1704, %v1705
      %v1707 = vrot.slane %v1405, 1
      %v1708 = vrot.slane %v1453, 1
      %v1709 = vsel %vm1164, %v1707, %v1708
      %v1710 = vrot.slane %v1406, 1
      %v1711 = vrot.slane %v1454, 1
      %v1712 = vsel %vm1164, %v1710, %v1711
      %v1713 = vrot.slane %v1407, 1
      %v1714 = vrot.slane %v1455, 1
      %v1715 = vsel %vm1164, %v1713, %v1714
      %v1716 = vrot.slane %v1408, 1
      %v1717 = vrot.slane %v1456, 1
      %v1718 = vsel %vm1164, %v1716, %v1717
      %v1719 = vrot.slane %v1409, 1
      %v1720 = vrot.slane %v1457, 1
      %v1721 = vsel %vm1164, %v1719, %v1720
      %v1722 = vrot.slane %v1410, 1
      %v1723 = vrot.slane %v1458, 1
      %v1724 = vsel %vm1164, %v1722, %v1723
      %v1725 = vrot.slane %v1411, 1
      %v1726 = vrot.slane %v1459, 1
      %v1727 = vsel %vm1164, %v1725, %v1726
      %v1728 = vrot.slane %v1412, 1
      %v1729 = vrot.slane %v1460, 1
      %v1730 = vsel %vm1164, %v1728, %v1729
      %v1731 = vrot.slane %v1413, 1
      %v1732 = vrot.slane %v1461, 1
      %v1733 = vsel %vm1164, %v1731, %v1732
      %v1735 = vsel %vm1213, %v1398, %v1655
      %v1738 = vsel %vm1213, %v1399, %v1657
      %v1741 = vsel %vm1213, %v1400, %v1659
      %v1744 = vsel %vm1213, %v1401, %v1661
      %v1747 = vsel %vm1213, %v1402, %v1663
      %v1750 = vsel %vm1213, %v1403, %v1665
      %v1753 = vsel %vm1213, %v1404, %v1667
      %v1756 = vsel %vm1213, %v1405, %v1669
      %v1759 = vsel %vm1213, %v1406, %v1671
      %v1762 = vsel %vm1213, %v1407, %v1673
      %v1765 = vsel %vm1213, %v1408, %v1675
      %v1768 = vsel %vm1213, %v1409, %v1677
      %v1771 = vsel %vm1213, %v1410, %v1679
      %v1774 = vsel %vm1213, %v1411, %v1681
      %v1777 = vsel %vm1213, %v1412, %v1683
      %v1780 = vsel %vm1213, %v1413, %v1685
      %s1782 = scalar_lea.vmem %s1, 96
      %v1783 = vld [vmem:[%s1782] sm:$0xf]
      %v1784 = vld [vmem:[%s1782 + $0x4] sm:$0xf]
      %v1785 = vld [vmem:[%s1782 + $0x8] sm:$0xf]
      %v1786 = vld [vmem:[%s1782 + $0xc] sm:$0xf]
      %v1787 = vld [vmem:[%s1782 + $0x10] sm:$0xf]
      %v1788 = vld [vmem:[%s1782 + $0x14] sm:$0xf]
      %v1789 = vld [vmem:[%s1782 + $0x18] sm:$0xf]
      %v1790 = vld [vmem:[%s1782 + $0x1c] sm:$0xf]
      %v1791 = vld [vmem:[%s1782 + $0x20] sm:$0xf]
      %v1792 = vld [vmem:[%s1782 + $0x24] sm:$0xf]
      %v1793 = vld [vmem:[%s1782 + $0x28] sm:$0xf]
      %v1794 = vld [vmem:[%s1782 + $0x2c] sm:$0xf]
      %v1795 = vld [vmem:[%s1782 + $0x30] sm:$0xf]
      %v1796 = vld [vmem:[%s1782 + $0x34] sm:$0xf]
      %v1797 = vld [vmem:[%s1782 + $0x38] sm:$0xf]
      %v1798 = vld [vmem:[%s1782 + $0x3c] sm:$0xf]
      %v1799 = vld [vmem:[%s1782 + $0x40] sm:$0xf]
      %v1800 = vld [vmem:[%s1782 + $0x44] sm:$0xf]
      %v1801 = vld [vmem:[%s1782 + $0x48] sm:$0xf]
      %v1802 = vld [vmem:[%s1782 + $0x4c] sm:$0xf]
      %v1803 = vld [vmem:[%s1782 + $0x50] sm:$0xf]
      %v1804 = vld [vmem:[%s1782 + $0x54] sm:$0xf]
      %v1805 = vld [vmem:[%s1782 + $0x58] sm:$0xf]
      %v1806 = vld [vmem:[%s1782 + $0x5c] sm:$0xf]
      %v1831 = vunpack.c.l.b16 %v1783
      %v1832 = vunpack.c.l.b16 %v1784
      %v1833 = vunpack.c.l.b16 %v1785
      %v1834 = vunpack.c.l.b16 %v1786
      %v1835 = vunpack.c.l.b16 %v1787
      %v1836 = vunpack.c.l.b16 %v1788
      %v1837 = vunpack.c.l.b16 %v1789
      %v1838 = vunpack.c.l.b16 %v1790
      %v1839 = vunpack.c.l.b16 %v1791
      %v1840 = vunpack.c.l.b16 %v1792
      %v1841 = vunpack.c.l.b16 %v1793
      %v1842 = vunpack.c.l.b16 %v1794
      %v1843 = vunpack.c.l.b16 %v1795
      %v1844 = vunpack.c.l.b16 %v1796
      %v1845 = vunpack.c.l.b16 %v1797
      %v1846 = vunpack.c.l.b16 %v1798
      %v1847 = vunpack.c.l.b16 %v1799
      %v1848 = vunpack.c.l.b16 %v1800
      %v1849 = vunpack.c.l.b16 %v1801
      %v1850 = vunpack.c.l.b16 %v1802
      %v1851 = vunpack.c.l.b16 %v1803
      %v1852 = vunpack.c.l.b16 %v1804
      %v1853 = vunpack.c.l.b16 %v1805
      %v1854 = vunpack.c.l.b16 %v1806
      %v1855 = vpack.c.b16 %v1832, %v1831
      %v1856 = vpack.c.b16 %v1834, %v1833
      %v1857 = vpack.c.b16 %v1836, %v1835
      %v1858 = vpack.c.b16 %v1838, %v1837
      %v1859 = vpack.c.b16 %v1840, %v1839
      %v1860 = vpack.c.b16 %v1842, %v1841
      %v1861 = vpack.c.b16 %v1844, %v1843
      %v1862 = vpack.c.b16 %v1846, %v1845
      %v1863 = vpack.c.b16 %v1848, %v1847
      %v1864 = vpack.c.b16 %v1850, %v1849
      %v1865 = vpack.c.b16 %v1852, %v1851
      %v1866 = vpack.c.b16 %v1854, %v1853
      %v1880 = vsel %vm1213, %v1688, 0
      %v1883 = vsel %vm1213, %v1691, 0
      %v1886 = vsel %vm1213, %v1694, 0
      %v1889 = vsel %vm1213, %v1697, 0
      %v1892 = vsel %vm1213, %v1700, 0
      %v1895 = vsel %vm1213, %v1703, 0
      %v1898 = vsel %vm1213, %v1706, 0
      %v1901 = vsel %vm1213, %v1709, 0
      %v1904 = vsel %vm1213, %v1712, 0
      %v1907 = vsel %vm1213, %v1715, 0
      %v1910 = vsel %vm1213, %v1718, 0
      %v1913 = vsel %vm1213, %v1721, 0
      %v1916 = vsel %vm1213, %v1724, 0
      %v1919 = vsel %vm1213, %v1727, 0
      %v1922 = vsel %vm1213, %v1730, 0
      %v1925 = vsel %vm1213, %v1733, 0
      %1927 = vmatprep.subr.bf16.mxu0 0
      %1928 = vmatpush1.bf16.msra.mxu0 %v1855
      %1929 = vmatprep.subr.bf16.mxu0 0
      %1930 = vmatpush1.bf16.msra.mxu0 %v1856
      %1931 = vmatprep.subr.bf16.mxu0 0
      %1932 = vmatpush1.bf16.msra.mxu0 %v1857
      %1933 = vmatprep.subr.bf16.mxu0 0
      %1934 = vmatpush1.bf16.msra.mxu0 %v1858
      %1935 = vmatprep.subr.bf16.mxu0 0
      %1936 = vmatpush1.bf16.msra.mxu0 %v1859
      %1937 = vmatprep.subr.bf16.mxu0 0
      %1938 = vmatpush1.bf16.msra.mxu0 %v1860
      %1939 = vmatprep.subr.bf16.mxu0 0
      %1940 = vmatpush1.bf16.msra.mxu0 %v1861
      %1941 = vmatprep.subr.bf16.mxu0 0
      %1942 = vmatpush1.bf16.msra.mxu0 %v1862
      %1943 = vmatprep.subr.bf16.mxu0 0
      %1944 = vmatpush1.bf16.msra.mxu0 %v1863
      %1945 = vmatprep.subr.bf16.mxu0 0
      %1946 = vmatpush1.bf16.msra.mxu0 %v1864
      %1947 = vmatprep.subr.bf16.mxu0 0
      %1948 = vmatpush1.bf16.msra.mxu0 %v1865
      %1949 = vmatprep.subr.bf16.mxu0 0
      %1950 = vmatpush1.bf16.msra.mxu0 %v1866
      %1951 = vmatprep.subr.bf16.mxu0 0
      %1952 = vmatpush1.bf16.msra.mxu0 0
      %1953 = vmatprep.subr.bf16.mxu0 0
      %1954 = vmatpush1.bf16.msra.mxu0 0
      %1955 = vmatprep.subr.bf16.mxu0 0
      %1956 = vmatpush1.bf16.msra.mxu0 0
      %1957 = vmatprep.subr.bf16.mxu0 0
      %1958 = vmatpush1.bf16.msra.mxu0 0
      %1959 = vmatprep.mubr.bf16.mxu0 %v1880
      %1960 = vmatmul.mubr.bf16.gmra.mrb[0].mxu0 %v1735
      %v1961 = vpop.f32.mrb[0].mxu0
      %v1962 = vadd.f32 0.0, %v1961
      %v1963 = vpop.f32.mrb[0].mxu0
      %v1964 = vpop.f32.mrb[0].mxu0
      %v1965 = vadd.f32 0.0, %v1964
      %v1966 = vpop.f32.mrb[0].mxu0
      %1967 = vmatprep.mubr.bf16.mxu0 %v1883
      %1968 = vmatmul.mubr.bf16.gmra.mrb[0].mxu0 %v1738
      %v1969 = vpop.f32.mrb[0].mxu0
      %v1970 = vadd.f32 0.0, %v1969
      %v1971 = vpop.f32.mrb[0].mxu0
      %v1972 = vpop.f32.mrb[0].mxu0
      %v1973 = vadd.f32 0.0, %v1972
      %v1974 = vpop.f32.mrb[0].mxu0
      %1975 = vmatprep.mubr.bf16.mxu0 %v1886
      %1976 = vmatmul.mubr.bf16.gmra.mrb[0].mxu0 %v1741
      %v1977 = vpop.f32.mrb[0].mxu0
      %v1978 = vadd.f32 0.0, %v1977
      %v1979 = vpop.f32.mrb[0].mxu0
      %v1980 = vpop.f32.mrb[0].mxu0
      %v1981 = vadd.f32 0.0, %v1980
      %v1982 = vpop.f32.mrb[0].mxu0
      %1983 = vmatprep.mubr.bf16.mxu0 %v1889
      %1984 = vmatmul.mubr.bf16.gmra.mrb[0].mxu0 %v1744
      %v1985 = vpop.f32.mrb[0].mxu0
      %v1986 = vadd.f32 0.0, %v1985
      %v1987 = vpop.f32.mrb[0].mxu0
      %v1988 = vpop.f32.mrb[0].mxu0
      %v1989 = vadd.f32 0.0, %v1988
      %v1990 = vpop.f32.mrb[0].mxu0
      %1991 = vmatprep.mubr.bf16.mxu0 %v1892
      %1992 = vmatmul.mubr.bf16.gmra.mrb[0].mxu0 %v1747
      %v1993 = vpop.f32.mrb[0].mxu0
      %v1994 = vadd.f32 0.0, %v1993
      %v1995 = vpop.f32.mrb[0].mxu0
      %v1996 = vpop.f32.mrb[0].mxu0
      %v1997 = vadd.f32 0.0, %v1996
      %v1998 = vpop.f32.mrb[0].mxu0
      %1999 = vmatprep.mubr.bf16.mxu0 %v1895
      %2000 = vmatmul.mubr.bf16.gmra.mrb[0].mxu0 %v1750
      %v2001 = vpop.f32.mrb[0].mxu0
      %v2002 = vadd.f32 0.0, %v2001
      %v2003 = vpop.f32.mrb[0].mxu0
      %v2004 = vpop.f32.mrb[0].mxu0
      %v2005 = vadd.f32 0.0, %v2004
      %v2006 = vpop.f32.mrb[0].mxu0
      %2007 = vmatprep.mubr.bf16.mxu0 %v1898
      %2008 = vmatmul.mubr.bf16.gmra.mrb[0].mxu0 %v1753
      %v2009 = vpop.f32.mrb[0].mxu0
      %v2010 = vadd.f32 0.0, %v2009
      %v2011 = vpop.f32.mrb[0].mxu0
      %v2012 = vpop.f32.mrb[0].mxu0
      %v2013 = vadd.f32 0.0, %v2012
      %v2014 = vpop.f32.mrb[0].mxu0
      %2015 = vmatprep.mubr.bf16.mxu0 %v1901
      %2016 = vmatmul.mubr.bf16.gmra.mrb[0].mxu0 %v1756
      %v2017 = vpop.f32.mrb[0].mxu0
      %v2018 = vadd.f32 0.0, %v2017
      %v2019 = vpop.f32.mrb[0].mxu0
      %v2020 = vpop.f32.mrb[0].mxu0
      %v2021 = vadd.f32 0.0, %v2020
      %v2022 = vpop.f32.mrb[0].mxu0
      %2023 = vmatprep.mubr.bf16.mxu0 %v1904
      %2024 = vmatmul.mubr.bf16.gmra.mrb[0].mxu0 %v1759
      %v2025 = vpop.f32.mrb[0].mxu0
      %v2026 = vadd.f32 0.0, %v2025
      %v2027 = vpop.f32.mrb[0].mxu0
      %v2028 = vpop.f32.mrb[0].mxu0
      %v2029 = vadd.f32 0.0, %v2028
      %v2030 = vpop.f32.mrb[0].mxu0
      %2031 = vmatprep.mubr.bf16.mxu0 %v1907
      %2032 = vmatmul.mubr.bf16.gmra.mrb[0].mxu0 %v1762
      %v2033 = vpop.f32.mrb[0].mxu0
      %v2034 = vadd.f32 0.0, %v2033
      %v2035 = vpop.f32.mrb[0].mxu0
      %v2036 = vpop.f32.mrb[0].mxu0
      %v2037 = vadd.f32 0.0, %v2036
      %v2038 = vpop.f32.mrb[0].mxu0
      %2039 = vmatprep.mubr.bf16.mxu0 %v1910
      %2040 = vmatmul.mubr.bf16.gmra.mrb[0].mxu0 %v1765
      %v2041 = vpop.f32.mrb[0].mxu0
      %v2042 = vadd.f32 0.0, %v2041
      %v2043 = vpop.f32.mrb[0].mxu0
      %v2044 = vpop.f32.mrb[0].mxu0
      %v2045 = vadd.f32 0.0, %v2044
      %v2046 = vpop.f32.mrb[0].mxu0
      %2047 = vmatprep.mubr.bf16.mxu0 %v1913
      %2048 = vmatmul.mubr.bf16.gmra.mrb[0].mxu0 %v1768
      %v2049 = vpop.f32.mrb[0].mxu0
      %v2050 = vadd.f32 0.0, %v2049
      %v2051 = vpop.f32.mrb[0].mxu0
      %v2052 = vpop.f32.mrb[0].mxu0
      %v2053 = vadd.f32 0.0, %v2052
      %v2054 = vpop.f32.mrb[0].mxu0
      %2055 = vmatprep.mubr.bf16.mxu0 %v1916
      %2056 = vmatmul.mubr.bf16.gmra.mrb[0].mxu0 %v1771
      %v2057 = vpop.f32.mrb[0].mxu0
      %v2058 = vadd.f32 0.0, %v2057
      %v2059 = vpop.f32.mrb[0].mxu0
      %v2060 = vpop.f32.mrb[0].mxu0
      %v2061 = vadd.f32 0.0, %v2060
      %v2062 = vpop.f32.mrb[0].mxu0
      %2063 = vmatprep.mubr.bf16.mxu0 %v1919
      %2064 = vmatmul.mubr.bf16.gmra.mrb[0].mxu0 %v1774
      %v2065 = vpop.f32.mrb[0].mxu0
      %v2066 = vadd.f32 0.0, %v2065
      %v2067 = vpop.f32.mrb[0].mxu0
      %v2068 = vpop.f32.mrb[0].mxu0
      %v2069 = vadd.f32 0.0, %v2068
      %v2070 = vpop.f32.mrb[0].mxu0
      %2071 = vmatprep.mubr.bf16.mxu0 %v1922
      %2072 = vmatmul.mubr.bf16.gmra.mrb[0].mxu0 %v1777
      %v2073 = vpop.f32.mrb[0].mxu0
      %v2074 = vadd.f32 0.0, %v2073
      %v2075 = vpop.f32.mrb[0].mxu0
      %v2076 = vpop.f32.mrb[0].mxu0
      %v2077 = vadd.f32 0.0, %v2076
      %v2078 = vpop.f32.mrb[0].mxu0
      %2079 = vmatprep.mubr.bf16.mxu0 %v1925
      %2080 = vmatmul.mubr.bf16.gmra.mrb[0].mxu0 %v1780
      %v2081 = vpop.f32.mrb[0].mxu0
      %v2082 = vadd.f32 0.0, %v2081
      %v2083 = vpop.f32.mrb[0].mxu0
      %v2084 = vpop.f32.mrb[0].mxu0
      %v2085 = vadd.f32 0.0, %v2084
      %v2086 = vpop.f32.mrb[0].mxu0
      %2087 = vdwg.mxu0
      %v2112 = vunpack.c.l.b16 %v1262
      %v2113 = vunpack.c.l.b16 %v1263
      %v2114 = vunpack.c.l.b16 %v1264
      %v2115 = vunpack.c.l.b16 %v1265
      %v2116 = vunpack.c.l.b16 %v1266
      %v2117 = vunpack.c.l.b16 %v1267
      %v2118 = vunpack.c.l.b16 %v1268
      %v2119 = vunpack.c.l.b16 %v1269
      %v2120 = vunpack.c.l.b16 %v1270
      %v2121 = vunpack.c.l.b16 %v1271
      %v2122 = vunpack.c.l.b16 %v1272
      %v2123 = vunpack.c.l.b16 %v1273
      %v2124 = vunpack.c.l.b16 %v1274
      %v2125 = vunpack.c.l.b16 %v1275
      %v2126 = vunpack.c.l.b16 %v1276
      %v2127 = vunpack.c.l.b16 %v1277
      %v2128 = vunpack.c.l.b16 %v1278
      %v2129 = vunpack.c.l.b16 %v1279
      %v2130 = vunpack.c.l.b16 %v1280
      %v2131 = vunpack.c.l.b16 %v1281
      %v2132 = vunpack.c.l.b16 %v1282
      %v2133 = vunpack.c.l.b16 %v1283
      %v2134 = vunpack.c.l.b16 %v1284
      %v2135 = vunpack.c.l.b16 %v1285
      %v2136 = vpack.c.b16 %v2113, %v2112
      %v2137 = vpack.c.b16 %v2115, %v2114
      %v2138 = vpack.c.b16 %v2117, %v2116
      %v2139 = vpack.c.b16 %v2119, %v2118
      %v2140 = vpack.c.b16 %v2121, %v2120
      %v2141 = vpack.c.b16 %v2123, %v2122
      %v2142 = vpack.c.b16 %v2125, %v2124
      %v2143 = vpack.c.b16 %v2127, %v2126
      %v2144 = vpack.c.b16 %v2129, %v2128
      %v2145 = vpack.c.b16 %v2131, %v2130
      %v2146 = vpack.c.b16 %v2133, %v2132
      %v2147 = vpack.c.b16 %v2135, %v2134
      %v2161 = vsel %vm1213, %v1167, 0
      %v2164 = vsel %vm1213, %v1170, 0
      %v2167 = vsel %vm1213, %v1173, 0
      %v2170 = vsel %vm1213, %v1176, 0
      %v2173 = vsel %vm1213, %v1179, 0
      %v2176 = vsel %vm1213, %v1182, 0
      %v2179 = vsel %vm1213, %v1185, 0
      %v2182 = vsel %vm1213, %v1188, 0
      %v2185 = vsel %vm1213, %v1191, 0
      %v2188 = vsel %vm1213, %v1194, 0
      %v2191 = vsel %vm1213, %v1197, 0
      %v2194 = vsel %vm1213, %v1200, 0
      %v2197 = vsel %vm1213, %v1203, 0
      %v2200 = vsel %vm1213, %v1206, 0
      %v2203 = vsel %vm1213, %v1209, 0
      %v2206 = vsel %vm1213, %v1212, 0
      %2208 = vmatprep.subr.bf16.mxu0 0
      %2209 = vmatpush1.bf16.msra.mxu0 %v2136
      %2210 = vmatprep.subr.bf16.mxu0 0
      %2211 = vmatpush1.bf16.msra.mxu0 %v2137
      %2212 = vmatprep.subr.bf16.mxu0 0
      %2213 = vmatpush1.bf16.msra.mxu0 %v2138
      %2214 = vmatprep.subr.bf16.mxu0 0
      %2215 = vmatpush1.bf16.msra.mxu0 %v2139
      %2216 = vmatprep.subr.bf16.mxu0 0
      %2217 = vmatpush1.bf16.msra.mxu0 %v2140
      %2218 = vmatprep.subr.bf16.mxu0 0
      %2219 = vmatpush1.bf16.msra.mxu0 %v2141
      %2220 = vmatprep.subr.bf16.mxu0 0
      %2221 = vmatpush1.bf16.msra.mxu0 %v2142
      %2222 = vmatprep.subr.bf16.mxu0 0
      %2223 = vmatpush1.bf16.msra.mxu0 %v2143
      %2224 = vmatprep.subr.bf16.mxu0 0
      %2225 = vmatpush1.bf16.msra.mxu0 %v2144
      %2226 = vmatprep.subr.bf16.mxu0 0
      %2227 = vmatpush1.bf16.msra.mxu0 %v2145
      %2228 = vmatprep.subr.bf16.mxu0 0
      %2229 = vmatpush1.bf16.msra.mxu0 %v2146
      %2230 = vmatprep.subr.bf16.mxu0 0
      %2231 = vmatpush1.bf16.msra.mxu0 %v2147
      %2232 = vmatprep.subr.bf16.mxu0 0
      %2233 = vmatpush1.bf16.msra.mxu0 0
      %2234 = vmatprep.subr.bf16.mxu0 0
      %2235 = vmatpush1.bf16.msra.mxu0 0
      %2236 = vmatprep.subr.bf16.mxu0 0
      %2237 = vmatpush1.bf16.msra.mxu0 0
      %2238 = vmatprep.subr.bf16.mxu0 0
      %2239 = vmatpush1.bf16.msra.mxu0 0
      %2240 = vmatprep.mubr.bf16.mxu0 %v2161
      %2241 = vmatmul.mubr.bf16.gmra.mrb[0].mxu0 %v1215
      %v2242 = vpop.f32.mrb[0].mxu0
      %v2243 = vadd.f32 %v1962, %v2242
      %v2244 = vpop.f32.mrb[0].mxu0
      %v2245 = vpop.f32.mrb[0].mxu0
      %v2246 = vadd.f32 %v1965, %v2245
      %v2247 = vpop.f32.mrb[0].mxu0
      %2248 = vmatprep.mubr.bf16.mxu0 %v2164
      %2249 = vmatmul.mubr.bf16.gmra.mrb[0].mxu0 %v1218
      %v2250 = vpop.f32.mrb[0].mxu0
      %v2251 = vadd.f32 %v1970, %v2250
      %v2252 = vpop.f32.mrb[0].mxu0
      %v2253 = vpop.f32.mrb[0].mxu0
      %v2254 = vadd.f32 %v1973, %v2253
      %v2255 = vpop.f32.mrb[0].mxu0
      %2256 = vmatprep.mubr.bf16.mxu0 %v2167
      %2257 = vmatmul.mubr.bf16.gmra.mrb[0].mxu0 %v1221
      %v2258 = vpop.f32.mrb[0].mxu0
      %v2259 = vadd.f32 %v1978, %v2258
      %v2260 = vpop.f32.mrb[0].mxu0
      %v2261 = vpop.f32.mrb[0].mxu0
      %v2262 = vadd.f32 %v1981, %v2261
      %v2263 = vpop.f32.mrb[0].mxu0
      %2264 = vmatprep.mubr.bf16.mxu0 %v2170
      %2265 = vmatmul.mubr.bf16.gmra.mrb[0].mxu0 %v1224
      %v2266 = vpop.f32.mrb[0].mxu0
      %v2267 = vadd.f32 %v1986, %v2266
      %v2268 = vpop.f32.mrb[0].mxu0
      %v2269 = vpop.f32.mrb[0].mxu0
      %v2270 = vadd.f32 %v1989, %v2269
      %v2271 = vpop.f32.mrb[0].mxu0
      %2272 = vmatprep.mubr.bf16.mxu0 %v2173
      %2273 = vmatmul.mubr.bf16.gmra.mrb[0].mxu0 %v1227
      %v2274 = vpop.f32.mrb[0].mxu0
      %v2275 = vadd.f32 %v1994, %v2274
      %v2276 = vpop.f32.mrb[0].mxu0
      %v2277 = vpop.f32.mrb[0].mxu0
      %v2278 = vadd.f32 %v1997, %v2277
      %v2279 = vpop.f32.mrb[0].mxu0
      %2280 = vmatprep.mubr.bf16.mxu0 %v2176
      %2281 = vmatmul.mubr.bf16.gmra.mrb[0].mxu0 %v1230
      %v2282 = vpop.f32.mrb[0].mxu0
      %v2283 = vadd.f32 %v2002, %v2282
      %v2284 = vpop.f32.mrb[0].mxu0
      %v2285 = vpop.f32.mrb[0].mxu0
      %v2286 = vadd.f32 %v2005, %v2285
      %v2287 = vpop.f32.mrb[0].mxu0
      %2288 = vmatprep.mubr.bf16.mxu0 %v2179
      %2289 = vmatmul.mubr.bf16.gmra.mrb[0].mxu0 %v1233
      %v2290 = vpop.f32.mrb[0].mxu0
      %v2291 = vadd.f32 %v2010, %v2290
      %v2292 = vpop.f32.mrb[0].mxu0
      %v2293 = vpop.f32.mrb[0].mxu0
      %v2294 = vadd.f32 %v2013, %v2293
      %v2295 = vpop.f32.mrb[0].mxu0
      %2296 = vmatprep.mubr.bf16.mxu0 %v2182
      %2297 = vmatmul.mubr.bf16.gmra.mrb[0].mxu0 %v1236
      %v2298 = vpop.f32.mrb[0].mxu0
      %v2299 = vadd.f32 %v2018, %v2298
      %v2300 = vpop.f32.mrb[0].mxu0
      %v2301 = vpop.f32.mrb[0].mxu0
      %v2302 = vadd.f32 %v2021, %v2301
      %v2303 = vpop.f32.mrb[0].mxu0
      %2304 = vmatprep.mubr.bf16.mxu0 %v2185
      %2305 = vmatmul.mubr.bf16.gmra.mrb[0].mxu0 %v1239
      %v2306 = vpop.f32.mrb[0].mxu0
      %v2307 = vadd.f32 %v2026, %v2306
      %v2308 = vpop.f32.mrb[0].mxu0
      %v2309 = vpop.f32.mrb[0].mxu0
      %v2310 = vadd.f32 %v2029, %v2309
      %v2311 = vpop.f32.mrb[0].mxu0
      %2312 = vmatprep.mubr.bf16.mxu0 %v2188
      %2313 = vmatmul.mubr.bf16.gmra.mrb[0].mxu0 %v1242
      %v2314 = vpop.f32.mrb[0].mxu0
      %v2315 = vadd.f32 %v2034, %v2314
      %v2316 = vpop.f32.mrb[0].mxu0
      %v2317 = vpop.f32.mrb[0].mxu0
      %v2318 = vadd.f32 %v2037, %v2317
      %v2319 = vpop.f32.mrb[0].mxu0
      %2320 = vmatprep.mubr.bf16.mxu0 %v2191
      %2321 = vmatmul.mubr.bf16.gmra.mrb[0].mxu0 %v1245
      %v2322 = vpop.f32.mrb[0].mxu0
      %v2323 = vadd.f32 %v2042, %v2322
      %v2324 = vpop.f32.mrb[0].mxu0
      %v2325 = vpop.f32.mrb[0].mxu0
      %v2326 = vadd.f32 %v2045, %v2325
      %v2327 = vpop.f32.mrb[0].mxu0
      %2328 = vmatprep.mubr.bf16.mxu0 %v2194
      %2329 = vmatmul.mubr.bf16.gmra.mrb[0].mxu0 %v1248
      %v2330 = vpop.f32.mrb[0].mxu0
      %v2331 = vadd.f32 %v2050, %v2330
      %v2332 = vpop.f32.mrb[0].mxu0
      %v2333 = vpop.f32.mrb[0].mxu0
      %v2334 = vadd.f32 %v2053, %v2333
      %v2335 = vpop.f32.mrb[0].mxu0
      %2336 = vmatprep.mubr.bf16.mxu0 %v2197
      %2337 = vmatmul.mubr.bf16.gmra.mrb[0].mxu0 %v1251
      %v2338 = vpop.f32.mrb[0].mxu0
      %v2339 = vadd.f32 %v2058, %v2338
      %v2340 = vpop.f32.mrb[0].mxu0
      %v2341 = vpop.f32.mrb[0].mxu0
      %v2342 = vadd.f32 %v2061, %v2341
      %v2343 = vpop.f32.mrb[0].mxu0
      %2344 = vmatprep.mubr.bf16.mxu0 %v2200
      %2345 = vmatmul.mubr.bf16.gmra.mrb[0].mxu0 %v1254
      %v2346 = vpop.f32.mrb[0].mxu0
      %v2347 = vadd.f32 %v2066, %v2346
      %v2348 = vpop.f32.mrb[0].mxu0
      %v2349 = vpop.f32.mrb[0].mxu0
      %v2350 = vadd.f32 %v2069, %v2349
      %v2351 = vpop.f32.mrb[0].mxu0
      %2352 = vmatprep.mubr.bf16.mxu0 %v2203
      %2353 = vmatmul.mubr.bf16.gmra.mrb[0].mxu0 %v1257
      %v2354 = vpop.f32.mrb[0].mxu0
      %v2355 = vadd.f32 %v2074, %v2354
      %v2356 = vpop.f32.mrb[0].mxu0
      %v2357 = vpop.f32.mrb[0].mxu0
      %v2358 = vadd.f32 %v2077, %v2357
      %v2359 = vpop.f32.mrb[0].mxu0
      %2360 = vmatprep.mubr.bf16.mxu0 %v2206
      %2361 = vmatmul.mubr.bf16.gmra.mrb[0].mxu0 %v1260
      %v2362 = vpop.f32.mrb[0].mxu0
      %v2363 = vadd.f32 %v2082, %v2362
      %v2364 = vpop.f32.mrb[0].mxu0
      %v2365 = vpop.f32.mrb[0].mxu0
      %v2366 = vadd.f32 %v2085, %v2365
      %v2367 = vpop.f32.mrb[0].mxu0
      %2368 = vdwg.mxu0
      %s2369 = scalar_lea.vmem [#allocation2], 24
      %v2370 = vld [vmem:[%s2369] sm:$0xf]
      %v2371 = vld [vmem:[%s2369 + $0x4] sm:$0xf]
      %v2372 = vld [vmem:[%s2369 + $0x8] sm:$0x1]
      %v2373 = vld [vmem:[%s2369 + $0xc] sm:$0xf]
      %v2374 = vld [vmem:[%s2369 + $0x10] sm:$0xf]
      %v2375 = vld [vmem:[%s2369 + $0x14] sm:$0x1]
      %v2376 = vld [vmem:[%s2369 + $0x18] sm:$0xf]
      %v2377 = vld [vmem:[%s2369 + $0x1c] sm:$0xf]
      %v2378 = vld [vmem:[%s2369 + $0x20] sm:$0x1]
      %v2379 = vld [vmem:[%s2369 + $0x24] sm:$0xf]
      %v2380 = vld [vmem:[%s2369 + $0x28] sm:$0xf]
      %v2381 = vld [vmem:[%s2369 + $0x2c] sm:$0x1]
      %v2382 = vld [vmem:[%s2369 + $0x30] sm:$0xf]
      %v2383 = vld [vmem:[%s2369 + $0x34] sm:$0xf]
      %v2384 = vld [vmem:[%s2369 + $0x38] sm:$0x1]
      %v2385 = vld [vmem:[%s2369 + $0x3c] sm:$0xf]
      %v2386 = vld [vmem:[%s2369 + $0x40] sm:$0xf]
      %v2387 = vld [vmem:[%s2369 + $0x44] sm:$0x1]
      %v2388 = vld [vmem:[%s2369 + $0x48] sm:$0xf]
      %v2389 = vld [vmem:[%s2369 + $0x4c] sm:$0xf]
      %v2390 = vld [vmem:[%s2369 + $0x50] sm:$0x1]
      %v2391 = vld [vmem:[%s2369 + $0x54] sm:$0xf]
      %v2392 = vld [vmem:[%s2369 + $0x58] sm:$0xf]
      %v2393 = vld [vmem:[%s2369 + $0x5c] sm:$0x1]
      %v2394 = vld [vmem:[%s2369 + $0x60] sm:$0xf]
      %v2395 = vld [vmem:[%s2369 + $0x64] sm:$0xf]
      %v2396 = vld [vmem:[%s2369 + $0x68] sm:$0x1]
      %v2397 = vld [vmem:[%s2369 + $0x6c] sm:$0xf]
      %v2398 = vld [vmem:[%s2369 + $0x70] sm:$0xf]
      %v2399 = vld [vmem:[%s2369 + $0x74] sm:$0x1]
      %v2400 = vld [vmem:[%s2369 + $0x78] sm:$0xf]
      %v2401 = vld [vmem:[%s2369 + $0x7c] sm:$0xf]
      %v2402 = vld [vmem:[%s2369 + $0x80] sm:$0x1]
      %v2403 = vld [vmem:[%s2369 + $0x84] sm:$0xf]
      %v2404 = vld [vmem:[%s2369 + $0x88] sm:$0xf]
      %v2405 = vld [vmem:[%s2369 + $0x8c] sm:$0x1]
      %v2406 = vld [vmem:[%s2369 + $0x90] sm:$0xf]
      %v2407 = vld [vmem:[%s2369 + $0x94] sm:$0xf]
      %v2408 = vld [vmem:[%s2369 + $0x98] sm:$0x1]
      %v2409 = vld [vmem:[%s2369 + $0x9c] sm:$0xf]
      %v2410 = vld [vmem:[%s2369 + $0xa0] sm:$0xf]
      %v2411 = vld [vmem:[%s2369 + $0xa4] sm:$0x1]
      %v2412 = vld [vmem:[%s2369 + $0xa8] sm:$0xf]
      %v2413 = vld [vmem:[%s2369 + $0xac] sm:$0xf]
      %v2414 = vld [vmem:[%s2369 + $0xb0] sm:$0x1]
      %v2415 = vld [vmem:[%s2369 + $0xb4] sm:$0xf]
      %v2416 = vld [vmem:[%s2369 + $0xb8] sm:$0xf]
      %v2417 = vld [vmem:[%s2369 + $0xbc] sm:$0x1]
      %v2450 = vunpack.c.l.b16 %v2370
      %v2451 = vunpack.c.l.b16 %v2371
      %v2452 = vunpack.c.l.b16 %v2373
      %v2453 = vunpack.c.l.b16 %v2374
      %v2454 = vunpack.c.l.b16 %v2376
      %v2455 = vunpack.c.l.b16 %v2377
      %v2456 = vunpack.c.l.b16 %v2379
      %v2457 = vunpack.c.l.b16 %v2380
      %v2458 = vunpack.c.l.b16 %v2382
      %v2459 = vunpack.c.l.b16 %v2383
      %v2460 = vunpack.c.l.b16 %v2385
      %v2461 = vunpack.c.l.b16 %v2386
      %v2462 = vunpack.c.l.b16 %v2388
      %v2463 = vunpack.c.l.b16 %v2389
      %v2464 = vunpack.c.l.b16 %v2391
      %v2465 = vunpack.c.l.b16 %v2392
      %v2466 = vunpack.c.l.b16 %v2394
      %v2467 = vunpack.c.l.b16 %v2395
      %v2468 = vunpack.c.l.b16 %v2397
      %v2469 = vunpack.c.l.b16 %v2398
      %v2470 = vunpack.c.l.b16 %v2400
      %v2471 = vunpack.c.l.b16 %v2401
      %v2472 = vunpack.c.l.b16 %v2403
      %v2473 = vunpack.c.l.b16 %v2404
      %v2474 = vunpack.c.l.b16 %v2406
      %v2475 = vunpack.c.l.b16 %v2407
      %v2476 = vunpack.c.l.b16 %v2409
      %v2477 = vunpack.c.l.b16 %v2410
      %v2478 = vunpack.c.l.b16 %v2412
      %v2479 = vunpack.c.l.b16 %v2413
      %v2480 = vunpack.c.l.b16 %v2415
      %v2481 = vunpack.c.l.b16 %v2416
      %v2482 = vpack.c.b16 %v2451, %v2450
      %v2483 = vpack.c.b16 %v2453, %v2452
      %v2484 = vpack.c.b16 %v2455, %v2454
      %v2485 = vpack.c.b16 %v2457, %v2456
      %v2486 = vpack.c.b16 %v2459, %v2458
      %v2487 = vpack.c.b16 %v2461, %v2460
      %v2488 = vpack.c.b16 %v2463, %v2462
      %v2489 = vpack.c.b16 %v2465, %v2464
      %v2490 = vpack.c.b16 %v2467, %v2466
      %v2491 = vpack.c.b16 %v2469, %v2468
      %v2492 = vpack.c.b16 %v2471, %v2470
      %v2493 = vpack.c.b16 %v2473, %v2472
      %v2494 = vpack.c.b16 %v2475, %v2474
      %v2495 = vpack.c.b16 %v2477, %v2476
      %v2496 = vpack.c.b16 %v2479, %v2478
      %v2497 = vpack.c.b16 %v2481, %v2480
      %v2514 = vunpack.c.l.b16 %v2372
      %v2515 = vunpack.c.l.b16 %v2375
      %v2516 = vunpack.c.l.b16 %v2378
      %v2517 = vunpack.c.l.b16 %v2381
      %v2518 = vunpack.c.l.b16 %v2384
      %v2519 = vunpack.c.l.b16 %v2387
      %v2520 = vunpack.c.l.b16 %v2390
      %v2521 = vunpack.c.l.b16 %v2393
      %v2522 = vunpack.c.l.b16 %v2396
      %v2523 = vunpack.c.l.b16 %v2399
      %v2524 = vunpack.c.l.b16 %v2402
      %v2525 = vunpack.c.l.b16 %v2405
      %v2526 = vunpack.c.l.b16 %v2408
      %v2527 = vunpack.c.l.b16 %v2411
      %v2528 = vunpack.c.l.b16 %v2414
      %v2529 = vunpack.c.l.b16 %v2417
      %v2530 = vpack.c.b16 %v2514, %v2514
      %v2531 = vpack.c.b16 %v2515, %v2515
      %v2532 = vpack.c.b16 %v2516, %v2516
      %v2533 = vpack.c.b16 %v2517, %v2517
      %v2534 = vpack.c.b16 %v2518, %v2518
      %v2535 = vpack.c.b16 %v2519, %v2519
      %v2536 = vpack.c.b16 %v2520, %v2520
      %v2537 = vpack.c.b16 %v2521, %v2521
      %v2538 = vpack.c.b16 %v2522, %v2522
      %v2539 = vpack.c.b16 %v2523, %v2523
      %v2540 = vpack.c.b16 %v2524, %v2524
      %v2541 = vpack.c.b16 %v2525, %v2525
      %v2542 = vpack.c.b16 %v2526, %v2526
      %v2543 = vpack.c.b16 %v2527, %v2527
      %v2544 = vpack.c.b16 %v2528, %v2528
      %v2545 = vpack.c.b16 %v2529, %v2529
      %v2547 = vshrl.u32 %v2482, 16
      %v2549 = vshll.u32 %v2482, 16
      %v2551 = vrot.slane %v2549, 1
      %v2552 = vor.u32 %v2547, %v2551
      %v2554 = vshll.u32 %v2530, 16
      %v2556 = vrot.slane %v2554, 1
      %v2557 = vsel %vm939, %v2552, %v2556
      %v2559 = vshrl.u32 %v2483, 16
      %v2561 = vshll.u32 %v2483, 16
      %v2563 = vrot.slane %v2561, 1
      %v2564 = vor.u32 %v2559, %v2563
      %v2566 = vshll.u32 %v2531, 16
      %v2568 = vrot.slane %v2566, 1
      %v2569 = vsel %vm939, %v2564, %v2568
      %v2571 = vshrl.u32 %v2484, 16
      %v2573 = vshll.u32 %v2484, 16
      %v2575 = vrot.slane %v2573, 1
      %v2576 = vor.u32 %v2571, %v2575
      %v2578 = vshll.u32 %v2532, 16
      %v2580 = vrot.slane %v2578, 1
      %v2581 = vsel %vm939, %v2576, %v2580
      %v2583 = vshrl.u32 %v2485, 16
      %v2585 = vshll.u32 %v2485, 16
      %v2587 = vrot.slane %v2585, 1
      %v2588 = vor.u32 %v2583, %v2587
      %v2590 = vshll.u32 %v2533, 16
      %v2592 = vrot.slane %v2590, 1
      %v2593 = vsel %vm939, %v2588, %v2592
      %v2595 = vshrl.u32 %v2486, 16
      %v2597 = vshll.u32 %v2486, 16
      %v2599 = vrot.slane %v2597, 1
      %v2600 = vor.u32 %v2595, %v2599
      %v2602 = vshll.u32 %v2534, 16
      %v2604 = vrot.slane %v2602, 1
      %v2605 = vsel %vm939, %v2600, %v2604
      %v2607 = vshrl.u32 %v2487, 16
      %v2609 = vshll.u32 %v2487, 16
      %v2611 = vrot.slane %v2609, 1
      %v2612 = vor.u32 %v2607, %v2611
      %v2614 = vshll.u32 %v2535, 16
      %v2616 = vrot.slane %v2614, 1
      %v2617 = vsel %vm939, %v2612, %v2616
      %v2619 = vshrl.u32 %v2488, 16
      %v2621 = vshll.u32 %v2488, 16
      %v2623 = vrot.slane %v2621, 1
      %v2624 = vor.u32 %v2619, %v2623
      %v2626 = vshll.u32 %v2536, 16
      %v2628 = vrot.slane %v2626, 1
      %v2629 = vsel %vm939, %v2624, %v2628
      %v2631 = vshrl.u32 %v2489, 16
      %v2633 = vshll.u32 %v2489, 16
      %v2635 = vrot.slane %v2633, 1
      %v2636 = vor.u32 %v2631, %v2635
      %v2638 = vshll.u32 %v2537, 16
      %v2640 = vrot.slane %v2638, 1
      %v2641 = vsel %vm939, %v2636, %v2640
      %v2643 = vshrl.u32 %v2490, 16
      %v2645 = vshll.u32 %v2490, 16
      %v2647 = vrot.slane %v2645, 1
      %v2648 = vor.u32 %v2643, %v2647
      %v2650 = vshll.u32 %v2538, 16
      %v2652 = vrot.slane %v2650, 1
      %v2653 = vsel %vm939, %v2648, %v2652
      %v2655 = vshrl.u32 %v2491, 16
      %v2657 = vshll.u32 %v2491, 16
      %v2659 = vrot.slane %v2657, 1
      %v2660 = vor.u32 %v2655, %v2659
      %v2662 = vshll.u32 %v2539, 16
      %v2664 = vrot.slane %v2662, 1
      %v2665 = vsel %vm939, %v2660, %v2664
      %v2667 = vshrl.u32 %v2492, 16
      %v2669 = vshll.u32 %v2492, 16
      %v2671 = vrot.slane %v2669, 1
      %v2672 = vor.u32 %v2667, %v2671
      %v2674 = vshll.u32 %v2540, 16
      %v2676 = vrot.slane %v2674, 1
      %v2677 = vsel %vm939, %v2672, %v2676
      %v2679 = vshrl.u32 %v2493, 16
      %v2681 = vshll.u32 %v2493, 16
      %v2683 = vrot.slane %v2681, 1
      %v2684 = vor.u32 %v2679, %v2683
      %v2686 = vshll.u32 %v2541, 16
      %v2688 = vrot.slane %v2686, 1
      %v2689 = vsel %vm939, %v2684, %v2688
      %v2691 = vshrl.u32 %v2494, 16
      %v2693 = vshll.u32 %v2494, 16
      %v2695 = vrot.slane %v2693, 1
      %v2696 = vor.u32 %v2691, %v2695
      %v2698 = vshll.u32 %v2542, 16
      %v2700 = vrot.slane %v2698, 1
      %v2701 = vsel %vm939, %v2696, %v2700
      %v2703 = vshrl.u32 %v2495, 16
      %v2705 = vshll.u32 %v2495, 16
      %v2707 = vrot.slane %v2705, 1
      %v2708 = vor.u32 %v2703, %v2707
      %v2710 = vshll.u32 %v2543, 16
      %v2712 = vrot.slane %v2710, 1
      %v2713 = vsel %vm939, %v2708, %v2712
      %v2715 = vshrl.u32 %v2496, 16
      %v2717 = vshll.u32 %v2496, 16
      %v2719 = vrot.slane %v2717, 1
      %v2720 = vor.u32 %v2715, %v2719
      %v2722 = vshll.u32 %v2544, 16
      %v2724 = vrot.slane %v2722, 1
      %v2725 = vsel %vm939, %v2720, %v2724
      %v2727 = vshrl.u32 %v2497, 16
      %v2729 = vshll.u32 %v2497, 16
      %v2731 = vrot.slane %v2729, 1
      %v2732 = vor.u32 %v2727, %v2731
      %v2734 = vshll.u32 %v2545, 16
      %v2736 = vrot.slane %v2734, 1
      %v2737 = vsel %vm939, %v2732, %v2736
      %2738 = vrot.lane.b32.xlu0 %v2557, 64
      %v2739 = vpop.permute.xlu0 %2738
      %2740 = vrot.lane.b32.xlu0 %v2569, 64
      %v2741 = vpop.permute.xlu0 %2740
      %2742 = vrot.lane.b32.xlu0 %v2581, 64
      %v2743 = vpop.permute.xlu0 %2742
      %2744 = vrot.lane.b32.xlu0 %v2593, 64
      %v2745 = vpop.permute.xlu0 %2744
      %2746 = vrot.lane.b32.xlu0 %v2605, 64
      %v2747 = vpop.permute.xlu0 %2746
      %2748 = vrot.lane.b32.xlu0 %v2617, 64
      %v2749 = vpop.permute.xlu0 %2748
      %2750 = vrot.lane.b32.xlu0 %v2629, 64
      %v2751 = vpop.permute.xlu0 %2750
      %2752 = vrot.lane.b32.xlu0 %v2641, 64
      %v2753 = vpop.permute.xlu0 %2752
      %2754 = vrot.lane.b32.xlu0 %v2653, 64
      %v2755 = vpop.permute.xlu0 %2754
      %2756 = vrot.lane.b32.xlu0 %v2665, 64
      %v2757 = vpop.permute.xlu0 %2756
      %2758 = vrot.lane.b32.xlu0 %v2677, 64
      %v2759 = vpop.permute.xlu0 %2758
      %2760 = vrot.lane.b32.xlu0 %v2689, 64
      %v2761 = vpop.permute.xlu0 %2760
      %2762 = vrot.lane.b32.xlu0 %v2701, 64
      %v2763 = vpop.permute.xlu0 %2762
      %2764 = vrot.lane.b32.xlu0 %v2713, 64
      %v2765 = vpop.permute.xlu0 %2764
      %2766 = vrot.lane.b32.xlu0 %v2725, 64
      %v2767 = vpop.permute.xlu0 %2766
      %2768 = vrot.lane.b32.xlu0 %v2737, 64
      %v2769 = vpop.permute.xlu0 %2768
      %v2770 = vrot.slane %v2482, 1
      %v2771 = vrot.slane %v2530, 1
      %v2772 = vsel %vm1164, %v2770, %v2771
      %v2773 = vrot.slane %v2483, 1
      %v2774 = vrot.slane %v2531, 1
      %v2775 = vsel %vm1164, %v2773, %v2774
      %v2776 = vrot.slane %v2484, 1
      %v2777 = vrot.slane %v2532, 1
      %v2778 = vsel %vm1164, %v2776, %v2777
      %v2779 = vrot.slane %v2485, 1
      %v2780 = vrot.slane %v2533, 1
      %v2781 = vsel %vm1164, %v2779, %v2780
      %v2782 = vrot.slane %v2486, 1
      %v2783 = vrot.slane %v2534, 1
      %v2784 = vsel %vm1164, %v2782, %v2783
      %v2785 = vrot.slane %v2487, 1
      %v2786 = vrot.slane %v2535, 1
      %v2787 = vsel %vm1164, %v2785, %v2786
      %v2788 = vrot.slane %v2488, 1
      %v2789 = vrot.slane %v2536, 1
      %v2790 = vsel %vm1164, %v2788, %v2789
      %v2791 = vrot.slane %v2489, 1
      %v2792 = vrot.slane %v2537, 1
      %v2793 = vsel %vm1164, %v2791, %v2792
      %v2794 = vrot.slane %v2490, 1
      %v2795 = vrot.slane %v2538, 1
      %v2796 = vsel %vm1164, %v2794, %v2795
      %v2797 = vrot.slane %v2491, 1
      %v2798 = vrot.slane %v2539, 1
      %v2799 = vsel %vm1164, %v2797, %v2798
      %v2800 = vrot.slane %v2492, 1
      %v2801 = vrot.slane %v2540, 1
      %v2802 = vsel %vm1164, %v2800, %v2801
      %v2803 = vrot.slane %v2493, 1
      %v2804 = vrot.slane %v2541, 1
      %v2805 = vsel %vm1164, %v2803, %v2804
      %v2806 = vrot.slane %v2494, 1
      %v2807 = vrot.slane %v2542, 1
      %v2808 = vsel %vm1164, %v2806, %v2807
      %v2809 = vrot.slane %v2495, 1
      %v2810 = vrot.slane %v2543, 1
      %v2811 = vsel %vm1164, %v2809, %v2810
      %v2812 = vrot.slane %v2496, 1
      %v2813 = vrot.slane %v2544, 1
      %v2814 = vsel %vm1164, %v2812, %v2813
      %v2815 = vrot.slane %v2497, 1
      %v2816 = vrot.slane %v2545, 1
      %v2817 = vsel %vm1164, %v2815, %v2816
      %v2819 = vsel %vm1213, %v2482, %v2739
      %v2822 = vsel %vm1213, %v2483, %v2741
      %v2825 = vsel %vm1213, %v2484, %v2743
      %v2828 = vsel %vm1213, %v2485, %v2745
      %v2831 = vsel %vm1213, %v2486, %v2747
      %v2834 = vsel %vm1213, %v2487, %v2749
      %v2837 = vsel %vm1213, %v2488, %v2751
      %v2840 = vsel %vm1213, %v2489, %v2753
      %v2843 = vsel %vm1213, %v2490, %v2755
      %v2846 = vsel %vm1213, %v2491, %v2757
      %v2849 = vsel %vm1213, %v2492, %v2759
      %v2852 = vsel %vm1213, %v2493, %v2761
      %v2855 = vsel %vm1213, %v2494, %v2763
      %v2858 = vsel %vm1213, %v2495, %v2765
      %v2861 = vsel %vm1213, %v2496, %v2767
      %v2864 = vsel %vm1213, %v2497, %v2769
      %s2866 = scalar_lea.vmem %s1, 192
      %v2867 = vld [vmem:[%s2866] sm:$0xf]
      %v2868 = vld [vmem:[%s2866 + $0x4] sm:$0xf]
      %v2869 = vld [vmem:[%s2866 + $0x8] sm:$0xf]
      %v2870 = vld [vmem:[%s2866 + $0xc] sm:$0xf]
      %v2871 = vld [vmem:[%s2866 + $0x10] sm:$0xf]
      %v2872 = vld [vmem:[%s2866 + $0x14] sm:$0xf]
      %v2873 = vld [vmem:[%s2866 + $0x18] sm:$0xf]
      %v2874 = vld [vmem:[%s2866 + $0x1c] sm:$0xf]
      %v2875 = vld [vmem:[%s2866 + $0x20] sm:$0xf]
      %v2876 = vld [vmem:[%s2866 + $0x24] sm:$0xf]
      %v2877 = vld [vmem:[%s2866 + $0x28] sm:$0xf]
      %v2878 = vld [vmem:[%s2866 + $0x2c] sm:$0xf]
      %v2879 = vld [vmem:[%s2866 + $0x30] sm:$0xf]
      %v2880 = vld [vmem:[%s2866 + $0x34] sm:$0xf]
      %v2881 = vld [vmem:[%s2866 + $0x38] sm:$0xf]
      %v2882 = vld [vmem:[%s2866 + $0x3c] sm:$0xf]
      %v2883 = vld [vmem:[%s2866 + $0x40] sm:$0xf]
      %v2884 = vld [vmem:[%s2866 + $0x44] sm:$0xf]
      %v2885 = vld [vmem:[%s2866 + $0x48] sm:$0xf]
      %v2886 = vld [vmem:[%s2866 + $0x4c] sm:$0xf]
      %v2887 = vld [vmem:[%s2866 + $0x50] sm:$0xf]
      %v2888 = vld [vmem:[%s2866 + $0x54] sm:$0xf]
      %v2889 = vld [vmem:[%s2866 + $0x58] sm:$0xf]
      %v2890 = vld [vmem:[%s2866 + $0x5c] sm:$0xf]
      %v2915 = vunpack.c.l.b16 %v2867
      %v2916 = vunpack.c.l.b16 %v2868
      %v2917 = vunpack.c.l.b16 %v2869
      %v2918 = vunpack.c.l.b16 %v2870
      %v2919 = vunpack.c.l.b16 %v2871
      %v2920 = vunpack.c.l.b16 %v2872
      %v2921 = vunpack.c.l.b16 %v2873
      %v2922 = vunpack.c.l.b16 %v2874
      %v2923 = vunpack.c.l.b16 %v2875
      %v2924 = vunpack.c.l.b16 %v2876
      %v2925 = vunpack.c.l.b16 %v2877
      %v2926 = vunpack.c.l.b16 %v2878
      %v2927 = vunpack.c.l.b16 %v2879
      %v2928 = vunpack.c.l.b16 %v2880
      %v2929 = vunpack.c.l.b16 %v2881
      %v2930 = vunpack.c.l.b16 %v2882
      %v2931 = vunpack.c.l.b16 %v2883
      %v2932 = vunpack.c.l.b16 %v2884
      %v2933 = vunpack.c.l.b16 %v2885
      %v2934 = vunpack.c.l.b16 %v2886
      %v2935 = vunpack.c.l.b16 %v2887
      %v2936 = vunpack.c.l.b16 %v2888
      %v2937 = vunpack.c.l.b16 %v2889
      %v2938 = vunpack.c.l.b16 %v2890
      %v2939 = vpack.c.b16 %v2916, %v2915
      %v2940 = vpack.c.b16 %v2918, %v2917
      %v2941 = vpack.c.b16 %v2920, %v2919
      %v2942 = vpack.c.b16 %v2922, %v2921
      %v2943 = vpack.c.b16 %v2924, %v2923
      %v2944 = vpack.c.b16 %v2926, %v2925
      %v2945 = vpack.c.b16 %v2928, %v2927
      %v2946 = vpack.c.b16 %v2930, %v2929
      %v2947 = vpack.c.b16 %v2932, %v2931
      %v2948 = vpack.c.b16 %v2934, %v2933
      %v2949 = vpack.c.b16 %v2936, %v2935
      %v2950 = vpack.c.b16 %v2938, %v2937
      %v2964 = vsel %vm1213, %v2772, 0
      %v2967 = vsel %vm1213, %v2775, 0
      %v2970 = vsel %vm1213, %v2778, 0
      %v2973 = vsel %vm1213, %v2781, 0
      %v2976 = vsel %vm1213, %v2784, 0
      %v2979 = vsel %vm1213, %v2787, 0
      %v2982 = vsel %vm1213, %v2790, 0
      %v2985 = vsel %vm1213, %v2793, 0
      %v2988 = vsel %vm1213, %v2796, 0
      %v2991 = vsel %vm1213, %v2799, 0
      %v2994 = vsel %vm1213, %v2802, 0
      %v2997 = vsel %vm1213, %v2805, 0
      %v3000 = vsel %vm1213, %v2808, 0
      %v3003 = vsel %vm1213, %v2811, 0
      %v3006 = vsel %vm1213, %v2814, 0
      %v3009 = vsel %vm1213, %v2817, 0
      %3011 = vmatprep.subr.bf16.mxu0 0
      %3012 = vmatpush1.bf16.msra.mxu0 %v2939
      %3013 = vmatprep.subr.bf16.mxu0 0
      %3014 = vmatpush1.bf16.msra.mxu0 %v2940
      %3015 = vmatprep.subr.bf16.mxu0 0
      %3016 = vmatpush1.bf16.msra.mxu0 %v2941
      %3017 = vmatprep.subr.bf16.mxu0 0
      %3018 = vmatpush1.bf16.msra.mxu0 %v2942
      %3019 = vmatprep.subr.bf16.mxu0 0
      %3020 = vmatpush1.bf16.msra.mxu0 %v2943
      %3021 = vmatprep.subr.bf16.mxu0 0
      %3022 = vmatpush1.bf16.msra.mxu0 %v2944
      %3023 = vmatprep.subr.bf16.mxu0 0
      %3024 = vmatpush1.bf16.msra.mxu0 %v2945
      %3025 = vmatprep.subr.bf16.mxu0 0
      %3026 = vmatpush1.bf16.msra.mxu0 %v2946
      %3027 = vmatprep.subr.bf16.mxu0 0
      %3028 = vmatpush1.bf16.msra.mxu0 %v2947
      %3029 = vmatprep.subr.bf16.mxu0 0
      %3030 = vmatpush1.bf16.msra.mxu0 %v2948
      %3031 = vmatprep.subr.bf16.mxu0 0
      %3032 = vmatpush1.bf16.msra.mxu0 %v2949
      %3033 = vmatprep.subr.bf16.mxu0 0
      %3034 = vmatpush1.bf16.msra.mxu0 %v2950
      %3035 = vmatprep.subr.bf16.mxu0 0
      %3036 = vmatpush1.bf16.msra.mxu0 0
      %3037 = vmatprep.subr.bf16.mxu0 0
      %3038 = vmatpush1.bf16.msra.mxu0 0
      %3039 = vmatprep.subr.bf16.mxu0 0
      %3040 = vmatpush1.bf16.msra.mxu0 0
      %3041 = vmatprep.subr.bf16.mxu0 0
      %3042 = vmatpush1.bf16.msra.mxu0 0
      %3043 = vmatprep.mubr.bf16.mxu0 %v2964
      %3044 = vmatmul.mubr.bf16.gmra.mrb[0].mxu0 %v2819
      %v3045 = vpop.f32.mrb[0].mxu0
      %v3046 = vadd.f32 0.0, %v3045
      %v3047 = vpop.f32.mrb[0].mxu0
      %v3048 = vpop.f32.mrb[0].mxu0
      %v3049 = vadd.f32 0.0, %v3048
      %v3050 = vpop.f32.mrb[0].mxu0
      %3051 = vmatprep.mubr.bf16.mxu0 %v2967
      %3052 = vmatmul.mubr.bf16.gmra.mrb[0].mxu0 %v2822
      %v3053 = vpop.f32.mrb[0].mxu0
      %v3054 = vadd.f32 0.0, %v3053
      %v3055 = vpop.f32.mrb[0].mxu0
      %v3056 = vpop.f32.mrb[0].mxu0
      %v3057 = vadd.f32 0.0, %v3056
      %v3058 = vpop.f32.mrb[0].mxu0
      %3059 = vmatprep.mubr.bf16.mxu0 %v2970
      %3060 = vmatmul.mubr.bf16.gmra.mrb[0].mxu0 %v2825
      %v3061 = vpop.f32.mrb[0].mxu0
      %v3062 = vadd.f32 0.0, %v3061
      %v3063 = vpop.f32.mrb[0].mxu0
      %v3064 = vpop.f32.mrb[0].mxu0
      %v3065 = vadd.f32 0.0, %v3064
      %v3066 = vpop.f32.mrb[0].mxu0
      %3067 = vmatprep.mubr.bf16.mxu0 %v2973
      %3068 = vmatmul.mubr.bf16.gmra.mrb[0].mxu0 %v2828
      %v3069 = vpop.f32.mrb[0].mxu0
      %v3070 = vadd.f32 0.0, %v3069
      %v3071 = vpop.f32.mrb[0].mxu0
      %v3072 = vpop.f32.mrb[0].mxu0
      %v3073 = vadd.f32 0.0, %v3072
      %v3074 = vpop.f32.mrb[0].mxu0
      %3075 = vmatprep.mubr.bf16.mxu0 %v2976
      %3076 = vmatmul.mubr.bf16.gmra.mrb[0].mxu0 %v2831
      %v3077 = vpop.f32.mrb[0].mxu0
      %v3078 = vadd.f32 0.0, %v3077
      %v3079 = vpop.f32.mrb[0].mxu0
      %v3080 = vpop.f32.mrb[0].mxu0
      %v3081 = vadd.f32 0.0, %v3080
      %v3082 = vpop.f32.mrb[0].mxu0
      %3083 = vmatprep.mubr.bf16.mxu0 %v2979
      %3084 = vmatmul.mubr.bf16.gmra.mrb[0].mxu0 %v2834
      %v3085 = vpop.f32.mrb[0].mxu0
      %v3086 = vadd.f32 0.0, %v3085
      %v3087 = vpop.f32.mrb[0].mxu0
      %v3088 = vpop.f32.mrb[0].mxu0
      %v3089 = vadd.f32 0.0, %v3088
      %v3090 = vpop.f32.mrb[0].mxu0
      %3091 = vmatprep.mubr.bf16.mxu0 %v2982
      %3092 = vmatmul.mubr.bf16.gmra.mrb[0].mxu0 %v2837
      %v3093 = vpop.f32.mrb[0].mxu0
      %v3094 = vadd.f32 0.0, %v3093
      %v3095 = vpop.f32.mrb[0].mxu0
      %v3096 = vpop.f32.mrb[0].mxu0
      %v3097 = vadd.f32 0.0, %v3096
      %v3098 = vpop.f32.mrb[0].mxu0
      %3099 = vmatprep.mubr.bf16.mxu0 %v2985
      %3100 = vmatmul.mubr.bf16.gmra.mrb[0].mxu0 %v2840
      %v3101 = vpop.f32.mrb[0].mxu0
      %v3102 = vadd.f32 0.0, %v3101
      %v3103 = vpop.f32.mrb[0].mxu0
      %v3104 = vpop.f32.mrb[0].mxu0
      %v3105 = vadd.f32 0.0, %v3104
      %v3106 = vpop.f32.mrb[0].mxu0
      %3107 = vmatprep.mubr.bf16.mxu0 %v2988
      %3108 = vmatmul.mubr.bf16.gmra.mrb[0].mxu0 %v2843
      %v3109 = vpop.f32.mrb[0].mxu0
      %v3110 = vadd.f32 0.0, %v3109
      %v3111 = vpop.f32.mrb[0].mxu0
      %v3112 = vpop.f32.mrb[0].mxu0
      %v3113 = vadd.f32 0.0, %v3112
      %v3114 = vpop.f32.mrb[0].mxu0
      %3115 = vmatprep.mubr.bf16.mxu0 %v2991
      %3116 = vmatmul.mubr.bf16.gmra.mrb[0].mxu0 %v2846
      %v3117 = vpop.f32.mrb[0].mxu0
      %v3118 = vadd.f32 0.0, %v3117
      %v3119 = vpop.f32.mrb[0].mxu0
      %v3120 = vpop.f32.mrb[0].mxu0
      %v3121 = vadd.f32 0.0, %v3120
      %v3122 = vpop.f32.mrb[0].mxu0
      %3123 = vmatprep.mubr.bf16.mxu0 %v2994
      %3124 = vmatmul.mubr.bf16.gmra.mrb[0].mxu0 %v2849
      %v3125 = vpop.f32.mrb[0].mxu0
      %v3126 = vadd.f32 0.0, %v3125
      %v3127 = vpop.f32.mrb[0].mxu0
      %v3128 = vpop.f32.mrb[0].mxu0
      %v3129 = vadd.f32 0.0, %v3128
      %v3130 = vpop.f32.mrb[0].mxu0
      %3131 = vmatprep.mubr.bf16.mxu0 %v2997
      %3132 = vmatmul.mubr.bf16.gmra.mrb[0].mxu0 %v2852
      %v3133 = vpop.f32.mrb[0].mxu0
      %v3134 = vadd.f32 0.0, %v3133
      %v3135 = vpop.f32.mrb[0].mxu0
      %v3136 = vpop.f32.mrb[0].mxu0
      %v3137 = vadd.f32 0.0, %v3136
      %v3138 = vpop.f32.mrb[0].mxu0
      %3139 = vmatprep.mubr.bf16.mxu0 %v3000
      %3140 = vmatmul.mubr.bf16.gmra.mrb[0].mxu0 %v2855
      %v3141 = vpop.f32.mrb[0].mxu0
      %v3142 = vadd.f32 0.0, %v3141
      %v3143 = vpop.f32.mrb[0].mxu0
      %v3144 = vpop.f32.mrb[0].mxu0
      %v3145 = vadd.f32 0.0, %v3144
      %v3146 = vpop.f32.mrb[0].mxu0
      %3147 = vmatprep.mubr.bf16.mxu0 %v3003
      %3148 = vmatmul.mubr.bf16.gmra.mrb[0].mxu0 %v2858
      %v3149 = vpop.f32.mrb[0].mxu0
      %v3150 = vadd.f32 0.0, %v3149
      %v3151 = vpop.f32.mrb[0].mxu0
      %v3152 = vpop.f32.mrb[0].mxu0
      %v3153 = vadd.f32 0.0, %v3152
      %v3154 = vpop.f32.mrb[0].mxu0
      %3155 = vmatprep.mubr.bf16.mxu0 %v3006
      %3156 = vmatmul.mubr.bf16.gmra.mrb[0].mxu0 %v2861
      %v3157 = vpop.f32.mrb[0].mxu0
      %v3158 = vadd.f32 0.0, %v3157
      %v3159 = vpop.f32.mrb[0].mxu0
      %v3160 = vpop.f32.mrb[0].mxu0
      %v3161 = vadd.f32 0.0, %v3160
      %v3162 = vpop.f32.mrb[0].mxu0
      %3163 = vmatprep.mubr.bf16.mxu0 %v3009
      %3164 = vmatmul.mubr.bf16.gmra.mrb[0].mxu0 %v2864
      %v3165 = vpop.f32.mrb[0].mxu0
      %v3166 = vadd.f32 0.0, %v3165
      %v3167 = vpop.f32.mrb[0].mxu0
      %v3168 = vpop.f32.mrb[0].mxu0
      %v3169 = vadd.f32 0.0, %v3168
      %v3170 = vpop.f32.mrb[0].mxu0
      %3171 = vdwg.mxu0
      %v3172 = vadd.f32 %v2243, %v3046
      %v3173 = vadd.f32 %v2246, %v3049
      %v3174 = vadd.f32 %v2251, %v3054
      %v3175 = vadd.f32 %v2254, %v3057
      %v3176 = vadd.f32 %v2259, %v3062
      %v3177 = vadd.f32 %v2262, %v3065
      %v3178 = vadd.f32 %v2267, %v3070
      %v3179 = vadd.f32 %v2270, %v3073
      %v3180 = vadd.f32 %v2275, %v3078
      %v3181 = vadd.f32 %v2278, %v3081
      %v3182 = vadd.f32 %v2283, %v3086
      %v3183 = vadd.f32 %v2286, %v3089
      %v3184 = vadd.f32 %v2291, %v3094
      %v3185 = vadd.f32 %v2294, %v3097
      %v3186 = vadd.f32 %v2299, %v3102
      %v3187 = vadd.f32 %v2302, %v3105
      %v3188 = vadd.f32 %v2307, %v3110
      %v3189 = vadd.f32 %v2310, %v3113
      %v3190 = vadd.f32 %v2315, %v3118
      %v3191 = vadd.f32 %v2318, %v3121
      %v3192 = vadd.f32 %v2323, %v3126
      %v3193 = vadd.f32 %v2326, %v3129
      %v3194 = vadd.f32 %v2331, %v3134
      %v3195 = vadd.f32 %v2334, %v3137
      %v3196 = vadd.f32 %v2339, %v3142
      %v3197 = vadd.f32 %v2342, %v3145
      %v3198 = vadd.f32 %v2347, %v3150
      %v3199 = vadd.f32 %v2350, %v3153
      %v3200 = vadd.f32 %v2355, %v3158
      %v3201 = vadd.f32 %v2358, %v3161
      %v3202 = vadd.f32 %v2363, %v3166
      %v3203 = vadd.f32 %v2366, %v3169
      %v3204 = vld [vmem:[%s2] sm:$0x1]
      %v3206 = vlaneseq
      %v3207 = vshrl.u32 %v3206, 7
      %v3208 = vsub.s32 0, %v3207
      %v3209 = vrot.slane %v3204, %v3208
      %v3211 = vadd.f32 %v3172, %v3209
      %v3212 = vadd.f32 %v3173, %v3209
      %v3213 = vadd.f32 %v3174, %v3209
      %v3214 = vadd.f32 %v3175, %v3209
      %v3215 = vadd.f32 %v3176, %v3209
      %v3216 = vadd.f32 %v3177, %v3209
      %v3217 = vadd.f32 %v3178, %v3209
      %v3218 = vadd.f32 %v3179, %v3209
      %v3219 = vadd.f32 %v3180, %v3209
      %v3220 = vadd.f32 %v3181, %v3209
      %v3221 = vadd.f32 %v3182, %v3209
      %v3222 = vadd.f32 %v3183, %v3209
      %v3223 = vadd.f32 %v3184, %v3209
      %v3224 = vadd.f32 %v3185, %v3209
      %v3225 = vadd.f32 %v3186, %v3209
      %v3226 = vadd.f32 %v3187, %v3209
      %v3227 = vadd.f32 %v3188, %v3209
      %v3228 = vadd.f32 %v3189, %v3209
      %v3229 = vadd.f32 %v3190, %v3209
      %v3230 = vadd.f32 %v3191, %v3209
      %v3231 = vadd.f32 %v3192, %v3209
      %v3232 = vadd.f32 %v3193, %v3209
      %v3233 = vadd.f32 %v3194, %v3209
      %v3234 = vadd.f32 %v3195, %v3209
      %v3235 = vadd.f32 %v3196, %v3209
      %v3236 = vadd.f32 %v3197, %v3209
      %v3237 = vadd.f32 %v3198, %v3209
      %v3238 = vadd.f32 %v3199, %v3209
      %v3239 = vadd.f32 %v3200, %v3209
      %v3240 = vadd.f32 %v3201, %v3209
      %v3241 = vadd.f32 %v3202, %v3209
      %v3242 = vadd.f32 %v3203, %v3209
      %v3243 = vmax.f32 %v3211, 0.0
      %v3244 = vmax.f32 %v3212, 0.0
      %v3245 = vmax.f32 %v3213, 0.0
      %v3246 = vmax.f32 %v3214, 0.0
      %v3247 = vmax.f32 %v3215, 0.0
      %v3248 = vmax.f32 %v3216, 0.0
      %v3249 = vmax.f32 %v3217, 0.0
      %v3250 = vmax.f32 %v3218, 0.0
      %v3251 = vmax.f32 %v3219, 0.0
      %v3252 = vmax.f32 %v3220, 0.0
      %v3253 = vmax.f32 %v3221, 0.0
      %v3254 = vmax.f32 %v3222, 0.0
      %v3255 = vmax.f32 %v3223, 0.0
      %v3256 = vmax.f32 %v3224, 0.0
      %v3257 = vmax.f32 %v3225, 0.0
      %v3258 = vmax.f32 %v3226, 0.0
      %v3259 = vmax.f32 %v3227, 0.0
      %v3260 = vmax.f32 %v3228, 0.0
      %v3261 = vmax.f32 %v3229, 0.0
      %v3262 = vmax.f32 %v3230, 0.0
      %v3263 = vmax.f32 %v3231, 0.0
      %v3264 = vmax.f32 %v3232, 0.0
      %v3265 = vmax.f32 %v3233, 0.0
      %v3266 = vmax.f32 %v3234, 0.0
      %v3267 = vmax.f32 %v3235, 0.0
      %v3268 = vmax.f32 %v3236, 0.0
      %v3269 = vmax.f32 %v3237, 0.0
      %v3270 = vmax.f32 %v3238, 0.0
      %v3271 = vmax.f32 %v3239, 0.0
      %v3272 = vmax.f32 %v3240, 0.0
      %v3273 = vmax.f32 %v3241, 0.0
      %v3274 = vmax.f32 %v3242, 0.0
      %v3307 = vcombine.high %v3243, %v3243
      %v3309 = vunpack.c.l.s4 1983009808
      %v3310 = vunpack.c.0.s8 %v3309
      %v3311 = vlaneseq
      %v3312 = vshrl.u32 %v3311, 7
      %v3313 = vsub.s32 %v3310, %v3312
      %v3314 = vrot.slane %v3243, %v3313
      %v3316 = vunpack.c.l.s4 1983009808
      %v3317 = vunpack.c.0.s8 %v3316
      %v3318 = vlaneseq
      %v3319 = vshrl.u32 %v3318, 7
      %v3320 = vsub.s32 %v3317, %v3319
      %v3321 = vrot.slane %v3307, %v3320
      %v3322 = vcombine.high %v3314, %v3314
      %v3323 = vcombine.high %v3321, %v3321
      %v3324 = vcombine.high %v3244, %v3244
      %v3326 = vunpack.c.l.s4 1983009808
      %v3327 = vunpack.c.0.s8 %v3326
      %v3328 = vlaneseq
      %v3329 = vshrl.u32 %v3328, 7
      %v3330 = vsub.s32 %v3327, %v3329
      %v3331 = vrot.slane %v3244, %v3330
      %v3333 = vunpack.c.l.s4 1983009808
      %v3334 = vunpack.c.0.s8 %v3333
      %v3335 = vlaneseq
      %v3336 = vshrl.u32 %v3335, 7
      %v3337 = vsub.s32 %v3334, %v3336
      %v3338 = vrot.slane %v3324, %v3337
      %v3339 = vcombine.high %v3331, %v3331
      %v3340 = vcombine.high %v3338, %v3338
      %v3341 = vcombine.high %v3245, %v3245
      %v3343 = vunpack.c.l.s4 1983009808
      %v3344 = vunpack.c.0.s8 %v3343
      %v3345 = vlaneseq
      %v3346 = vshrl.u32 %v3345, 7
      %v3347 = vsub.s32 %v3344, %v3346
      %v3348 = vrot.slane %v3245, %v3347
      %v3350 = vunpack.c.l.s4 1983009808
      %v3351 = vunpack.c.0.s8 %v3350
      %v3352 = vlaneseq
      %v3353 = vshrl.u32 %v3352, 7
      %v3354 = vsub.s32 %v3351, %v3353
      %v3355 = vrot.slane %v3341, %v3354
      %v3356 = vcombine.high %v3348, %v3348
      %v3357 = vcombine.high %v3355, %v3355
      %v3358 = vcombine.high %v3246, %v3246
      %v3360 = vunpack.c.l.s4 1983009808
      %v3361 = vunpack.c.0.s8 %v3360
      %v3362 = vlaneseq
      %v3363 = vshrl.u32 %v3362, 7
      %v3364 = vsub.s32 %v3361, %v3363
      %v3365 = vrot.slane %v3246, %v3364
      %v3367 = vunpack.c.l.s4 1983009808
      %v3368 = vunpack.c.0.s8 %v3367
      %v3369 = vlaneseq
      %v3370 = vshrl.u32 %v3369, 7
      %v3371 = vsub.s32 %v3368, %v3370
      %v3372 = vrot.slane %v3358, %v3371
      %v3373 = vcombine.high %v3365, %v3365
      %v3374 = vcombine.high %v3372, %v3372
      %v3375 = vcombine.high %v3247, %v3247
      %v3377 = vunpack.c.l.s4 1983009808
      %v3378 = vunpack.c.0.s8 %v3377
      %v3379 = vlaneseq
      %v3380 = vshrl.u32 %v3379, 7
      %v3381 = vsub.s32 %v3378, %v3380
      %v3382 = vrot.slane %v3247, %v3381
      %v3384 = vunpack.c.l.s4 1983009808
      %v3385 = vunpack.c.0.s8 %v3384
      %v3386 = vlaneseq
      %v3387 = vshrl.u32 %v3386, 7
      %v3388 = vsub.s32 %v3385, %v3387
      %v3389 = vrot.slane %v3375, %v3388
      %v3390 = vcombine.high %v3382, %v3382
      %v3391 = vcombine.high %v3389, %v3389
      %v3392 = vcombine.high %v3248, %v3248
      %v3394 = vunpack.c.l.s4 1983009808
      %v3395 = vunpack.c.0.s8 %v3394
      %v3396 = vlaneseq
      %v3397 = vshrl.u32 %v3396, 7
      %v3398 = vsub.s32 %v3395, %v3397
      %v3399 = vrot.slane %v3248, %v3398
      %v3401 = vunpack.c.l.s4 1983009808
      %v3402 = vunpack.c.0.s8 %v3401
      %v3403 = vlaneseq
      %v3404 = vshrl.u32 %v3403, 7
      %v3405 = vsub.s32 %v3402, %v3404
      %v3406 = vrot.slane %v3392, %v3405
      %v3407 = vcombine.high %v3399, %v3399
      %v3408 = vcombine.high %v3406, %v3406
      %v3409 = vcombine.high %v3249, %v3249
      %v3411 = vunpack.c.l.s4 1983009808
      %v3412 = vunpack.c.0.s8 %v3411
      %v3413 = vlaneseq
      %v3414 = vshrl.u32 %v3413, 7
      %v3415 = vsub.s32 %v3412, %v3414
      %v3416 = vrot.slane %v3249, %v3415
      %v3418 = vunpack.c.l.s4 1983009808
      %v3419 = vunpack.c.0.s8 %v3418
      %v3420 = vlaneseq
      %v3421 = vshrl.u32 %v3420, 7
      %v3422 = vsub.s32 %v3419, %v3421
      %v3423 = vrot.slane %v3409, %v3422
      %v3424 = vcombine.high %v3416, %v3416
      %v3425 = vcombine.high %v3423, %v3423
      %v3426 = vcombine.high %v3250, %v3250
      %v3428 = vunpack.c.l.s4 1983009808
      %v3429 = vunpack.c.0.s8 %v3428
      %v3430 = vlaneseq
      %v3431 = vshrl.u32 %v3430, 7
      %v3432 = vsub.s32 %v3429, %v3431
      %v3433 = vrot.slane %v3250, %v3432
      %v3435 = vunpack.c.l.s4 1983009808
      %v3436 = vunpack.c.0.s8 %v3435
      %v3437 = vlaneseq
      %v3438 = vshrl.u32 %v3437, 7
      %v3439 = vsub.s32 %v3436, %v3438
      %v3440 = vrot.slane %v3426, %v3439
      %v3441 = vcombine.high %v3433, %v3433
      %v3442 = vcombine.high %v3440, %v3440
      %v3443 = vcombine.high %v3251, %v3251
      %v3445 = vunpack.c.l.s4 1983009808
      %v3446 = vunpack.c.0.s8 %v3445
      %v3447 = vlaneseq
      %v3448 = vshrl.u32 %v3447, 7
      %v3449 = vsub.s32 %v3446, %v3448
      %v3450 = vrot.slane %v3251, %v3449
      %v3452 = vunpack.c.l.s4 1983009808
      %v3453 = vunpack.c.0.s8 %v3452
      %v3454 = vlaneseq
      %v3455 = vshrl.u32 %v3454, 7
      %v3456 = vsub.s32 %v3453, %v3455
      %v3457 = vrot.slane %v3443, %v3456
      %v3458 = vcombine.high %v3450, %v3450
      %v3459 = vcombine.high %v3457, %v3457
      %v3460 = vcombine.high %v3252, %v3252
      %v3462 = vunpack.c.l.s4 1983009808
      %v3463 = vunpack.c.0.s8 %v3462
      %v3464 = vlaneseq
      %v3465 = vshrl.u32 %v3464, 7
      %v3466 = vsub.s32 %v3463, %v3465
      %v3467 = vrot.slane %v3252, %v3466
      %v3469 = vunpack.c.l.s4 1983009808
      %v3470 = vunpack.c.0.s8 %v3469
      %v3471 = vlaneseq
      %v3472 = vshrl.u32 %v3471, 7
      %v3473 = vsub.s32 %v3470, %v3472
      %v3474 = vrot.slane %v3460, %v3473
      %v3475 = vcombine.high %v3467, %v3467
      %v3476 = vcombine.high %v3474, %v3474
      %v3477 = vcombine.high %v3253, %v3253
      %v3479 = vunpack.c.l.s4 1983009808
      %v3480 = vunpack.c.0.s8 %v3479
      %v3481 = vlaneseq
      %v3482 = vshrl.u32 %v3481, 7
      %v3483 = vsub.s32 %v3480, %v3482
      %v3484 = vrot.slane %v3253, %v3483
      %v3486 = vunpack.c.l.s4 1983009808
      %v3487 = vunpack.c.0.s8 %v3486
      %v3488 = vlaneseq
      %v3489 = vshrl.u32 %v3488, 7
      %v3490 = vsub.s32 %v3487, %v3489
      %v3491 = vrot.slane %v3477, %v3490
      %v3492 = vcombine.high %v3484, %v3484
      %v3493 = vcombine.high %v3491, %v3491
      %v3494 = vcombine.high %v3254, %v3254
      %v3496 = vunpack.c.l.s4 1983009808
      %v3497 = vunpack.c.0.s8 %v3496
      %v3498 = vlaneseq
      %v3499 = vshrl.u32 %v3498, 7
      %v3500 = vsub.s32 %v3497, %v3499
      %v3501 = vrot.slane %v3254, %v3500
      %v3503 = vunpack.c.l.s4 1983009808
      %v3504 = vunpack.c.0.s8 %v3503
      %v3505 = vlaneseq
      %v3506 = vshrl.u32 %v3505, 7
      %v3507 = vsub.s32 %v3504, %v3506
      %v3508 = vrot.slane %v3494, %v3507
      %v3509 = vcombine.high %v3501, %v3501
      %v3510 = vcombine.high %v3508, %v3508
      %v3511 = vcombine.high %v3255, %v3255
      %v3513 = vunpack.c.l.s4 1983009808
      %v3514 = vunpack.c.0.s8 %v3513
      %v3515 = vlaneseq
      %v3516 = vshrl.u32 %v3515, 7
      %v3517 = vsub.s32 %v3514, %v3516
      %v3518 = vrot.slane %v3255, %v3517
      %v3520 = vunpack.c.l.s4 1983009808
      %v3521 = vunpack.c.0.s8 %v3520
      %v3522 = vlaneseq
      %v3523 = vshrl.u32 %v3522, 7
      %v3524 = vsub.s32 %v3521, %v3523
      %v3525 = vrot.slane %v3511, %v3524
      %v3526 = vcombine.high %v3518, %v3518
      %v3527 = vcombine.high %v3525, %v3525
      %v3528 = vcombine.high %v3256, %v3256
      %v3530 = vunpack.c.l.s4 1983009808
      %v3531 = vunpack.c.0.s8 %v3530
      %v3532 = vlaneseq
      %v3533 = vshrl.u32 %v3532, 7
      %v3534 = vsub.s32 %v3531, %v3533
      %v3535 = vrot.slane %v3256, %v3534
      %v3537 = vunpack.c.l.s4 1983009808
      %v3538 = vunpack.c.0.s8 %v3537
      %v3539 = vlaneseq
      %v3540 = vshrl.u32 %v3539, 7
      %v3541 = vsub.s32 %v3538, %v3540
      %v3542 = vrot.slane %v3528, %v3541
      %v3543 = vcombine.high %v3535, %v3535
      %v3544 = vcombine.high %v3542, %v3542
      %v3545 = vcombine.high %v3257, %v3257
      %v3547 = vunpack.c.l.s4 1983009808
      %v3548 = vunpack.c.0.s8 %v3547
      %v3549 = vlaneseq
      %v3550 = vshrl.u32 %v3549, 7
      %v3551 = vsub.s32 %v3548, %v3550
      %v3552 = vrot.slane %v3257, %v3551
      %v3554 = vunpack.c.l.s4 1983009808
      %v3555 = vunpack.c.0.s8 %v3554
      %v3556 = vlaneseq
      %v3557 = vshrl.u32 %v3556, 7
      %v3558 = vsub.s32 %v3555, %v3557
      %v3559 = vrot.slane %v3545, %v3558
      %v3560 = vcombine.high %v3552, %v3552
      %v3561 = vcombine.high %v3559, %v3559
      %v3562 = vcombine.high %v3258, %v3258
      %v3564 = vunpack.c.l.s4 1983009808
      %v3565 = vunpack.c.0.s8 %v3564
      %v3566 = vlaneseq
      %v3567 = vshrl.u32 %v3566, 7
      %v3568 = vsub.s32 %v3565, %v3567
      %v3569 = vrot.slane %v3258, %v3568
      %v3571 = vunpack.c.l.s4 1983009808
      %v3572 = vunpack.c.0.s8 %v3571
      %v3573 = vlaneseq
      %v3574 = vshrl.u32 %v3573, 7
      %v3575 = vsub.s32 %v3572, %v3574
      %v3576 = vrot.slane %v3562, %v3575
      %v3577 = vcombine.high %v3569, %v3569
      %v3578 = vcombine.high %v3576, %v3576
      %v3579 = vcombine.high %v3259, %v3259
      %v3581 = vunpack.c.l.s4 1983009808
      %v3582 = vunpack.c.0.s8 %v3581
      %v3583 = vlaneseq
      %v3584 = vshrl.u32 %v3583, 7
      %v3585 = vsub.s32 %v3582, %v3584
      %v3586 = vrot.slane %v3259, %v3585
      %v3588 = vunpack.c.l.s4 1983009808
      %v3589 = vunpack.c.0.s8 %v3588
      %v3590 = vlaneseq
      %v3591 = vshrl.u32 %v3590, 7
      %v3592 = vsub.s32 %v3589, %v3591
      %v3593 = vrot.slane %v3579, %v3592
      %v3594 = vcombine.high %v3586, %v3586
      %v3595 = vcombine.high %v3593, %v3593
      %v3596 = vcombine.high %v3260, %v3260
      %v3598 = vunpack.c.l.s4 1983009808
      %v3599 = vunpack.c.0.s8 %v3598
      %v3600 = vlaneseq
      %v3601 = vshrl.u32 %v3600, 7
      %v3602 = vsub.s32 %v3599, %v3601
      %v3603 = vrot.slane %v3260, %v3602
      %v3605 = vunpack.c.l.s4 1983009808
      %v3606 = vunpack.c.0.s8 %v3605
      %v3607 = vlaneseq
      %v3608 = vshrl.u32 %v3607, 7
      %v3609 = vsub.s32 %v3606, %v3608
      %v3610 = vrot.slane %v3596, %v3609
      %v3611 = vcombine.high %v3603, %v3603
      %v3612 = vcombine.high %v3610, %v3610
      %v3613 = vcombine.high %v3261, %v3261
      %v3615 = vunpack.c.l.s4 1983009808
      %v3616 = vunpack.c.0.s8 %v3615
      %v3617 = vlaneseq
      %v3618 = vshrl.u32 %v3617, 7
      %v3619 = vsub.s32 %v3616, %v3618
      %v3620 = vrot.slane %v3261, %v3619
      %v3622 = vunpack.c.l.s4 1983009808
      %v3623 = vunpack.c.0.s8 %v3622
      %v3624 = vlaneseq
      %v3625 = vshrl.u32 %v3624, 7
      %v3626 = vsub.s32 %v3623, %v3625
      %v3627 = vrot.slane %v3613, %v3626
      %v3628 = vcombine.high %v3620, %v3620
      %v3629 = vcombine.high %v3627, %v3627
      %v3630 = vcombine.high %v3262, %v3262
      %v3632 = vunpack.c.l.s4 1983009808
      %v3633 = vunpack.c.0.s8 %v3632
      %v3634 = vlaneseq
      %v3635 = vshrl.u32 %v3634, 7
      %v3636 = vsub.s32 %v3633, %v3635
      %v3637 = vrot.slane %v3262, %v3636
      %v3639 = vunpack.c.l.s4 1983009808
      %v3640 = vunpack.c.0.s8 %v3639
      %v3641 = vlaneseq
      %v3642 = vshrl.u32 %v3641, 7
      %v3643 = vsub.s32 %v3640, %v3642
      %v3644 = vrot.slane %v3630, %v3643
      %v3645 = vcombine.high %v3637, %v3637
      %v3646 = vcombine.high %v3644, %v3644
      %v3647 = vcombine.high %v3263, %v3263
      %v3649 = vunpack.c.l.s4 1983009808
      %v3650 = vunpack.c.0.s8 %v3649
      %v3651 = vlaneseq
      %v3652 = vshrl.u32 %v3651, 7
      %v3653 = vsub.s32 %v3650, %v3652
      %v3654 = vrot.slane %v3263, %v3653
      %v3656 = vunpack.c.l.s4 1983009808
      %v3657 = vunpack.c.0.s8 %v3656
      %v3658 = vlaneseq
      %v3659 = vshrl.u32 %v3658, 7
      %v3660 = vsub.s32 %v3657, %v3659
      %v3661 = vrot.slane %v3647, %v3660
      %v3662 = vcombine.high %v3654, %v3654
      %v3663 = vcombine.high %v3661, %v3661
      %v3664 = vcombine.high %v3264, %v3264
      %v3666 = vunpack.c.l.s4 1983009808
      %v3667 = vunpack.c.0.s8 %v3666
      %v3668 = vlaneseq
      %v3669 = vshrl.u32 %v3668, 7
      %v3670 = vsub.s32 %v3667, %v3669
      %v3671 = vrot.slane %v3264, %v3670
      %v3673 = vunpack.c.l.s4 1983009808
      %v3674 = vunpack.c.0.s8 %v3673
      %v3675 = vlaneseq
      %v3676 = vshrl.u32 %v3675, 7
      %v3677 = vsub.s32 %v3674, %v3676
      %v3678 = vrot.slane %v3664, %v3677
      %v3679 = vcombine.high %v3671, %v3671
      %v3680 = vcombine.high %v3678, %v3678
      %v3681 = vcombine.high %v3265, %v3265
      %v3683 = vunpack.c.l.s4 1983009808
      %v3684 = vunpack.c.0.s8 %v3683
      %v3685 = vlaneseq
      %v3686 = vshrl.u32 %v3685, 7
      %v3687 = vsub.s32 %v3684, %v3686
      %v3688 = vrot.slane %v3265, %v3687
      %v3690 = vunpack.c.l.s4 1983009808
      %v3691 = vunpack.c.0.s8 %v3690
      %v3692 = vlaneseq
      %v3693 = vshrl.u32 %v3692, 7
      %v3694 = vsub.s32 %v3691, %v3693
      %v3695 = vrot.slane %v3681, %v3694
      %v3696 = vcombine.high %v3688, %v3688
      %v3697 = vcombine.high %v3695, %v3695
      %v3698 = vcombine.high %v3266, %v3266
      %v3700 = vunpack.c.l.s4 1983009808
      %v3701 = vunpack.c.0.s8 %v3700
      %v3702 = vlaneseq
      %v3703 = vshrl.u32 %v3702, 7
      %v3704 = vsub.s32 %v3701, %v3703
      %v3705 = vrot.slane %v3266, %v3704
      %v3707 = vunpack.c.l.s4 1983009808
      %v3708 = vunpack.c.0.s8 %v3707
      %v3709 = vlaneseq
      %v3710 = vshrl.u32 %v3709, 7
      %v3711 = vsub.s32 %v3708, %v3710
      %v3712 = vrot.slane %v3698, %v3711
      %v3713 = vcombine.high %v3705, %v3705
      %v3714 = vcombine.high %v3712, %v3712
      %v3715 = vcombine.high %v3267, %v3267
      %v3717 = vunpack.c.l.s4 1983009808
      %v3718 = vunpack.c.0.s8 %v3717
      %v3719 = vlaneseq
      %v3720 = vshrl.u32 %v3719, 7
      %v3721 = vsub.s32 %v3718, %v3720
      %v3722 = vrot.slane %v3267, %v3721
      %v3724 = vunpack.c.l.s4 1983009808
      %v3725 = vunpack.c.0.s8 %v3724
      %v3726 = vlaneseq
      %v3727 = vshrl.u32 %v3726, 7
      %v3728 = vsub.s32 %v3725, %v3727
      %v3729 = vrot.slane %v3715, %v3728
      %v3730 = vcombine.high %v3722, %v3722
      %v3731 = vcombine.high %v3729, %v3729
      %v3732 = vcombine.high %v3268, %v3268
      %v3734 = vunpack.c.l.s4 1983009808
      %v3735 = vunpack.c.0.s8 %v3734
      %v3736 = vlaneseq
      %v3737 = vshrl.u32 %v3736, 7
      %v3738 = vsub.s32 %v3735, %v3737
      %v3739 = vrot.slane %v3268, %v3738
      %v3741 = vunpack.c.l.s4 1983009808
      %v3742 = vunpack.c.0.s8 %v3741
      %v3743 = vlaneseq
      %v3744 = vshrl.u32 %v3743, 7
      %v3745 = vsub.s32 %v3742, %v3744
      %v3746 = vrot.slane %v3732, %v3745
      %v3747 = vcombine.high %v3739, %v3739
      %v3748 = vcombine.high %v3746, %v3746
      %v3749 = vcombine.high %v3269, %v3269
      %v3751 = vunpack.c.l.s4 1983009808
      %v3752 = vunpack.c.0.s8 %v3751
      %v3753 = vlaneseq
      %v3754 = vshrl.u32 %v3753, 7
      %v3755 = vsub.s32 %v3752, %v3754
      %v3756 = vrot.slane %v3269, %v3755
      %v3758 = vunpack.c.l.s4 1983009808
      %v3759 = vunpack.c.0.s8 %v3758
      %v3760 = vlaneseq
      %v3761 = vshrl.u32 %v3760, 7
      %v3762 = vsub.s32 %v3759, %v3761
      %v3763 = vrot.slane %v3749, %v3762
      %v3764 = vcombine.high %v3756, %v3756
      %v3765 = vcombine.high %v3763, %v3763
      %v3766 = vcombine.high %v3270, %v3270
      %v3768 = vunpack.c.l.s4 1983009808
      %v3769 = vunpack.c.0.s8 %v3768
      %v3770 = vlaneseq
      %v3771 = vshrl.u32 %v3770, 7
      %v3772 = vsub.s32 %v3769, %v3771
      %v3773 = vrot.slane %v3270, %v3772
      %v3775 = vunpack.c.l.s4 1983009808
      %v3776 = vunpack.c.0.s8 %v3775
      %v3777 = vlaneseq
      %v3778 = vshrl.u32 %v3777, 7
      %v3779 = vsub.s32 %v3776, %v3778
      %v3780 = vrot.slane %v3766, %v3779
      %v3781 = vcombine.high %v3773, %v3773
      %v3782 = vcombine.high %v3780, %v3780
      %v3783 = vcombine.high %v3271, %v3271
      %v3785 = vunpack.c.l.s4 1983009808
      %v3786 = vunpack.c.0.s8 %v3785
      %v3787 = vlaneseq
      %v3788 = vshrl.u32 %v3787, 7
      %v3789 = vsub.s32 %v3786, %v3788
      %v3790 = vrot.slane %v3271, %v3789
      %v3792 = vunpack.c.l.s4 1983009808
      %v3793 = vunpack.c.0.s8 %v3792
      %v3794 = vlaneseq
      %v3795 = vshrl.u32 %v3794, 7
      %v3796 = vsub.s32 %v3793, %v3795
      %v3797 = vrot.slane %v3783, %v3796
      %v3798 = vcombine.high %v3790, %v3790
      %v3799 = vcombine.high %v3797, %v3797
      %v3800 = vcombine.high %v3272, %v3272
      %v3802 = vunpack.c.l.s4 1983009808
      %v3803 = vunpack.c.0.s8 %v3802
      %v3804 = vlaneseq
      %v3805 = vshrl.u32 %v3804, 7
      %v3806 = vsub.s32 %v3803, %v3805
      %v3807 = vrot.slane %v3272, %v3806
      %v3809 = vunpack.c.l.s4 1983009808
      %v3810 = vunpack.c.0.s8 %v3809
      %v3811 = vlaneseq
      %v3812 = vshrl.u32 %v3811, 7
      %v3813 = vsub.s32 %v3810, %v3812
      %v3814 = vrot.slane %v3800, %v3813
      %v3815 = vcombine.high %v3807, %v3807
      %v3816 = vcombine.high %v3814, %v3814
      %v3817 = vcombine.high %v3273, %v3273
      %v3819 = vunpack.c.l.s4 1983009808
      %v3820 = vunpack.c.0.s8 %v3819
      %v3821 = vlaneseq
      %v3822 = vshrl.u32 %v3821, 7
      %v3823 = vsub.s32 %v3820, %v3822
      %v3824 = vrot.slane %v3273, %v3823
      %v3826 = vunpack.c.l.s4 1983009808
      %v3827 = vunpack.c.0.s8 %v3826
      %v3828 = vlaneseq
      %v3829 = vshrl.u32 %v3828, 7
      %v3830 = vsub.s32 %v3827, %v3829
      %v3831 = vrot.slane %v3817, %v3830
      %v3832 = vcombine.high %v3824, %v3824
      %v3833 = vcombine.high %v3831, %v3831
      %v3834 = vcombine.high %v3274, %v3274
      %v3836 = vunpack.c.l.s4 1983009808
      %v3837 = vunpack.c.0.s8 %v3836
      %v3838 = vlaneseq
      %v3839 = vshrl.u32 %v3838, 7
      %v3840 = vsub.s32 %v3837, %v3839
      %v3841 = vrot.slane %v3274, %v3840
      %v3843 = vunpack.c.l.s4 1983009808
      %v3844 = vunpack.c.0.s8 %v3843
      %v3845 = vlaneseq
      %v3846 = vshrl.u32 %v3845, 7
      %v3847 = vsub.s32 %v3844, %v3846
      %v3848 = vrot.slane %v3834, %v3847
      %v3849 = vcombine.high %v3841, %v3841
      %v3850 = vcombine.high %v3848, %v3848
      %vm3979 = vcmask 517120
      %v3980 = vsel %vm3979, %v3314, -inf
      %v3981 = vsel %vm3979, %v3348, -inf
      %v3982 = vmax.f32 %v3980, %v3981
      %v3983 = vrot.slane %v3982, 4
      %v3984 = vmax.f32 %v3982, %v3983
      %v3985 = vrot.slane %v3984, 2
      %v3986 = vmax.f32 %v3984, %v3985
      %v3987 = vrot.slane %v3986, 1
      %v3988 = vmax.f32 %v3986, %v3987
      %v3989 = vsel %vm3979, %v3322, -inf
      %v3990 = vsel %vm3979, %v3356, -inf
      %v3991 = vmax.f32 %v3989, %v3990
      %v3992 = vrot.slane %v3991, 4
      %v3993 = vmax.f32 %v3991, %v3992
      %v3994 = vrot.slane %v3993, 2
      %v3995 = vmax.f32 %v3993, %v3994
      %v3996 = vrot.slane %v3995, 1
      %v3997 = vmax.f32 %v3995, %v3996
      %v3998 = vsel %vm3979, %v3321, -inf
      %v3999 = vsel %vm3979, %v3355, -inf
      %v4000 = vmax.f32 %v3998, %v3999
      %v4001 = vrot.slane %v4000, 4
      %v4002 = vmax.f32 %v4000, %v4001
      %v4003 = vrot.slane %v4002, 2
      %v4004 = vmax.f32 %v4002, %v4003
      %v4005 = vrot.slane %v4004, 1
      %v4006 = vmax.f32 %v4004, %v4005
      %v4007 = vsel %vm3979, %v3323, -inf
      %v4008 = vsel %vm3979, %v3357, -inf
      %v4009 = vmax.f32 %v4007, %v4008
      %v4010 = vrot.slane %v4009, 4
      %v4011 = vmax.f32 %v4009, %v4010
      %v4012 = vrot.slane %v4011, 2
      %v4013 = vmax.f32 %v4011, %v4012
      %v4014 = vrot.slane %v4013, 1
      %v4015 = vmax.f32 %v4013, %v4014
      %v4016 = vsel %vm3979, %v3331, -inf
      %v4017 = vsel %vm3979, %v3365, -inf
      %v4018 = vmax.f32 %v4016, %v4017
      %v4019 = vrot.slane %v4018, 4
      %v4020 = vmax.f32 %v4018, %v4019
      %v4021 = vrot.slane %v4020, 2
      %v4022 = vmax.f32 %v4020, %v4021
      %v4023 = vrot.slane %v4022, 1
      %v4024 = vmax.f32 %v4022, %v4023
      %v4025 = vsel %vm3979, %v3339, -inf
      %v4026 = vsel %vm3979, %v3373, -inf
      %v4027 = vmax.f32 %v4025, %v4026
      %v4028 = vrot.slane %v4027, 4
      %v4029 = vmax.f32 %v4027, %v4028
      %v4030 = vrot.slane %v4029, 2
      %v4031 = vmax.f32 %v4029, %v4030
      %v4032 = vrot.slane %v4031, 1
      %v4033 = vmax.f32 %v4031, %v4032
      %v4034 = vsel %vm3979, %v3338, -inf
      %v4035 = vsel %vm3979, %v3372, -inf
      %v4036 = vmax.f32 %v4034, %v4035
      %v4037 = vrot.slane %v4036, 4
      %v4038 = vmax.f32 %v4036, %v4037
      %v4039 = vrot.slane %v4038, 2
      %v4040 = vmax.f32 %v4038, %v4039
      %v4041 = vrot.slane %v4040, 1
      %v4042 = vmax.f32 %v4040, %v4041
      %v4043 = vsel %vm3979, %v3340, -inf
      %v4044 = vsel %vm3979, %v3374, -inf
      %v4045 = vmax.f32 %v4043, %v4044
      %v4046 = vrot.slane %v4045, 4
      %v4047 = vmax.f32 %v4045, %v4046
      %v4048 = vrot.slane %v4047, 2
      %v4049 = vmax.f32 %v4047, %v4048
      %v4050 = vrot.slane %v4049, 1
      %v4051 = vmax.f32 %v4049, %v4050
      %v4052 = vsel %vm3979, %v3382, -inf
      %v4053 = vsel %vm3979, %v3416, -inf
      %v4054 = vmax.f32 %v4052, %v4053
      %v4055 = vrot.slane %v4054, 4
      %v4056 = vmax.f32 %v4054, %v4055
      %v4057 = vrot.slane %v4056, 2
      %v4058 = vmax.f32 %v4056, %v4057
      %v4059 = vrot.slane %v4058, 1
      %v4060 = vmax.f32 %v4058, %v4059
      %v4061 = vsel %vm3979, %v3390, -inf
      %v4062 = vsel %vm3979, %v3424, -inf
      %v4063 = vmax.f32 %v4061, %v4062
      %v4064 = vrot.slane %v4063, 4
      %v4065 = vmax.f32 %v4063, %v4064
      %v4066 = vrot.slane %v4065, 2
      %v4067 = vmax.f32 %v4065, %v4066
      %v4068 = vrot.slane %v4067, 1
      %v4069 = vmax.f32 %v4067, %v4068
      %v4070 = vsel %vm3979, %v3389, -inf
      %v4071 = vsel %vm3979, %v3423, -inf
      %v4072 = vmax.f32 %v4070, %v4071
      %v4073 = vrot.slane %v4072, 4
      %v4074 = vmax.f32 %v4072, %v4073
      %v4075 = vrot.slane %v4074, 2
      %v4076 = vmax.f32 %v4074, %v4075
      %v4077 = vrot.slane %v4076, 1
      %v4078 = vmax.f32 %v4076, %v4077
      %v4079 = vsel %vm3979, %v3391, -inf
      %v4080 = vsel %vm3979, %v3425, -inf
      %v4081 = vmax.f32 %v4079, %v4080
      %v4082 = vrot.slane %v4081, 4
      %v4083 = vmax.f32 %v4081, %v4082
      %v4084 = vrot.slane %v4083, 2
      %v4085 = vmax.f32 %v4083, %v4084
      %v4086 = vrot.slane %v4085, 1
      %v4087 = vmax.f32 %v4085, %v4086
      %v4088 = vsel %vm3979, %v3399, -inf
      %v4089 = vsel %vm3979, %v3433, -inf
      %v4090 = vmax.f32 %v4088, %v4089
      %v4091 = vrot.slane %v4090, 4
      %v4092 = vmax.f32 %v4090, %v4091
      %v4093 = vrot.slane %v4092, 2
      %v4094 = vmax.f32 %v4092, %v4093
      %v4095 = vrot.slane %v4094, 1
      %v4096 = vmax.f32 %v4094, %v4095
      %v4097 = vsel %vm3979, %v3407, -inf
      %v4098 = vsel %vm3979, %v3441, -inf
      %v4099 = vmax.f32 %v4097, %v4098
      %v4100 = vrot.slane %v4099, 4
      %v4101 = vmax.f32 %v4099, %v4100
      %v4102 = vrot.slane %v4101, 2
      %v4103 = vmax.f32 %v4101, %v4102
      %v4104 = vrot.slane %v4103, 1
      %v4105 = vmax.f32 %v4103, %v4104
      %v4106 = vsel %vm3979, %v3406, -inf
      %v4107 = vsel %vm3979, %v3440, -inf
      %v4108 = vmax.f32 %v4106, %v4107
      %v4109 = vrot.slane %v4108, 4
      %v4110 = vmax.f32 %v4108, %v4109
      %v4111 = vrot.slane %v4110, 2
      %v4112 = vmax.f32 %v4110, %v4111
      %v4113 = vrot.slane %v4112, 1
      %v4114 = vmax.f32 %v4112, %v4113
      %v4115 = vsel %vm3979, %v3408, -inf
      %v4116 = vsel %vm3979, %v3442, -inf
      %v4117 = vmax.f32 %v4115, %v4116
      %v4118 = vrot.slane %v4117, 4
      %v4119 = vmax.f32 %v4117, %v4118
      %v4120 = vrot.slane %v4119, 2
      %v4121 = vmax.f32 %v4119, %v4120
      %v4122 = vrot.slane %v4121, 1
      %v4123 = vmax.f32 %v4121, %v4122
      %v4124 = vsel %vm3979, %v3450, -inf
      %v4125 = vsel %vm3979, %v3484, -inf
      %v4126 = vmax.f32 %v4124, %v4125
      %v4127 = vrot.slane %v4126, 4
      %v4128 = vmax.f32 %v4126, %v4127
      %v4129 = vrot.slane %v4128, 2
      %v4130 = vmax.f32 %v4128, %v4129
      %v4131 = vrot.slane %v4130, 1
      %v4132 = vmax.f32 %v4130, %v4131
      %v4133 = vsel %vm3979, %v3458, -inf
      %v4134 = vsel %vm3979, %v3492, -inf
      %v4135 = vmax.f32 %v4133, %v4134
      %v4136 = vrot.slane %v4135, 4
      %v4137 = vmax.f32 %v4135, %v4136
      %v4138 = vrot.slane %v4137, 2
      %v4139 = vmax.f32 %v4137, %v4138
      %v4140 = vrot.slane %v4139, 1
      %v4141 = vmax.f32 %v4139, %v4140
      %v4142 = vsel %vm3979, %v3457, -inf
      %v4143 = vsel %vm3979, %v3491, -inf
      %v4144 = vmax.f32 %v4142, %v4143
      %v4145 = vrot.slane %v4144, 4
      %v4146 = vmax.f32 %v4144, %v4145
      %v4147 = vrot.slane %v4146, 2
      %v4148 = vmax.f32 %v4146, %v4147
      %v4149 = vrot.slane %v4148, 1
      %v4150 = vmax.f32 %v4148, %v4149
      %v4151 = vsel %vm3979, %v3459, -inf
      %v4152 = vsel %vm3979, %v3493, -inf
      %v4153 = vmax.f32 %v4151, %v4152
      %v4154 = vrot.slane %v4153, 4
      %v4155 = vmax.f32 %v4153, %v4154
      %v4156 = vrot.slane %v4155, 2
      %v4157 = vmax.f32 %v4155, %v4156
      %v4158 = vrot.slane %v4157, 1
      %v4159 = vmax.f32 %v4157, %v4158
      %v4160 = vsel %vm3979, %v3467, -inf
      %v4161 = vsel %vm3979, %v3501, -inf
      %v4162 = vmax.f32 %v4160, %v4161
      %v4163 = vrot.slane %v4162, 4
      %v4164 = vmax.f32 %v4162, %v4163
      %v4165 = vrot.slane %v4164, 2
      %v4166 = vmax.f32 %v4164, %v4165
      %v4167 = vrot.slane %v4166, 1
      %v4168 = vmax.f32 %v4166, %v4167
      %v4169 = vsel %vm3979, %v3475, -inf
      %v4170 = vsel %vm3979, %v3509, -inf
      %v4171 = vmax.f32 %v4169, %v4170
      %v4172 = vrot.slane %v4171, 4
      %v4173 = vmax.f32 %v4171, %v4172
      %v4174 = vrot.slane %v4173, 2
      %v4175 = vmax.f32 %v4173, %v4174
      %v4176 = vrot.slane %v4175, 1
      %v4177 = vmax.f32 %v4175, %v4176
      %v4178 = vsel %vm3979, %v3474, -inf
      %v4179 = vsel %vm3979, %v3508, -inf
      %v4180 = vmax.f32 %v4178, %v4179
      %v4181 = vrot.slane %v4180, 4
      %v4182 = vmax.f32 %v4180, %v4181
      %v4183 = vrot.slane %v4182, 2
      %v4184 = vmax.f32 %v4182, %v4183
      %v4185 = vrot.slane %v4184, 1
      %v4186 = vmax.f32 %v4184, %v4185
      %v4187 = vsel %vm3979, %v3476, -inf
      %v4188 = vsel %vm3979, %v3510, -inf
      %v4189 = vmax.f32 %v4187, %v4188
      %v4190 = vrot.slane %v4189, 4
      %v4191 = vmax.f32 %v4189, %v4190
      %v4192 = vrot.slane %v4191, 2
      %v4193 = vmax.f32 %v4191, %v4192
      %v4194 = vrot.slane %v4193, 1
      %v4195 = vmax.f32 %v4193, %v4194
      %v4196 = vsel %vm3979, %v3518, -inf
      %v4197 = vsel %vm3979, %v3552, -inf
      %v4198 = vmax.f32 %v4196, %v4197
      %v4199 = vrot.slane %v4198, 4
      %v4200 = vmax.f32 %v4198, %v4199
      %v4201 = vrot.slane %v4200, 2
      %v4202 = vmax.f32 %v4200, %v4201
      %v4203 = vrot.slane %v4202, 1
      %v4204 = vmax.f32 %v4202, %v4203
      %v4205 = vsel %vm3979, %v3526, -inf
      %v4206 = vsel %vm3979, %v3560, -inf
      %v4207 = vmax.f32 %v4205, %v4206
      %v4208 = vrot.slane %v4207, 4
      %v4209 = vmax.f32 %v4207, %v4208
      %v4210 = vrot.slane %v4209, 2
      %v4211 = vmax.f32 %v4209, %v4210
      %v4212 = vrot.slane %v4211, 1
      %v4213 = vmax.f32 %v4211, %v4212
      %v4214 = vsel %vm3979, %v3525, -inf
      %v4215 = vsel %vm3979, %v3559, -inf
      %v4216 = vmax.f32 %v4214, %v4215
      %v4217 = vrot.slane %v4216, 4
      %v4218 = vmax.f32 %v4216, %v4217
      %v4219 = vrot.slane %v4218, 2
      %v4220 = vmax.f32 %v4218, %v4219
      %v4221 = vrot.slane %v4220, 1
      %v4222 = vmax.f32 %v4220, %v4221
      %v4223 = vsel %vm3979, %v3527, -inf
      %v4224 = vsel %vm3979, %v3561, -inf
      %v4225 = vmax.f32 %v4223, %v4224
      %v4226 = vrot.slane %v4225, 4
      %v4227 = vmax.f32 %v4225, %v4226
      %v4228 = vrot.slane %v4227, 2
      %v4229 = vmax.f32 %v4227, %v4228
      %v4230 = vrot.slane %v4229, 1
      %v4231 = vmax.f32 %v4229, %v4230
      %v4232 = vsel %vm3979, %v3535, -inf
      %v4233 = vsel %vm3979, %v3569, -inf
      %v4234 = vmax.f32 %v4232, %v4233
      %v4235 = vrot.slane %v4234, 4
      %v4236 = vmax.f32 %v4234, %v4235
      %v4237 = vrot.slane %v4236, 2
      %v4238 = vmax.f32 %v4236, %v4237
      %v4239 = vrot.slane %v4238, 1
      %v4240 = vmax.f32 %v4238, %v4239
      %v4241 = vsel %vm3979, %v3543, -inf
      %v4242 = vsel %vm3979, %v3577, -inf
      %v4243 = vmax.f32 %v4241, %v4242
      %v4244 = vrot.slane %v4243, 4
      %v4245 = vmax.f32 %v4243, %v4244
      %v4246 = vrot.slane %v4245, 2
      %v4247 = vmax.f32 %v4245, %v4246
      %v4248 = vrot.slane %v4247, 1
      %v4249 = vmax.f32 %v4247, %v4248
      %v4250 = vsel %vm3979, %v3542, -inf
      %v4251 = vsel %vm3979, %v3576, -inf
      %v4252 = vmax.f32 %v4250, %v4251
      %v4253 = vrot.slane %v4252, 4
      %v4254 = vmax.f32 %v4252, %v4253
      %v4255 = vrot.slane %v4254, 2
      %v4256 = vmax.f32 %v4254, %v4255
      %v4257 = vrot.slane %v4256, 1
      %v4258 = vmax.f32 %v4256, %v4257
      %v4259 = vsel %vm3979, %v3544, -inf
      %v4260 = vsel %vm3979, %v3578, -inf
      %v4261 = vmax.f32 %v4259, %v4260
      %v4262 = vrot.slane %v4261, 4
      %v4263 = vmax.f32 %v4261, %v4262
      %v4264 = vrot.slane %v4263, 2
      %v4265 = vmax.f32 %v4263, %v4264
      %v4266 = vrot.slane %v4265, 1
      %v4267 = vmax.f32 %v4265, %v4266
      %v4268 = vsel %vm3979, %v3586, -inf
      %v4269 = vsel %vm3979, %v3620, -inf
      %v4270 = vmax.f32 %v4268, %v4269
      %v4271 = vrot.slane %v4270, 4
      %v4272 = vmax.f32 %v4270, %v4271
      %v4273 = vrot.slane %v4272, 2
      %v4274 = vmax.f32 %v4272, %v4273
      %v4275 = vrot.slane %v4274, 1
      %v4276 = vmax.f32 %v4274, %v4275
      %v4277 = vsel %vm3979, %v3594, -inf
      %v4278 = vsel %vm3979, %v3628, -inf
      %v4279 = vmax.f32 %v4277, %v4278
      %v4280 = vrot.slane %v4279, 4
      %v4281 = vmax.f32 %v4279, %v4280
      %v4282 = vrot.slane %v4281, 2
      %v4283 = vmax.f32 %v4281, %v4282
      %v4284 = vrot.slane %v4283, 1
      %v4285 = vmax.f32 %v4283, %v4284
      %v4286 = vsel %vm3979, %v3593, -inf
      %v4287 = vsel %vm3979, %v3627, -inf
      %v4288 = vmax.f32 %v4286, %v4287
      %v4289 = vrot.slane %v4288, 4
      %v4290 = vmax.f32 %v4288, %v4289
      %v4291 = vrot.slane %v4290, 2
      %v4292 = vmax.f32 %v4290, %v4291
      %v4293 = vrot.slane %v4292, 1
      %v4294 = vmax.f32 %v4292, %v4293
      %v4295 = vsel %vm3979, %v3595, -inf
      %v4296 = vsel %vm3979, %v3629, -inf
      %v4297 = vmax.f32 %v4295, %v4296
      %v4298 = vrot.slane %v4297, 4
      %v4299 = vmax.f32 %v4297, %v4298
      %v4300 = vrot.slane %v4299, 2
      %v4301 = vmax.f32 %v4299, %v4300
      %v4302 = vrot.slane %v4301, 1
      %v4303 = vmax.f32 %v4301, %v4302
      %v4304 = vsel %vm3979, %v3603, -inf
      %v4305 = vsel %vm3979, %v3637, -inf
      %v4306 = vmax.f32 %v4304, %v4305
      %v4307 = vrot.slane %v4306, 4
      %v4308 = vmax.f32 %v4306, %v4307
      %v4309 = vrot.slane %v4308, 2
      %v4310 = vmax.f32 %v4308, %v4309
      %v4311 = vrot.slane %v4310, 1
      %v4312 = vmax.f32 %v4310, %v4311
      %v4313 = vsel %vm3979, %v3611, -inf
      %v4314 = vsel %vm3979, %v3645, -inf
      %v4315 = vmax.f32 %v4313, %v4314
      %v4316 = vrot.slane %v4315, 4
      %v4317 = vmax.f32 %v4315, %v4316
      %v4318 = vrot.slane %v4317, 2
      %v4319 = vmax.f32 %v4317, %v4318
      %v4320 = vrot.slane %v4319, 1
      %v4321 = vmax.f32 %v4319, %v4320
      %v4322 = vsel %vm3979, %v3610, -inf
      %v4323 = vsel %vm3979, %v3644, -inf
      %v4324 = vmax.f32 %v4322, %v4323
      %v4325 = vrot.slane %v4324, 4
      %v4326 = vmax.f32 %v4324, %v4325
      %v4327 = vrot.slane %v4326, 2
      %v4328 = vmax.f32 %v4326, %v4327
      %v4329 = vrot.slane %v4328, 1
      %v4330 = vmax.f32 %v4328, %v4329
      %v4331 = vsel %vm3979, %v3612, -inf
      %v4332 = vsel %vm3979, %v3646, -inf
      %v4333 = vmax.f32 %v4331, %v4332
      %v4334 = vrot.slane %v4333, 4
      %v4335 = vmax.f32 %v4333, %v4334
      %v4336 = vrot.slane %v4335, 2
      %v4337 = vmax.f32 %v4335, %v4336
      %v4338 = vrot.slane %v4337, 1
      %v4339 = vmax.f32 %v4337, %v4338
      %v4340 = vsel %vm3979, %v3654, -inf
      %v4341 = vsel %vm3979, %v3688, -inf
      %v4342 = vmax.f32 %v4340, %v4341
      %v4343 = vrot.slane %v4342, 4
      %v4344 = vmax.f32 %v4342, %v4343
      %v4345 = vrot.slane %v4344, 2
      %v4346 = vmax.f32 %v4344, %v4345
      %v4347 = vrot.slane %v4346, 1
      %v4348 = vmax.f32 %v4346, %v4347
      %v4349 = vsel %vm3979, %v3662, -inf
      %v4350 = vsel %vm3979, %v3696, -inf
      %v4351 = vmax.f32 %v4349, %v4350
      %v4352 = vrot.slane %v4351, 4
      %v4353 = vmax.f32 %v4351, %v4352
      %v4354 = vrot.slane %v4353, 2
      %v4355 = vmax.f32 %v4353, %v4354
      %v4356 = vrot.slane %v4355, 1
      %v4357 = vmax.f32 %v4355, %v4356
      %v4358 = vsel %vm3979, %v3661, -inf
      %v4359 = vsel %vm3979, %v3695, -inf
      %v4360 = vmax.f32 %v4358, %v4359
      %v4361 = vrot.slane %v4360, 4
      %v4362 = vmax.f32 %v4360, %v4361
      %v4363 = vrot.slane %v4362, 2
      %v4364 = vmax.f32 %v4362, %v4363
      %v4365 = vrot.slane %v4364, 1
      %v4366 = vmax.f32 %v4364, %v4365
      %v4367 = vsel %vm3979, %v3663, -inf
      %v4368 = vsel %vm3979, %v3697, -inf
      %v4369 = vmax.f32 %v4367, %v4368
      %v4370 = vrot.slane %v4369, 4
      %v4371 = vmax.f32 %v4369, %v4370
      %v4372 = vrot.slane %v4371, 2
      %v4373 = vmax.f32 %v4371, %v4372
      %v4374 = vrot.slane %v4373, 1
      %v4375 = vmax.f32 %v4373, %v4374
      %v4376 = vsel %vm3979, %v3671, -inf
      %v4377 = vsel %vm3979, %v3705, -inf
      %v4378 = vmax.f32 %v4376, %v4377
      %v4379 = vrot.slane %v4378, 4
      %v4380 = vmax.f32 %v4378, %v4379
      %v4381 = vrot.slane %v4380, 2
      %v4382 = vmax.f32 %v4380, %v4381
      %v4383 = vrot.slane %v4382, 1
      %v4384 = vmax.f32 %v4382, %v4383
      %v4385 = vsel %vm3979, %v3679, -inf
      %v4386 = vsel %vm3979, %v3713, -inf
      %v4387 = vmax.f32 %v4385, %v4386
      %v4388 = vrot.slane %v4387, 4
      %v4389 = vmax.f32 %v4387, %v4388
      %v4390 = vrot.slane %v4389, 2
      %v4391 = vmax.f32 %v4389, %v4390
      %v4392 = vrot.slane %v4391, 1
      %v4393 = vmax.f32 %v4391, %v4392
      %v4394 = vsel %vm3979, %v3678, -inf
      %v4395 = vsel %vm3979, %v3712, -inf
      %v4396 = vmax.f32 %v4394, %v4395
      %v4397 = vrot.slane %v4396, 4
      %v4398 = vmax.f32 %v4396, %v4397
      %v4399 = vrot.slane %v4398, 2
      %v4400 = vmax.f32 %v4398, %v4399
      %v4401 = vrot.slane %v4400, 1
      %v4402 = vmax.f32 %v4400, %v4401
      %v4403 = vsel %vm3979, %v3680, -inf
      %v4404 = vsel %vm3979, %v3714, -inf
      %v4405 = vmax.f32 %v4403, %v4404
      %v4406 = vrot.slane %v4405, 4
      %v4407 = vmax.f32 %v4405, %v4406
      %v4408 = vrot.slane %v4407, 2
      %v4409 = vmax.f32 %v4407, %v4408
      %v4410 = vrot.slane %v4409, 1
      %v4411 = vmax.f32 %v4409, %v4410
      %v4412 = vsel %vm3979, %v3722, -inf
      %v4413 = vsel %vm3979, %v3756, -inf
      %v4414 = vmax.f32 %v4412, %v4413
      %v4415 = vrot.slane %v4414, 4
      %v4416 = vmax.f32 %v4414, %v4415
      %v4417 = vrot.slane %v4416, 2
      %v4418 = vmax.f32 %v4416, %v4417
      %v4419 = vrot.slane %v4418, 1
      %v4420 = vmax.f32 %v4418, %v4419
      %v4421 = vsel %vm3979, %v3730, -inf
      %v4422 = vsel %vm3979, %v3764, -inf
      %v4423 = vmax.f32 %v4421, %v4422
      %v4424 = vrot.slane %v4423, 4
      %v4425 = vmax.f32 %v4423, %v4424
      %v4426 = vrot.slane %v4425, 2
      %v4427 = vmax.f32 %v4425, %v4426
      %v4428 = vrot.slane %v4427, 1
      %v4429 = vmax.f32 %v4427, %v4428
      %v4430 = vsel %vm3979, %v3729, -inf
      %v4431 = vsel %vm3979, %v3763, -inf
      %v4432 = vmax.f32 %v4430, %v4431
      %v4433 = vrot.slane %v4432, 4
      %v4434 = vmax.f32 %v4432, %v4433
      %v4435 = vrot.slane %v4434, 2
      %v4436 = vmax.f32 %v4434, %v4435
      %v4437 = vrot.slane %v4436, 1
      %v4438 = vmax.f32 %v4436, %v4437
      %v4439 = vsel %vm3979, %v3731, -inf
      %v4440 = vsel %vm3979, %v3765, -inf
      %v4441 = vmax.f32 %v4439, %v4440
      %v4442 = vrot.slane %v4441, 4
      %v4443 = vmax.f32 %v4441, %v4442
      %v4444 = vrot.slane %v4443, 2
      %v4445 = vmax.f32 %v4443, %v4444
      %v4446 = vrot.slane %v4445, 1
      %v4447 = vmax.f32 %v4445, %v4446
      %v4448 = vsel %vm3979, %v3739, -inf
      %v4449 = vsel %vm3979, %v3773, -inf
      %v4450 = vmax.f32 %v4448, %v4449
      %v4451 = vrot.slane %v4450, 4
      %v4452 = vmax.f32 %v4450, %v4451
      %v4453 = vrot.slane %v4452, 2
      %v4454 = vmax.f32 %v4452, %v4453
      %v4455 = vrot.slane %v4454, 1
      %v4456 = vmax.f32 %v4454, %v4455
      %v4457 = vsel %vm3979, %v3747, -inf
      %v4458 = vsel %vm3979, %v3781, -inf
      %v4459 = vmax.f32 %v4457, %v4458
      %v4460 = vrot.slane %v4459, 4
      %v4461 = vmax.f32 %v4459, %v4460
      %v4462 = vrot.slane %v4461, 2
      %v4463 = vmax.f32 %v4461, %v4462
      %v4464 = vrot.slane %v4463, 1
      %v4465 = vmax.f32 %v4463, %v4464
      %v4466 = vsel %vm3979, %v3746, -inf
      %v4467 = vsel %vm3979, %v3780, -inf
      %v4468 = vmax.f32 %v4466, %v4467
      %v4469 = vrot.slane %v4468, 4
      %v4470 = vmax.f32 %v4468, %v4469
      %v4471 = vrot.slane %v4470, 2
      %v4472 = vmax.f32 %v4470, %v4471
      %v4473 = vrot.slane %v4472, 1
      %v4474 = vmax.f32 %v4472, %v4473
      %v4475 = vsel %vm3979, %v3748, -inf
      %v4476 = vsel %vm3979, %v3782, -inf
      %v4477 = vmax.f32 %v4475, %v4476
      %v4478 = vrot.slane %v4477, 4
      %v4479 = vmax.f32 %v4477, %v4478
      %v4480 = vrot.slane %v4479, 2
      %v4481 = vmax.f32 %v4479, %v4480
      %v4482 = vrot.slane %v4481, 1
      %v4483 = vmax.f32 %v4481, %v4482
      %v4484 = vsel %vm3979, %v3790, -inf
      %v4485 = vsel %vm3979, %v3824, -inf
      %v4486 = vmax.f32 %v4484, %v4485
      %v4487 = vrot.slane %v4486, 4
      %v4488 = vmax.f32 %v4486, %v4487
      %v4489 = vrot.slane %v4488, 2
      %v4490 = vmax.f32 %v4488, %v4489
      %v4491 = vrot.slane %v4490, 1
      %v4492 = vmax.f32 %v4490, %v4491
      %v4493 = vsel %vm3979, %v3798, -inf
      %v4494 = vsel %vm3979, %v3832, -inf
      %v4495 = vmax.f32 %v4493, %v4494
      %v4496 = vrot.slane %v4495, 4
      %v4497 = vmax.f32 %v4495, %v4496
      %v4498 = vrot.slane %v4497, 2
      %v4499 = vmax.f32 %v4497, %v4498
      %v4500 = vrot.slane %v4499, 1
      %v4501 = vmax.f32 %v4499, %v4500
      %v4502 = vsel %vm3979, %v3797, -inf
      %v4503 = vsel %vm3979, %v3831, -inf
      %v4504 = vmax.f32 %v4502, %v4503
      %v4505 = vrot.slane %v4504, 4
      %v4506 = vmax.f32 %v4504, %v4505
      %v4507 = vrot.slane %v4506, 2
      %v4508 = vmax.f32 %v4506, %v4507
      %v4509 = vrot.slane %v4508, 1
      %v4510 = vmax.f32 %v4508, %v4509
      %v4511 = vsel %vm3979, %v3799, -inf
      %v4512 = vsel %vm3979, %v3833, -inf
      %v4513 = vmax.f32 %v4511, %v4512
      %v4514 = vrot.slane %v4513, 4
      %v4515 = vmax.f32 %v4513, %v4514
      %v4516 = vrot.slane %v4515, 2
      %v4517 = vmax.f32 %v4515, %v4516
      %v4518 = vrot.slane %v4517, 1
      %v4519 = vmax.f32 %v4517, %v4518
      %v4520 = vsel %vm3979, %v3807, -inf
      %v4521 = vsel %vm3979, %v3841, -inf
      %v4522 = vmax.f32 %v4520, %v4521
      %v4523 = vrot.slane %v4522, 4
      %v4524 = vmax.f32 %v4522, %v4523
      %v4525 = vrot.slane %v4524, 2
      %v4526 = vmax.f32 %v4524, %v4525
      %v4527 = vrot.slane %v4526, 1
      %v4528 = vmax.f32 %v4526, %v4527
      %v4529 = vsel %vm3979, %v3815, -inf
      %v4530 = vsel %vm3979, %v3849, -inf
      %v4531 = vmax.f32 %v4529, %v4530
      %v4532 = vrot.slane %v4531, 4
      %v4533 = vmax.f32 %v4531, %v4532
      %v4534 = vrot.slane %v4533, 2
      %v4535 = vmax.f32 %v4533, %v4534
      %v4536 = vrot.slane %v4535, 1
      %v4537 = vmax.f32 %v4535, %v4536
      %v4538 = vsel %vm3979, %v3814, -inf
      %v4539 = vsel %vm3979, %v3848, -inf
      %v4540 = vmax.f32 %v4538, %v4539
      %v4541 = vrot.slane %v4540, 4
      %v4542 = vmax.f32 %v4540, %v4541
      %v4543 = vrot.slane %v4542, 2
      %v4544 = vmax.f32 %v4542, %v4543
      %v4545 = vrot.slane %v4544, 1
      %v4546 = vmax.f32 %v4544, %v4545
      %v4547 = vsel %vm3979, %v3816, -inf
      %v4548 = vsel %vm3979, %v3850, -inf
      %v4549 = vmax.f32 %v4547, %v4548
      %v4550 = vrot.slane %v4549, 4
      %v4551 = vmax.f32 %v4549, %v4550
      %v4552 = vrot.slane %v4551, 2
      %v4553 = vmax.f32 %v4551, %v4552
      %v4554 = vrot.slane %v4553, 1
      %v4555 = vmax.f32 %v4553, %v4554
      %v4556 = vpack.c.bf16 %v3988, %v3988
      %v4557 = vpack.c.bf16 %v3997, %v3997
      %v4558 = vpack.c.bf16 %v4006, %v4006
      %v4559 = vpack.c.bf16 %v4015, %v4015
      %v4560 = vpack.c.bf16 %v4024, %v4024
      %v4561 = vpack.c.bf16 %v4033, %v4033
      %v4562 = vpack.c.bf16 %v4042, %v4042
      %v4563 = vpack.c.bf16 %v4051, %v4051
      %v4564 = vpack.c.bf16 %v4060, %v4060
      %v4565 = vpack.c.bf16 %v4069, %v4069
      %v4566 = vpack.c.bf16 %v4078, %v4078
      %v4567 = vpack.c.bf16 %v4087, %v4087
      %v4568 = vpack.c.bf16 %v4096, %v4096
      %v4569 = vpack.c.bf16 %v4105, %v4105
      %v4570 = vpack.c.bf16 %v4114, %v4114
      %v4571 = vpack.c.bf16 %v4123, %v4123
      %v4572 = vpack.c.bf16 %v4132, %v4132
      %v4573 = vpack.c.bf16 %v4141, %v4141
      %v4574 = vpack.c.bf16 %v4150, %v4150
      %v4575 = vpack.c.bf16 %v4159, %v4159
      %v4576 = vpack.c.bf16 %v4168, %v4168
      %v4577 = vpack.c.bf16 %v4177, %v4177
      %v4578 = vpack.c.bf16 %v4186, %v4186
      %v4579 = vpack.c.bf16 %v4195, %v4195
      %v4580 = vpack.c.bf16 %v4204, %v4204
      %v4581 = vpack.c.bf16 %v4213, %v4213
      %v4582 = vpack.c.bf16 %v4222, %v4222
      %v4583 = vpack.c.bf16 %v4231, %v4231
      %v4584 = vpack.c.bf16 %v4240, %v4240
      %v4585 = vpack.c.bf16 %v4249, %v4249
      %v4586 = vpack.c.bf16 %v4258, %v4258
      %v4587 = vpack.c.bf16 %v4267, %v4267
      %v4588 = vpack.c.bf16 %v4276, %v4276
      %v4589 = vpack.c.bf16 %v4285, %v4285
      %v4590 = vpack.c.bf16 %v4294, %v4294
      %v4591 = vpack.c.bf16 %v4303, %v4303
      %v4592 = vpack.c.bf16 %v4312, %v4312
      %v4593 = vpack.c.bf16 %v4321, %v4321
      %v4594 = vpack.c.bf16 %v4330, %v4330
      %v4595 = vpack.c.bf16 %v4339, %v4339
      %v4596 = vpack.c.bf16 %v4348, %v4348
      %v4597 = vpack.c.bf16 %v4357, %v4357
      %v4598 = vpack.c.bf16 %v4366, %v4366
      %v4599 = vpack.c.bf16 %v4375, %v4375
      %v4600 = vpack.c.bf16 %v4384, %v4384
      %v4601 = vpack.c.bf16 %v4393, %v4393
      %v4602 = vpack.c.bf16 %v4402, %v4402
      %v4603 = vpack.c.bf16 %v4411, %v4411
      %v4604 = vpack.c.bf16 %v4420, %v4420
      %v4605 = vpack.c.bf16 %v4429, %v4429
      %v4606 = vpack.c.bf16 %v4438, %v4438
      %v4607 = vpack.c.bf16 %v4447, %v4447
      %v4608 = vpack.c.bf16 %v4456, %v4456
      %v4609 = vpack.c.bf16 %v4465, %v4465
      %v4610 = vpack.c.bf16 %v4474, %v4474
      %v4611 = vpack.c.bf16 %v4483, %v4483
      %v4612 = vpack.c.bf16 %v4492, %v4492
      %v4613 = vpack.c.bf16 %v4501, %v4501
      %v4614 = vpack.c.bf16 %v4510, %v4510
      %v4615 = vpack.c.bf16 %v4519, %v4519
      %v4616 = vpack.c.bf16 %v4528, %v4528
      %v4617 = vpack.c.bf16 %v4537, %v4537
      %v4618 = vpack.c.bf16 %v4546, %v4546
      %v4619 = vpack.c.bf16 %v4555, %v4555
      %v4684 = vunpack.c.l.b16 %v4556
      %v4685 = vunpack.c.l.b16 %v4557
      %v4686 = vunpack.c.l.b16 %v4558
      %v4687 = vunpack.c.l.b16 %v4559
      %v4688 = vunpack.c.l.b16 %v4560
      %v4689 = vunpack.c.l.b16 %v4561
      %v4690 = vunpack.c.l.b16 %v4562
      %v4691 = vunpack.c.l.b16 %v4563
      %v4692 = vunpack.c.l.b16 %v4564
      %v4693 = vunpack.c.l.b16 %v4565
      %v4694 = vunpack.c.l.b16 %v4566
      %v4695 = vunpack.c.l.b16 %v4567
      %v4696 = vunpack.c.l.b16 %v4568
      %v4697 = vunpack.c.l.b16 %v4569
      %v4698 = vunpack.c.l.b16 %v4570
      %v4699 = vunpack.c.l.b16 %v4571
      %v4700 = vunpack.c.l.b16 %v4572
      %v4701 = vunpack.c.l.b16 %v4573
      %v4702 = vunpack.c.l.b16 %v4574
      %v4703 = vunpack.c.l.b16 %v4575
      %v4704 = vunpack.c.l.b16 %v4576
      %v4705 = vunpack.c.l.b16 %v4577
      %v4706 = vunpack.c.l.b16 %v4578
      %v4707 = vunpack.c.l.b16 %v4579
      %v4708 = vunpack.c.l.b16 %v4580
      %v4709 = vunpack.c.l.b16 %v4581
      %v4710 = vunpack.c.l.b16 %v4582
      %v4711 = vunpack.c.l.b16 %v4583
      %v4712 = vunpack.c.l.b16 %v4584
      %v4713 = vunpack.c.l.b16 %v4585
      %v4714 = vunpack.c.l.b16 %v4586
      %v4715 = vunpack.c.l.b16 %v4587
      %v4716 = vunpack.c.l.b16 %v4588
      %v4717 = vunpack.c.l.b16 %v4589
      %v4718 = vunpack.c.l.b16 %v4590
      %v4719 = vunpack.c.l.b16 %v4591
      %v4720 = vunpack.c.l.b16 %v4592
      %v4721 = vunpack.c.l.b16 %v4593
      %v4722 = vunpack.c.l.b16 %v4594
      %v4723 = vunpack.c.l.b16 %v4595
      %v4724 = vunpack.c.l.b16 %v4596
      %v4725 = vunpack.c.l.b16 %v4597
      %v4726 = vunpack.c.l.b16 %v4598
      %v4727 = vunpack.c.l.b16 %v4599
      %v4728 = vunpack.c.l.b16 %v4600
      %v4729 = vunpack.c.l.b16 %v4601
      %v4730 = vunpack.c.l.b16 %v4602
      %v4731 = vunpack.c.l.b16 %v4603
      %v4732 = vunpack.c.l.b16 %v4604
      %v4733 = vunpack.c.l.b16 %v4605
      %v4734 = vunpack.c.l.b16 %v4606
      %v4735 = vunpack.c.l.b16 %v4607
      %v4736 = vunpack.c.l.b16 %v4608
      %v4737 = vunpack.c.l.b16 %v4609
      %v4738 = vunpack.c.l.b16 %v4610
      %v4739 = vunpack.c.l.b16 %v4611
      %v4740 = vunpack.c.l.b16 %v4612
      %v4741 = vunpack.c.l.b16 %v4613
      %v4742 = vunpack.c.l.b16 %v4614
      %v4743 = vunpack.c.l.b16 %v4615
      %v4744 = vunpack.c.l.b16 %v4616
      %v4745 = vunpack.c.l.b16 %v4617
      %v4746 = vunpack.c.l.b16 %v4618
      %v4747 = vunpack.c.l.b16 %v4619
      %v4748 = vpack.c.b16 %v4684, %v4684
      %v4749 = vpack.c.b16 %v4685, %v4685
      %v4750 = vpack.c.b16 %v4686, %v4686
      %v4751 = vpack.c.b16 %v4687, %v4687
      %v4752 = vpack.c.b16 %v4688, %v4688
      %v4753 = vpack.c.b16 %v4689, %v4689
      %v4754 = vpack.c.b16 %v4690, %v4690
      %v4755 = vpack.c.b16 %v4691, %v4691
      %v4756 = vpack.c.b16 %v4692, %v4692
      %v4757 = vpack.c.b16 %v4693, %v4693
      %v4758 = vpack.c.b16 %v4694, %v4694
      %v4759 = vpack.c.b16 %v4695, %v4695
      %v4760 = vpack.c.b16 %v4696, %v4696
      %v4761 = vpack.c.b16 %v4697, %v4697
      %v4762 = vpack.c.b16 %v4698, %v4698
      %v4763 = vpack.c.b16 %v4699, %v4699
      %v4764 = vpack.c.b16 %v4700, %v4700
      %v4765 = vpack.c.b16 %v4701, %v4701
      %v4766 = vpack.c.b16 %v4702, %v4702
      %v4767 = vpack.c.b16 %v4703, %v4703
      %v4768 = vpack.c.b16 %v4704, %v4704
      %v4769 = vpack.c.b16 %v4705, %v4705
      %v4770 = vpack.c.b16 %v4706, %v4706
      %v4771 = vpack.c.b16 %v4707, %v4707
      %v4772 = vpack.c.b16 %v4708, %v4708
      %v4773 = vpack.c.b16 %v4709, %v4709
      %v4774 = vpack.c.b16 %v4710, %v4710
      %v4775 = vpack.c.b16 %v4711, %v4711
      %v4776 = vpack.c.b16 %v4712, %v4712
      %v4777 = vpack.c.b16 %v4713, %v4713
      %v4778 = vpack.c.b16 %v4714, %v4714
      %v4779 = vpack.c.b16 %v4715, %v4715
      %v4780 = vpack.c.b16 %v4716, %v4716
      %v4781 = vpack.c.b16 %v4717, %v4717
      %v4782 = vpack.c.b16 %v4718, %v4718
      %v4783 = vpack.c.b16 %v4719, %v4719
      %v4784 = vpack.c.b16 %v4720, %v4720
      %v4785 = vpack.c.b16 %v4721, %v4721
      %v4786 = vpack.c.b16 %v4722, %v4722
      %v4787 = vpack.c.b16 %v4723, %v4723
      %v4788 = vpack.c.b16 %v4724, %v4724
      %v4789 = vpack.c.b16 %v4725, %v4725
      %v4790 = vpack.c.b16 %v4726, %v4726
      %v4791 = vpack.c.b16 %v4727, %v4727
      %v4792 = vpack.c.b16 %v4728, %v4728
      %v4793 = vpack.c.b16 %v4729, %v4729
      %v4794 = vpack.c.b16 %v4730, %v4730
      %v4795 = vpack.c.b16 %v4731, %v4731
      %v4796 = vpack.c.b16 %v4732, %v4732
      %v4797 = vpack.c.b16 %v4733, %v4733
      %v4798 = vpack.c.b16 %v4734, %v4734
      %v4799 = vpack.c.b16 %v4735, %v4735
      %v4800 = vpack.c.b16 %v4736, %v4736
      %v4801 = vpack.c.b16 %v4737, %v4737
      %v4802 = vpack.c.b16 %v4738, %v4738
      %v4803 = vpack.c.b16 %v4739, %v4739
      %v4804 = vpack.c.b16 %v4740, %v4740
      %v4805 = vpack.c.b16 %v4741, %v4741
      %v4806 = vpack.c.b16 %v4742, %v4742
      %v4807 = vpack.c.b16 %v4743, %v4743
      %v4808 = vpack.c.b16 %v4744, %v4744
      %v4809 = vpack.c.b16 %v4745, %v4745
      %v4810 = vpack.c.b16 %v4746, %v4746
      %v4811 = vpack.c.b16 %v4747, %v4747
      %v4812 = vunpack.c.l.b16 %v4748
      %v4813 = vunpack.c.l.b16 %v4749
      %v4814 = vunpack.c.l.b16 %v4750
      %v4815 = vunpack.c.l.b16 %v4751
      %v4816 = vunpack.c.l.b16 %v4752
      %v4817 = vunpack.c.l.b16 %v4753
      %v4818 = vunpack.c.l.b16 %v4754
      %v4819 = vunpack.c.l.b16 %v4755
      %v4820 = vunpack.c.l.b16 %v4756
      %v4821 = vunpack.c.l.b16 %v4757
      %v4822 = vunpack.c.l.b16 %v4758
      %v4823 = vunpack.c.l.b16 %v4759
      %v4824 = vunpack.c.l.b16 %v4760
      %v4825 = vunpack.c.l.b16 %v4761
      %v4826 = vunpack.c.l.b16 %v4762
      %v4827 = vunpack.c.l.b16 %v4763
      %v4828 = vunpack.c.l.b16 %v4764
      %v4829 = vunpack.c.l.b16 %v4765
      %v4830 = vunpack.c.l.b16 %v4766
      %v4831 = vunpack.c.l.b16 %v4767
      %v4832 = vunpack.c.l.b16 %v4768
      %v4833 = vunpack.c.l.b16 %v4769
      %v4834 = vunpack.c.l.b16 %v4770
      %v4835 = vunpack.c.l.b16 %v4771
      %v4836 = vunpack.c.l.b16 %v4772
      %v4837 = vunpack.c.l.b16 %v4773
      %v4838 = vunpack.c.l.b16 %v4774
      %v4839 = vunpack.c.l.b16 %v4775
      %v4840 = vunpack.c.l.b16 %v4776
      %v4841 = vunpack.c.l.b16 %v4777
      %v4842 = vunpack.c.l.b16 %v4778
      %v4843 = vunpack.c.l.b16 %v4779
      %v4844 = vunpack.c.l.b16 %v4780
      %v4845 = vunpack.c.l.b16 %v4781
      %v4846 = vunpack.c.l.b16 %v4782
      %v4847 = vunpack.c.l.b16 %v4783
      %v4848 = vunpack.c.l.b16 %v4784
      %v4849 = vunpack.c.l.b16 %v4785
      %v4850 = vunpack.c.l.b16 %v4786
      %v4851 = vunpack.c.l.b16 %v4787
      %v4852 = vunpack.c.l.b16 %v4788
      %v4853 = vunpack.c.l.b16 %v4789
      %v4854 = vunpack.c.l.b16 %v4790
      %v4855 = vunpack.c.l.b16 %v4791
      %v4856 = vunpack.c.l.b16 %v4792
      %v4857 = vunpack.c.l.b16 %v4793
      %v4858 = vunpack.c.l.b16 %v4794
      %v4859 = vunpack.c.l.b16 %v4795
      %v4860 = vunpack.c.l.b16 %v4796
      %v4861 = vunpack.c.l.b16 %v4797
      %v4862 = vunpack.c.l.b16 %v4798
      %v4863 = vunpack.c.l.b16 %v4799
      %v4864 = vunpack.c.l.b16 %v4800
      %v4865 = vunpack.c.l.b16 %v4801
      %v4866 = vunpack.c.l.b16 %v4802
      %v4867 = vunpack.c.l.b16 %v4803
      %v4868 = vunpack.c.l.b16 %v4804
      %v4869 = vunpack.c.l.b16 %v4805
      %v4870 = vunpack.c.l.b16 %v4806
      %v4871 = vunpack.c.l.b16 %v4807
      %v4872 = vunpack.c.l.b16 %v4808
      %v4873 = vunpack.c.l.b16 %v4809
      %v4874 = vunpack.c.l.b16 %v4810
      %v4875 = vunpack.c.l.b16 %v4811
      %vm4876 = vcmask 1041409
      %v4877 = vsel %vm4876, %v4813, %v4812
      %vm4878 = vcmask 1042434
      %v4879 = vsel %vm4878, %v4814, %v4877
      %vm4880 = vcmask 1043459
      %v4881 = vsel %vm4880, %v4815, %v4879
      %vm4882 = vcmask 1044484
      %v4883 = vsel %vm4882, %v4816, %v4881
      %vm4884 = vcmask 1045509
      %v4885 = vsel %vm4884, %v4817, %v4883
      %vm4886 = vcmask 1046534
      %v4887 = vsel %vm4886, %v4818, %v4885
      %vm4888 = vcmask 1047559
      %v4889 = vsel %vm4888, %v4819, %v4887
      %v4890 = vsel %vm4876, %v4821, %v4820
      %v4891 = vsel %vm4878, %v4822, %v4890
      %v4892 = vsel %vm4880, %v4823, %v4891
      %v4893 = vsel %vm4882, %v4824, %v4892
      %v4894 = vsel %vm4884, %v4825, %v4893
      %v4895 = vsel %vm4886, %v4826, %v4894
      %v4896 = vsel %vm4888, %v4827, %v4895
      %v4897 = vsel %vm4876, %v4829, %v4828
      %v4898 = vsel %vm4878, %v4830, %v4897
      %v4899 = vsel %vm4880, %v4831, %v4898
      %v4900 = vsel %vm4882, %v4832, %v4899
      %v4901 = vsel %vm4884, %v4833, %v4900
      %v4902 = vsel %vm4886, %v4834, %v4901
      %v4903 = vsel %vm4888, %v4835, %v4902
      %v4904 = vsel %vm4876, %v4837, %v4836
      %v4905 = vsel %vm4878, %v4838, %v4904
      %v4906 = vsel %vm4880, %v4839, %v4905
      %v4907 = vsel %vm4882, %v4840, %v4906
      %v4908 = vsel %vm4884, %v4841, %v4907
      %v4909 = vsel %vm4886, %v4842, %v4908
      %v4910 = vsel %vm4888, %v4843, %v4909
      %v4911 = vsel %vm4876, %v4845, %v4844
      %v4912 = vsel %vm4878, %v4846, %v4911
      %v4913 = vsel %vm4880, %v4847, %v4912
      %v4914 = vsel %vm4882, %v4848, %v4913
      %v4915 = vsel %vm4884, %v4849, %v4914
      %v4916 = vsel %vm4886, %v4850, %v4915
      %v4917 = vsel %vm4888, %v4851, %v4916
      %v4918 = vsel %vm4876, %v4853, %v4852
      %v4919 = vsel %vm4878, %v4854, %v4918
      %v4920 = vsel %vm4880, %v4855, %v4919
      %v4921 = vsel %vm4882, %v4856, %v4920
      %v4922 = vsel %vm4884, %v4857, %v4921
      %v4923 = vsel %vm4886, %v4858, %v4922
      %v4924 = vsel %vm4888, %v4859, %v4923
      %v4925 = vsel %vm4876, %v4861, %v4860
      %v4926 = vsel %vm4878, %v4862, %v4925
      %v4927 = vsel %vm4880, %v4863, %v4926
      %v4928 = vsel %vm4882, %v4864, %v4927
      %v4929 = vsel %vm4884, %v4865, %v4928
      %v4930 = vsel %vm4886, %v4866, %v4929
      %v4931 = vsel %vm4888, %v4867, %v4930
      %v4932 = vsel %vm4876, %v4869, %v4868
      %v4933 = vsel %vm4878, %v4870, %v4932
      %v4934 = vsel %vm4880, %v4871, %v4933
      %v4935 = vsel %vm4882, %v4872, %v4934
      %v4936 = vsel %vm4884, %v4873, %v4935
      %v4937 = vsel %vm4886, %v4874, %v4936
      %v4938 = vsel %vm4888, %v4875, %v4937
      %v4939 = vpack.c.b16 %v4889, %v4889
      %v4940 = vpack.c.b16 %v4896, %v4896
      %v4941 = vpack.c.b16 %v4903, %v4903
      %v4942 = vpack.c.b16 %v4910, %v4910
      %v4943 = vpack.c.b16 %v4917, %v4917
      %v4944 = vpack.c.b16 %v4924, %v4924
      %v4945 = vpack.c.b16 %v4931, %v4931
      %v4946 = vpack.c.b16 %v4938, %v4938
      %4955 = vst.msk [vmem:[%s170] sm:$0xf] %vm172, %v4939
      %4956 = vst.msk [vmem:[%s170 + $0x4] sm:$0xf] %vm172, %v4940
      %4957 = vst.msk [vmem:[%s170 + $0x8] sm:$0xf] %vm172, %v4941
      %4958 = vst.msk [vmem:[%s170 + $0xc] sm:$0xf] %vm172, %v4942
      %4959 = vst.msk [vmem:[%s170 + $0x10] sm:$0xf] %vm172, %v4943
      %4960 = vst.msk [vmem:[%s170 + $0x14] sm:$0xf] %vm172, %v4944
      %4961 = vst.msk [vmem:[%s170 + $0x18] sm:$0xf] %vm172, %v4945
      %4962 = vst.msk [vmem:[%s170 + $0x1c] sm:$0xf] %vm172, %v4946
      %p4963 = scmp.lt.s32.totalorder %s14, 3
      %s4964 = scalar_select %p4963, %s14, 3
      %s4965 = smul.addr %s4964, 8
      %s4966 = smul.addr %s4965, 4
      %s4967 = scalar_lea.vmem %s3, %s4966
      // Predicated region
      $region33: #{vgg_loss.4} parent=31 // pred_check
        %p4968 = pneg %p100
      $region34: #{vgg_loss.4} parent=31 // pred_check_branch
        %4970 = sbr.rel (%p4968) target = $region36
      $region35: #{vgg_loss.4} parent=31 // pred_region
        _
      $region36: #{vgg_loss.4} parent=31 // pred_fallthru
        _
    $region32: #{vgg_loss.4} parent=5 // pred_fallthru
      _
    %p4971 = scmp.le.s32.totalorder 2, %s9
    // Predicated region
    $region37: #{vgg_loss.4} parent=5 // pred_check
      %p4972 = pneg %p4971
    $region38: #{vgg_loss.4} parent=5 // pred_check_branch
      %4974 = sbr.rel (%p4972) target = $region40
    $region39: #{vgg_loss.4} parent=5 // pred_region
      %s4975 = ssub.s32 %s9, 2
      // Predicated region
      $region41: #{vgg_loss.4} parent=39 // pred_check
        %p4976 = pneg %p106
      $region42: #{vgg_loss.4} parent=39 // pred_check_branch
        %4978 = sbr.rel (%p4976) target = $region44
      $region43: #{vgg_loss.4} parent=39 // pred_region
        %p4979 = scmp.lt.s32.totalorder %s15, 3
        %s4980 = scalar_select %p4979, %s15, 3
        %s4981 = smul.addr %s4980, 8
        %s4982 = smul.addr %s4981, 4
        %s4983 = scalar_lea.vmem %s3, %s4982
      $region44: #{vgg_loss.4} parent=39 // pred_fallthru
        _
    $region40: #{vgg_loss.4} parent=5 // pred_fallthru
      _
  $region6: #{vgg_loss.4} parent=0 // loop_footer
    %s13 = sadd.s32 1, %s9
  $region7: #{vgg_loss.4} parent=0 // loop_footer_branch
    %8 = sbr.rel target = $region3
  $region8: #{vgg_loss.4} parent=0 // loop_exit
    _

</llo_original>
